<compile_context>
chip_gen: v7x
topology: tpu7x:2x2x1
jax: 0.10.0
libtpu: 0.0.40
codegen_flags: <defaults>
</compile_context>

<pallas_src>
import jax
import jax.numpy as jnp
from jax.experimental import pallas as pl
from jax.experimental.pallas import tpu as pltpu

# ---------------- problem sizes (MNIST-consistent) ----------------
B = 512                 # batch (multiple of the batch tile)
TB = 256                # batch tile per grid step (MXU-native rows on v6e/v7x)
Z_DIM = 100             # noise dimension
N_CLASSES = 10          # one-hot label dimension
ZY_DIM = Z_DIM + N_CLASSES
G_HIDDEN = 128          # generator hidden width
D_HIDDEN = 128          # discriminator hidden width
IMG_DIM = 1 * 28 * 28   # 784, flattened NCHW (B,1,28,28)
IMG_PAD = 896           # 7 * 128, zero-padded image axis (lane-dense)


def gan_kernel(zy_ref,                     # (TB, ZY_DIM)          f32
               gw1_ref, gb1_ref,           # (ZY_DIM, Gh) bf16, (1, Gh) f32
               gw2_ref, gb2_ref,           # (Gh, IMG_PAD) bf16, (1, IMG_PAD) f32
               dw1_ref, db1_ref,           # (IMG_PAD, Dh) bf16, (1, Dh) f32
               dw2_ref, db2_ref,           # (1, Dh) f32 (row = W.T), (1, 1) f32
               out_ref):                   # (TB, 1) f32
    # ---- Generator ----
    zy = zy_ref[...].astype(jnp.bfloat16)
    h = jnp.dot(zy, gw1_ref[...], preferred_element_type=jnp.float32) + gb1_ref[...]
    h = jnp.maximum(h, 0.0)                                        # ReLU (f32)
    img = jnp.dot(h.astype(jnp.bfloat16), gw2_ref[...],
                  preferred_element_type=jnp.float32) + gb2_ref[...]
    img = jnp.tanh(img)                                            # Tanh (f32); padded lanes stay 0

    # ---- Discriminator ----
    d1 = jnp.dot(img.astype(jnp.bfloat16), dw1_ref[...],
                 preferred_element_type=jnp.float32) + db1_ref[...]
    d1 = jnp.where(d1 > 0, d1, 0.2 * d1)                           # LeakyReLU(0.2) (f32)
    # Final Linear(128, 1): VPU multiply + lane reduction (avoids N=1 MXU pass).
    logit = jnp.sum(d1 * dw2_ref[...], axis=-1, keepdims=True) + db2_ref[...]
    out_ref[...] = jax.nn.sigmoid(logit)                           # D(G(z, y)) in (0, 1)


def gan_forward(z, y_onehot, params):
    """z: (B, Z_DIM) noise, y_onehot: (B, N_CLASSES). Returns D(G(z, y)): (B, 1)."""
    # TODO(synk): the z||y concat could be folded into the kernel as a label-row add
    # (one-hot matmul == row gather); kept as cheap XLA glue here.
    zy = jnp.concatenate([z, y_onehot], axis=1).astype(jnp.float32)
    (gw1, gb1, gw2, gb2, dw1, db1, dw2, db2) = params

    batch = zy.shape[0]
    assert batch % TB == 0, "batch must be a multiple of the batch tile"
    grid = (batch // TB,)

    # Activations tile over batch; weights/biases use constant index_maps so they are
    # fetched once and stay VMEM-resident across the whole grid.
    act_spec = pl.BlockSpec((TB, ZY_DIM), lambda i: (i, 0))
    w_spec = lambda shape: pl.BlockSpec(shape, lambda i: (0, 0))
    out_spec = pl.BlockSpec((TB, 1), lambda i: (i, 0))

    return pl.pallas_call(
        gan_kernel,
        out_shape=jax.ShapeDtypeStruct((batch, 1), jnp.float32),
        grid=grid,
        in_specs=[
            act_spec,
            w_spec((ZY_DIM, G_HIDDEN)), w_spec((1, G_HIDDEN)),
            w_spec((G_HIDDEN, IMG_PAD)), w_spec((1, IMG_PAD)),
            w_spec((IMG_PAD, D_HIDDEN)), w_spec((1, D_HIDDEN)),
            w_spec((1, D_HIDDEN)), w_spec((1, 1)),
        ],
        out_specs=out_spec,
        compiler_params=pltpu.CompilerParams(
            dimension_semantics=("parallel",),   # shards batch tiles across TCs on v7x
        ),
    )(zy, gw1, gb1, gw2, gb2, dw1, db1, dw2, db2)


def init_params(key):
    """Deterministic init. Weights stored as (in, out); big weights in bf16; image axis
    zero-padded 784 -> 896 (zero cols of gw2/gb2, zero rows of dw1)."""
    ks = jax.random.split(key, 4)
    s = 0.02
    gw1 = (s * jax.random.normal(ks[0], (ZY_DIM, G_HIDDEN), jnp.float32)).astype(jnp.bfloat16)
    gb1 = jnp.zeros((1, G_HIDDEN), jnp.float32)

    gw2 = s * jax.random.normal(ks[1], (G_HIDDEN, IMG_DIM), jnp.float32)
    gw2 = jnp.pad(gw2, ((0, 0), (0, IMG_PAD - IMG_DIM))).astype(jnp.bfloat16)
    gb2 = jnp.zeros((1, IMG_PAD), jnp.float32)           # padding columns are exactly zero

    dw1 = s * jax.random.normal(ks[2], (IMG_DIM, D_HIDDEN), jnp.float32)
    dw1 = jnp.pad(dw1, ((0, IMG_PAD - IMG_DIM), (0, 0))).astype(jnp.bfloat16)
    db1 = jnp.zeros((1, D_HIDDEN), jnp.float32)

    dw2 = s * jax.random.normal(ks[3], (1, D_HIDDEN), jnp.float32)   # row vector = W.T
    db2 = jnp.zeros((1, 1), jnp.float32)
    return (gw1, gb1, gw2, gb2, dw1, db1, dw2, db2)


def reference_forward(z, y_onehot, params):
    """Plain-JAX reference with the same bf16 matmul inputs / f32 accumulation."""
    gw1, gb1, gw2, gb2, dw1, db1, dw2, db2 = params
    zy = jnp.concatenate([z, y_onehot], axis=1).astype(jnp.float32)
    h = jnp.dot(zy.astype(jnp.bfloat16), gw1, preferred_element_type=jnp.float32) + gb1
    h = jnp.maximum(h, 0.0)
    img = jnp.dot(h.astype(jnp.bfloat16), gw2, preferred_element_type=jnp.float32) + gb2
    img = jnp.tanh(img)
    d1 = jnp.dot(img.astype(jnp.bfloat16), dw1, preferred_element_type=jnp.float32) + db1
    d1 = jnp.where(d1 > 0, d1, 0.2 * d1)
    logit = jnp.sum(d1 * dw2, axis=-1, keepdims=True) + db2
    return jax.nn.sigmoid(logit)


def reference_forward_f32(z, y_onehot, params):
    """Full-f32 reference (unpadded semantics of the original PyTorch module)."""
    gw1, gb1, gw2, gb2, dw1, db1, dw2, db2 = params
    zy = jnp.concatenate([z, y_onehot], axis=1).astype(jnp.float32)
    h = jnp.maximum(zy @ gw1.astype(jnp.float32) + gb1, 0.0)
    img = jnp.tanh(h @ gw2.astype(jnp.float32)[:, :IMG_DIM] + gb2[:, :IMG_DIM])
    d1 = img @ dw1.astype(jnp.float32)[:IMG_DIM, :] + db1
    d1 = jnp.where(d1 > 0, d1, 0.2 * d1)
    return jax.nn.sigmoid(d1 @ dw2.T + db2)


if __name__ == "__main__":
    key = jax.random.PRNGKey(0)
    k_param, k_z, k_y = jax.random.split(key, 3)

    params = init_params(k_param)

    z = jax.random.normal(k_z, (B, Z_DIM), jnp.float32)              # noise input x
    labels = jax.random.randint(k_y, (B,), 0, N_CLASSES)             # class condition y
    y_onehot = jax.nn.one_hot(labels, N_CLASSES, dtype=jnp.float32)

    out = gan_forward(z, y_onehot, params)
    out = jax.block_until_ready(out)

    ref_bf16 = reference_forward(z, y_onehot, params)
    ref_f32 = reference_forward_f32(z, y_onehot, params)

    assert out.shape == (B, 1)
    assert bool(jnp.all(jnp.isfinite(out)))
    # Exact-path check against a matching bf16-matmul reference.
    assert jnp.allclose(out, ref_bf16, atol=2e-3, rtol=2e-3), \
        float(jnp.max(jnp.abs(out - ref_bf16)))
    # Looser check against the original full-f32 semantics.
    assert jnp.allclose(out, ref_f32, atol=1e-2, rtol=1e-2), \
        float(jnp.max(jnp.abs(out - ref_f32)))

    print("KERNEL_OK")
</pallas_src>

<mosaic_0001>
module attributes {stable_mosaic.version = 11 : i64} {
  func.func @gan_kernel(%arg0: i32, %arg1: memref<256x110xf32, #tpu.memory_space<vmem>>, %arg2: memref<110x128xbf16, #tpu.memory_space<vmem>>, %arg3: memref<1x128xf32, #tpu.memory_space<vmem>>, %arg4: memref<128x896xbf16, #tpu.memory_space<vmem>>, %arg5: memref<1x896xf32, #tpu.memory_space<vmem>>, %arg6: memref<896x128xbf16, #tpu.memory_space<vmem>>, %arg7: memref<1x128xf32, #tpu.memory_space<vmem>>, %arg8: memref<1x128xf32, #tpu.memory_space<vmem>>, %arg9: memref<1x1xf32, #tpu.memory_space<vmem>>, %arg10: memref<256x1xf32, #tpu.memory_space<vmem>>) attributes {dimension_semantics = [#tpu.dimension_semantics<parallel>], iteration_bounds = array<i64: 2>, scalar_prefetch = 0 : i64, scratch_operands = 0 : i64, tpu.core_type = #tpu.core_type<tc>, window_params = [{transform_indices = @transform_0, window_bounds = array<i64: 256, 110>}, {pipeline_mode = #tpu.pipeline_mode<synchronous>, transform_indices = @transform_1, window_bounds = array<i64: 110, 128>}, {pipeline_mode = #tpu.pipeline_mode<synchronous>, transform_indices = @transform_2, window_bounds = array<i64: 1, 128>}, {pipeline_mode = #tpu.pipeline_mode<synchronous>, transform_indices = @transform_3, window_bounds = array<i64: 128, 896>}, {pipeline_mode = #tpu.pipeline_mode<synchronous>, transform_indices = @transform_4, window_bounds = array<i64: 1, 896>}, {pipeline_mode = #tpu.pipeline_mode<synchronous>, transform_indices = @transform_5, window_bounds = array<i64: 896, 128>}, {pipeline_mode = #tpu.pipeline_mode<synchronous>, transform_indices = @transform_6, window_bounds = array<i64: 1, 128>}, {pipeline_mode = #tpu.pipeline_mode<synchronous>, transform_indices = @transform_7, window_bounds = array<i64: 1, 128>}, {pipeline_mode = #tpu.pipeline_mode<synchronous>, transform_indices = @transform_8, window_bounds = array<i64: 1, 1>}, {transform_indices = @transform_9, window_bounds = array<i64: 256, 1>}]} {
    %c0 = arith.constant 0 : index
    %c0_0 = arith.constant 0 : index
    %0 = vector.load %arg1[%c0, %c0_0] : memref<256x110xf32, #tpu.memory_space<vmem>>, vector<256x110xf32>
    %1 = arith.truncf %0 : vector<256x110xf32> to vector<256x110xbf16>
    %c0_1 = arith.constant 0 : index
    %c0_2 = arith.constant 0 : index
    %2 = vector.load %arg2[%c0_1, %c0_2] : memref<110x128xbf16, #tpu.memory_space<vmem>>, vector<110x128xbf16>
    %cst = arith.constant dense<0.000000e+00> : vector<256x128xf32>
    %3 = tpu.matmul %1, %2, %cst {dimension_numbers = #tpu.dot_dimension_numbers<[1], [0], [0], [1], [0, 0, 1, 1], [], []>} : vector<256x110xbf16>, vector<110x128xbf16>, vector<256x128xf32> -> vector<256x128xf32>
    %c0_3 = arith.constant 0 : index
    %c0_4 = arith.constant 0 : index
    %4 = vector.load %arg3[%c0_3, %c0_4] : memref<1x128xf32, #tpu.memory_space<vmem>>, vector<1x128xf32>
    %5 = vector.broadcast %4 : vector<1x128xf32> to vector<256x128xf32>
    %6 = arith.addf %3, %5 : vector<256x128xf32>
    %cst_5 = arith.constant 0.000000e+00 : f32
    %7 = vector.broadcast %cst_5 : f32 to vector<256x128xf32>
    %8 = arith.maximumf %6, %7 : vector<256x128xf32>
    %9 = arith.truncf %8 : vector<256x128xf32> to vector<256x128xbf16>
    %c0_6 = arith.constant 0 : index
    %c0_7 = arith.constant 0 : index
    %10 = vector.load %arg4[%c0_6, %c0_7] : memref<128x896xbf16, #tpu.memory_space<vmem>>, vector<128x896xbf16>
    %cst_8 = arith.constant dense<0.000000e+00> : vector<256x896xf32>
    %11 = tpu.matmul %9, %10, %cst_8 {dimension_numbers = #tpu.dot_dimension_numbers<[1], [0], [0], [1], [0, 0, 1, 1], [], []>} : vector<256x128xbf16>, vector<128x896xbf16>, vector<256x896xf32> -> vector<256x896xf32>
    %c0_9 = arith.constant 0 : index
    %c0_10 = arith.constant 0 : index
    %12 = vector.load %arg5[%c0_9, %c0_10] : memref<1x896xf32, #tpu.memory_space<vmem>>, vector<1x896xf32>
    %13 = vector.broadcast %12 : vector<1x896xf32> to vector<256x896xf32>
    %14 = arith.addf %11, %13 : vector<256x896xf32>
    %15 = math.tanh %14 : vector<256x896xf32>
    %16 = arith.truncf %15 : vector<256x896xf32> to vector<256x896xbf16>
    %c0_11 = arith.constant 0 : index
    %c0_12 = arith.constant 0 : index
    %17 = vector.load %arg6[%c0_11, %c0_12] : memref<896x128xbf16, #tpu.memory_space<vmem>>, vector<896x128xbf16>
    %cst_13 = arith.constant dense<0.000000e+00> : vector<256x128xf32>
    %18 = tpu.matmul %16, %17, %cst_13 {dimension_numbers = #tpu.dot_dimension_numbers<[1], [0], [0], [1], [0, 0, 1, 1], [], []>} : vector<256x896xbf16>, vector<896x128xbf16>, vector<256x128xf32> -> vector<256x128xf32>
    %c0_14 = arith.constant 0 : index
    %c0_15 = arith.constant 0 : index
    %19 = vector.load %arg7[%c0_14, %c0_15] : memref<1x128xf32, #tpu.memory_space<vmem>>, vector<1x128xf32>
    %20 = vector.broadcast %19 : vector<1x128xf32> to vector<256x128xf32>
    %21 = arith.addf %18, %20 : vector<256x128xf32>
    %cst_16 = arith.constant 0.000000e+00 : f32
    %22 = vector.broadcast %cst_16 : f32 to vector<256x128xf32>
    %23 = arith.cmpf ogt, %21, %22 : vector<256x128xf32>
    %cst_17 = arith.constant 2.000000e-01 : f32
    %24 = vector.broadcast %cst_17 : f32 to vector<256x128xf32>
    %25 = arith.mulf %24, %21 : vector<256x128xf32>
    %26 = arith.select %23, %21, %25 : vector<256x128xi1>, vector<256x128xf32>
    %c0_18 = arith.constant 0 : index
    %c0_19 = arith.constant 0 : index
    %27 = vector.load %arg8[%c0_18, %c0_19] : memref<1x128xf32, #tpu.memory_space<vmem>>, vector<1x128xf32>
    %28 = vector.broadcast %27 : vector<1x128xf32> to vector<256x128xf32>
    %29 = arith.mulf %26, %28 : vector<256x128xf32>
    %cst_20 = arith.constant dense<0.000000e+00> : vector<256xf32>
    %30 = vector.multi_reduction <add>, %29, %cst_20 [1] : vector<256x128xf32> to vector<256xf32>
    %31 = vector.shape_cast %30 : vector<256xf32> to vector<256x1xf32>
    %c0_21 = arith.constant 0 : index
    %c0_22 = arith.constant 0 : index
    %32 = vector.load %arg9[%c0_21, %c0_22] : memref<1x1xf32, #tpu.memory_space<vmem>>, vector<1x1xf32>
    %33 = vector.broadcast %32 : vector<1x1xf32> to vector<256x1xf32>
    %34 = arith.addf %31, %33 : vector<256x1xf32>
    %35 = arith.negf %34 : vector<256x1xf32>
    %36 = math.exp %35 : vector<256x1xf32>
    %cst_23 = arith.constant 1.000000e+00 : f32
    %37 = vector.broadcast %cst_23 : f32 to vector<256x1xf32>
    %38 = arith.addf %37, %36 : vector<256x1xf32>
    %39 = arith.divf %37, %38 : vector<256x1xf32>
    %c0_24 = arith.constant 0 : index
    %c0_25 = arith.constant 0 : index
    %40 = vector.load %arg10[%c0_24, %c0_25] : memref<256x1xf32, #tpu.memory_space<vmem>>, vector<256x1xf32>
    tpu.vector_store %arg10[%c0_24, %c0_25], %39 {strides = array<i32>} : memref<256x1xf32, #tpu.memory_space<vmem>>, vector<256x1xf32>,
    return
  }
  func.func @transform_0(%arg0: i32) -> (i32, i32) {
    %c0_i32 = arith.constant 0 : i32
    %c0_i32_0 = arith.constant 0 : i32
    return %arg0, %c0_i32 : i32, i32
  }
  func.func @transform_1(%arg0: i32) -> (i32, i32) {
    %c0_i32 = arith.constant 0 : i32
    %c0_i32_0 = arith.constant 0 : i32
    %c0_i32_1 = arith.constant 0 : i32
    return %c0_i32, %c0_i32_0 : i32, i32
  }
  func.func @transform_2(%arg0: i32) -> (i32, i32) {
    %c0_i32 = arith.constant 0 : i32
    %c0_i32_0 = arith.constant 0 : i32
    %c0_i32_1 = arith.constant 0 : i32
    return %c0_i32, %c0_i32_0 : i32, i32
  }
  func.func @transform_3(%arg0: i32) -> (i32, i32) {
    %c0_i32 = arith.constant 0 : i32
    %c0_i32_0 = arith.constant 0 : i32
    %c0_i32_1 = arith.constant 0 : i32
    return %c0_i32, %c0_i32_0 : i32, i32
  }
  func.func @transform_4(%arg0: i32) -> (i32, i32) {
    %c0_i32 = arith.constant 0 : i32
    %c0_i32_0 = arith.constant 0 : i32
    %c0_i32_1 = arith.constant 0 : i32
    return %c0_i32, %c0_i32_0 : i32, i32
  }
  func.func @transform_5(%arg0: i32) -> (i32, i32) {
    %c0_i32 = arith.constant 0 : i32
    %c0_i32_0 = arith.constant 0 : i32
    %c0_i32_1 = arith.constant 0 : i32
    return %c0_i32, %c0_i32_0 : i32, i32
  }
  func.func @transform_6(%arg0: i32) -> (i32, i32) {
    %c0_i32 = arith.constant 0 : i32
    %c0_i32_0 = arith.constant 0 : i32
    %c0_i32_1 = arith.constant 0 : i32
    return %c0_i32, %c0_i32_0 : i32, i32
  }
  func.func @transform_7(%arg0: i32) -> (i32, i32) {
    %c0_i32 = arith.constant 0 : i32
    %c0_i32_0 = arith.constant 0 : i32
    %c0_i32_1 = arith.constant 0 : i32
    return %c0_i32, %c0_i32_0 : i32, i32
  }
  func.func @transform_8(%arg0: i32) -> (i32, i32) {
    %c0_i32 = arith.constant 0 : i32
    %c0_i32_0 = arith.constant 0 : i32
    %c0_i32_1 = arith.constant 0 : i32
    return %c0_i32, %c0_i32_0 : i32, i32
  }
  func.func @transform_9(%arg0: i32) -> (i32, i32) {
    %c0_i32 = arith.constant 0 : i32
    %c0_i32_0 = arith.constant 0 : i32
    return %arg0, %c0_i32 : i32, i32
  }
}

</mosaic_0001>

<llo_original>
// kernel: tpu_custom_call.1
$region0: #{tpu_custom_call.1}
  #allocation0 [shape = 'u32[]', space=smem, size = 0x4, offset = 0x4, fixed_abs, tag = 'smem constant byte address 0x4 - core index']
  #allocation1 [shape = 'u32[144,128]{1,0:T(1,128)}', space=vmem, size = 0x12000, scoped, tag = 'internal scratch']
  #allocation2 [shape = 'f32[1,1]{1,0:T(1,128)S(1)}', space=vmem, size = 0x200, scoped, tag = 'scoped memory for tpu_custom_call.1']
  %s0 = inlined_call_operand.vmem [shape: f32[512,110], index: 0, kind: input, shape index: {}]
  %s1 = inlined_call_operand.vmem [shape: bf16[110,128], index: 1, kind: input, shape index: {}]
  %s2 = inlined_call_operand.vmem [shape: f32[1,128], index: 2, kind: input, shape index: {}]
  %s3 = inlined_call_operand.vmem [shape: bf16[128,896], index: 3, kind: input, shape index: {}]
  %s4 = inlined_call_operand.vmem [shape: f32[1,896], index: 4, kind: input, shape index: {}]
  %s5 = inlined_call_operand.vmem [shape: bf16[896,128], index: 5, kind: input, shape index: {}]
  %s6 = inlined_call_operand.vmem [shape: f32[1,128], index: 6, kind: input, shape index: {}]
  %s7 = inlined_call_operand.vmem [shape: f32[1,128], index: 7, kind: input, shape index: {}]
  %s8 = inlined_call_operand.<no memory space> [shape: f32[1,1], index: 8, kind: input, shape index: {}]
  %s9 = inlined_call_operand.vmem [shape: f32[512,1], index: 9, kind: output, shape index: {}]
  %s10 = sld [smem:[#allocation0]]
  $region69: #{tpu_custom_call.1} parent=0
    _
  %s12 = ssub.s32 1, %s10
  %s13 = scalar_select 0, %s12, %s10
  %v14 = vstv %s8
  %15 = vst [vmem:[#allocation2] sm:$0x1] %v14
  loop: start=0, step=1, limit=4
  $region2: #{tpu_custom_call.1} parent=0 // loop_pre_header
    _
  $region3: #{tpu_custom_call.1} parent=0 // loop_header
    %s17 = sphi 0, %s21
    %p18 = scmp.ge.s32.totalorder %s17, 4
    %s27 = sphi 0, %s29
    %s30 = sphi 0, %s27
    %s31 = sphi 0, %s30
    %s47 = sphi 0, %s31
    %s51 = sphi 0, %s51
    %s53 = sphi 0, %s51
    %s54 = sphi 0, %s53
    %s68 = sphi 0, %s54
    %s72 = sphi 0, %s72
    %s74 = sphi 0, %s72
    %s75 = sphi 0, %s74
    %s89 = sphi 0, %s75
    %s93 = sphi 0, %s93
    %s95 = sphi 0, %s93
    %s96 = sphi 0, %s95
    %s110 = sphi 0, %s96
    %s114 = sphi 0, %s114
    %s116 = sphi 0, %s114
    %s117 = sphi 0, %s116
    %s131 = sphi 0, %s117
    %s135 = sphi 0, %s135
    %s137 = sphi 0, %s135
    %s138 = sphi 0, %s137
    %s152 = sphi 0, %s138
    %s156 = sphi 0, %s156
    %s158 = sphi 0, %s156
    %s159 = sphi 0, %s158
    %s173 = sphi 0, %s159
    %s177 = sphi 0, %s177
    %s179 = sphi 0, %s177
    %s180 = sphi 0, %s179
    %s194 = sphi 0, %s180
    %s198 = sphi 0, %s198
    %s200 = sphi 0, %s198
    %s201 = sphi 0, %s200
    %s215 = sphi 0, %s201
    %s221 = sphi 0, %s223
    %s224 = sphi 0, %s221
    %s225 = sphi 0, %s224
    %s241 = sphi 0, %s225
  $region4: #{tpu_custom_call.1} parent=0 // loop_header_branch
    %20 = sbr.rel (%p18) target = $region8
  $region5: #{tpu_custom_call.1} parent=0 // loop_body
    %s22 = ssub.s32 %s17, 1
    %s23 = ssub.s32 %s17, 2
    %s24 = sadd.s32 %s17, 1
    %s25 = ssub.s32 %s17, %s24
    %p26 = scmp.eq.s32.totalorder %s25, 0
    %s28 = sadd.s32 %s27, 1
    %s29 = scalar_select %p26, %s27, %s28
    %p32 = pneg %p26
    %p33 = scmp.eq.s32.totalorder %s17, 1
    %p34 = por %p32, %p33
    %p35 = scmp.ne.s32.totalorder %s27, %s30
    %p36 = scmp.eq.s32.totalorder %s17, 0
    %p37 = por %p35, %p36
    %p38 = scmp.ne.s32.totalorder %s27, %s30
    %p39 = scmp.eq.s32.totalorder %s22, 1
    %p40 = por %p38, %p39
    %p41 = scmp.ne.s32.totalorder %s30, %s31
    %p42 = scmp.eq.s32.totalorder %s22, 0
    %p43 = por %p41, %p42
    %p44 = scmp.ne.s32.totalorder %s30, %s31
    %p45 = scmp.eq.s32.totalorder %s23, 1
    %p46 = por %p44, %p45
    %p48 = scmp.ne.s32.totalorder %s31, %s47
    %p49 = scmp.eq.s32.totalorder %s23, 0
    %p50 = por %p48, %p49
    %s52 = sadd.s32 %s51, 1
    %p55 = scmp.eq.s32.totalorder %s17, 1
    %p56 = scmp.ne.s32.totalorder %s51, %s53
    %p57 = scmp.eq.s32.totalorder %s17, 0
    %p58 = por %p56, %p57
    %p59 = scmp.ne.s32.totalorder %s51, %s53
    %p60 = scmp.eq.s32.totalorder %s22, 1
    %p61 = por %p59, %p60
    %p62 = scmp.ne.s32.totalorder %s53, %s54
    %p63 = scmp.eq.s32.totalorder %s22, 0
    %p64 = por %p62, %p63
    %p65 = scmp.ne.s32.totalorder %s53, %s54
    %p66 = scmp.eq.s32.totalorder %s23, 1
    %p67 = por %p65, %p66
    %p69 = scmp.ne.s32.totalorder %s54, %s68
    %p70 = scmp.eq.s32.totalorder %s23, 0
    %p71 = por %p69, %p70
    %s73 = sadd.s32 %s72, 1
    %p76 = scmp.eq.s32.totalorder %s17, 1
    %p77 = scmp.ne.s32.totalorder %s72, %s74
    %p78 = scmp.eq.s32.totalorder %s17, 0
    %p79 = por %p77, %p78
    %p80 = scmp.ne.s32.totalorder %s72, %s74
    %p81 = scmp.eq.s32.totalorder %s22, 1
    %p82 = por %p80, %p81
    %p83 = scmp.ne.s32.totalorder %s74, %s75
    %p84 = scmp.eq.s32.totalorder %s22, 0
    %p85 = por %p83, %p84
    %p86 = scmp.ne.s32.totalorder %s74, %s75
    %p87 = scmp.eq.s32.totalorder %s23, 1
    %p88 = por %p86, %p87
    %p90 = scmp.ne.s32.totalorder %s75, %s89
    %p91 = scmp.eq.s32.totalorder %s23, 0
    %p92 = por %p90, %p91
    %s94 = sadd.s32 %s93, 1
    %p97 = scmp.eq.s32.totalorder %s17, 1
    %p98 = scmp.ne.s32.totalorder %s93, %s95
    %p99 = scmp.eq.s32.totalorder %s17, 0
    %p100 = por %p98, %p99
    %p101 = scmp.ne.s32.totalorder %s93, %s95
    %p102 = scmp.eq.s32.totalorder %s22, 1
    %p103 = por %p101, %p102
    %p104 = scmp.ne.s32.totalorder %s95, %s96
    %p105 = scmp.eq.s32.totalorder %s22, 0
    %p106 = por %p104, %p105
    %p107 = scmp.ne.s32.totalorder %s95, %s96
    %p108 = scmp.eq.s32.totalorder %s23, 1
    %p109 = por %p107, %p108
    %p111 = scmp.ne.s32.totalorder %s96, %s110
    %p112 = scmp.eq.s32.totalorder %s23, 0
    %p113 = por %p111, %p112
    %s115 = sadd.s32 %s114, 1
    %p118 = scmp.eq.s32.totalorder %s17, 1
    %p119 = scmp.ne.s32.totalorder %s114, %s116
    %p120 = scmp.eq.s32.totalorder %s17, 0
    %p121 = por %p119, %p120
    %p122 = scmp.ne.s32.totalorder %s114, %s116
    %p123 = scmp.eq.s32.totalorder %s22, 1
    %p124 = por %p122, %p123
    %p125 = scmp.ne.s32.totalorder %s116, %s117
    %p126 = scmp.eq.s32.totalorder %s22, 0
    %p127 = por %p125, %p126
    %p128 = scmp.ne.s32.totalorder %s116, %s117
    %p129 = scmp.eq.s32.totalorder %s23, 1
    %p130 = por %p128, %p129
    %p132 = scmp.ne.s32.totalorder %s117, %s131
    %p133 = scmp.eq.s32.totalorder %s23, 0
    %p134 = por %p132, %p133
    %s136 = sadd.s32 %s135, 1
    %p139 = scmp.eq.s32.totalorder %s17, 1
    %p140 = scmp.ne.s32.totalorder %s135, %s137
    %p141 = scmp.eq.s32.totalorder %s17, 0
    %p142 = por %p140, %p141
    %p143 = scmp.ne.s32.totalorder %s135, %s137
    %p144 = scmp.eq.s32.totalorder %s22, 1
    %p145 = por %p143, %p144
    %p146 = scmp.ne.s32.totalorder %s137, %s138
    %p147 = scmp.eq.s32.totalorder %s22, 0
    %p148 = por %p146, %p147
    %p149 = scmp.ne.s32.totalorder %s137, %s138
    %p150 = scmp.eq.s32.totalorder %s23, 1
    %p151 = por %p149, %p150
    %p153 = scmp.ne.s32.totalorder %s138, %s152
    %p154 = scmp.eq.s32.totalorder %s23, 0
    %p155 = por %p153, %p154
    %s157 = sadd.s32 %s156, 1
    %p160 = scmp.eq.s32.totalorder %s17, 1
    %p161 = scmp.ne.s32.totalorder %s156, %s158
    %p162 = scmp.eq.s32.totalorder %s17, 0
    %p163 = por %p161, %p162
    %p164 = scmp.ne.s32.totalorder %s156, %s158
    %p165 = scmp.eq.s32.totalorder %s22, 1
    %p166 = por %p164, %p165
    %p167 = scmp.ne.s32.totalorder %s158, %s159
    %p168 = scmp.eq.s32.totalorder %s22, 0
    %p169 = por %p167, %p168
    %p170 = scmp.ne.s32.totalorder %s158, %s159
    %p171 = scmp.eq.s32.totalorder %s23, 1
    %p172 = por %p170, %p171
    %p174 = scmp.ne.s32.totalorder %s159, %s173
    %p175 = scmp.eq.s32.totalorder %s23, 0
    %p176 = por %p174, %p175
    %s178 = sadd.s32 %s177, 1
    %p181 = scmp.eq.s32.totalorder %s17, 1
    %p182 = scmp.ne.s32.totalorder %s177, %s179
    %p183 = scmp.eq.s32.totalorder %s17, 0
    %p184 = por %p182, %p183
    %p185 = scmp.ne.s32.totalorder %s177, %s179
    %p186 = scmp.eq.s32.totalorder %s22, 1
    %p187 = por %p185, %p186
    %p188 = scmp.ne.s32.totalorder %s179, %s180
    %p189 = scmp.eq.s32.totalorder %s22, 0
    %p190 = por %p188, %p189
    %p191 = scmp.ne.s32.totalorder %s179, %s180
    %p192 = scmp.eq.s32.totalorder %s23, 1
    %p193 = por %p191, %p192
    %p195 = scmp.ne.s32.totalorder %s180, %s194
    %p196 = scmp.eq.s32.totalorder %s23, 0
    %p197 = por %p195, %p196
    %s199 = sadd.s32 %s198, 1
    %p202 = scmp.eq.s32.totalorder %s17, 1
    %p203 = scmp.ne.s32.totalorder %s198, %s200
    %p204 = scmp.eq.s32.totalorder %s17, 0
    %p205 = por %p203, %p204
    %p206 = scmp.ne.s32.totalorder %s198, %s200
    %p207 = scmp.eq.s32.totalorder %s22, 1
    %p208 = por %p206, %p207
    %p209 = scmp.ne.s32.totalorder %s200, %s201
    %p210 = scmp.eq.s32.totalorder %s22, 0
    %p211 = por %p209, %p210
    %p212 = scmp.ne.s32.totalorder %s200, %s201
    %p213 = scmp.eq.s32.totalorder %s23, 1
    %p214 = por %p212, %p213
    %p216 = scmp.ne.s32.totalorder %s201, %s215
    %p217 = scmp.eq.s32.totalorder %s23, 0
    %p218 = por %p216, %p217
    %s219 = ssub.s32 %s17, %s24
    %p220 = scmp.eq.s32.totalorder %s219, 0
    %s222 = sadd.s32 %s221, 1
    %s223 = scalar_select %p220, %s221, %s222
    %p226 = pneg %p220
    %p227 = scmp.eq.s32.totalorder %s17, 1
    %p228 = por %p226, %p227
    %p229 = scmp.ne.s32.totalorder %s221, %s224
    %p230 = scmp.eq.s32.totalorder %s17, 0
    %p231 = por %p229, %p230
    %p232 = scmp.ne.s32.totalorder %s221, %s224
    %p233 = scmp.eq.s32.totalorder %s22, 1
    %p234 = por %p232, %p233
    %p235 = scmp.ne.s32.totalorder %s224, %s225
    %p236 = scmp.eq.s32.totalorder %s22, 0
    %p237 = por %p235, %p236
    %p238 = scmp.ne.s32.totalorder %s224, %s225
    %p239 = scmp.eq.s32.totalorder %s23, 1
    %p240 = por %p238, %p239
    %p242 = scmp.ne.s32.totalorder %s225, %s241
    %p243 = scmp.eq.s32.totalorder %s23, 0
    %p244 = por %p242, %p243
    %p245 = scmp.le.s32.totalorder 1, %s17
    %p246 = scmp.lt.s32.totalorder %s17, 3
    %p247 = pnand %p245, %p246
    %p248 = pneg %p247
    // Predicated region
    $region9: #{tpu_custom_call.1} parent=5 // pred_check
      _
    $region10: #{tpu_custom_call.1} parent=5 // pred_check_branch
      %250 = sbr.rel (%p247) target = $region12
    $region11: #{tpu_custom_call.1} parent=5 // pred_region
      %s251 = ssub.s32 %s17, 1
      // Predicated region
      $region13: #{tpu_custom_call.1} parent=11 // pred_check
        %p252 = pneg %p64
      $region14: #{tpu_custom_call.1} parent=11 // pred_check_branch
        %254 = sbr.rel (%p252) target = $region16
      $region15: #{tpu_custom_call.1} parent=11 // pred_region
        _
      $region16: #{tpu_custom_call.1} parent=11 // pred_fallthru
        _
      // Predicated region
      $region17: #{tpu_custom_call.1} parent=11 // pred_check
        %p255 = pneg %p85
      $region18: #{tpu_custom_call.1} parent=11 // pred_check_branch
        %257 = sbr.rel (%p255) target = $region20
      $region19: #{tpu_custom_call.1} parent=11 // pred_region
        _
      $region20: #{tpu_custom_call.1} parent=11 // pred_fallthru
        _
      // Predicated region
      $region21: #{tpu_custom_call.1} parent=11 // pred_check
        %p258 = pneg %p106
      $region22: #{tpu_custom_call.1} parent=11 // pred_check_branch
        %260 = sbr.rel (%p258) target = $region24
      $region23: #{tpu_custom_call.1} parent=11 // pred_region
        _
      $region24: #{tpu_custom_call.1} parent=11 // pred_fallthru
        _
      // Predicated region
      $region25: #{tpu_custom_call.1} parent=11 // pred_check
        %p261 = pneg %p127
      $region26: #{tpu_custom_call.1} parent=11 // pred_check_branch
        %263 = sbr.rel (%p261) target = $region28
      $region27: #{tpu_custom_call.1} parent=11 // pred_region
        _
      $region28: #{tpu_custom_call.1} parent=11 // pred_fallthru
        _
      // Predicated region
      $region29: #{tpu_custom_call.1} parent=11 // pred_check
        %p264 = pneg %p148
      $region30: #{tpu_custom_call.1} parent=11 // pred_check_branch
        %266 = sbr.rel (%p264) target = $region32
      $region31: #{tpu_custom_call.1} parent=11 // pred_region
        _
      $region32: #{tpu_custom_call.1} parent=11 // pred_fallthru
        _
      // Predicated region
      $region33: #{tpu_custom_call.1} parent=11 // pred_check
        %p267 = pneg %p169
      $region34: #{tpu_custom_call.1} parent=11 // pred_check_branch
        %269 = sbr.rel (%p267) target = $region36
      $region35: #{tpu_custom_call.1} parent=11 // pred_region
        _
      $region36: #{tpu_custom_call.1} parent=11 // pred_fallthru
        _
      // Predicated region
      $region37: #{tpu_custom_call.1} parent=11 // pred_check
        %p270 = pneg %p190
      $region38: #{tpu_custom_call.1} parent=11 // pred_check_branch
        %272 = sbr.rel (%p270) target = $region40
      $region39: #{tpu_custom_call.1} parent=11 // pred_region
        _
      $region40: #{tpu_custom_call.1} parent=11 // pred_fallthru
        _
      // Predicated region
      $region41: #{tpu_custom_call.1} parent=11 // pred_check
        %p273 = pneg %p211
      $region42: #{tpu_custom_call.1} parent=11 // pred_check_branch
        %275 = sbr.rel (%p273) target = $region44
      $region43: #{tpu_custom_call.1} parent=11 // pred_region
        _
      $region44: #{tpu_custom_call.1} parent=11 // pred_fallthru
        _
    $region12: #{tpu_custom_call.1} parent=5 // pred_fallthru
      _
    %p276 = scmp.lt.s32.totalorder %s17, 2
    // Predicated region
    $region45: #{tpu_custom_call.1} parent=5 // pred_check
      %p277 = pneg %p276
    $region46: #{tpu_custom_call.1} parent=5 // pred_check_branch
      %279 = sbr.rel (%p277) target = $region48
    $region47: #{tpu_custom_call.1} parent=5 // pred_region
      // Predicated region
      $region49: #{tpu_custom_call.1} parent=47 // pred_check
        %p280 = pneg %p37
      $region50: #{tpu_custom_call.1} parent=47 // pred_check_branch
        %282 = sbr.rel (%p280) target = $region52
      $region51: #{tpu_custom_call.1} parent=47 // pred_region
        %s283 = smul.u32 32, %s17
        %p284 = scmp.lt.s32.totalorder %s283, 63
        %s285 = scalar_select %p284, %s283, 63
        %s286 = smul.addr %s285, 8
        %s287 = scalar_lea.vmem %s0, %s286
        %s288 = smul.u32 32, %s17
      $region52: #{tpu_custom_call.1} parent=47 // pred_fallthru
        _
    $region48: #{tpu_custom_call.1} parent=5 // pred_fallthru
      _
    %p289 = scmp.le.s32.totalorder 1, %s17
    %p290 = scmp.lt.s32.totalorder %s17, 3
    %p291 = pnand %p289, %p290
    %p292 = pneg %p291
    // Predicated region
    $region53: #{tpu_custom_call.1} parent=5 // pred_check
      _
    $region54: #{tpu_custom_call.1} parent=5 // pred_check_branch
      %294 = sbr.rel (%p291) target = $region56
    $region55: #{tpu_custom_call.1} parent=5 // pred_region
      %s295 = ssub.s32 %s17, 1
      %s296 = smul.u32 32, %s22
      %p297 = scmp.lt.s32.totalorder %s296, 63
      %s298 = scalar_select %p297, %s296, 63
      %s299 = smul.addr %s298, 8
      %s300 = scalar_lea.vmem %s0, %s299
      %p301 = pneg %p43
      %p302 = pneg %p40
      %p303 = pneg %p64
      %p304 = pneg %p61
      %p305 = pneg %p85
      %p306 = pneg %p82
      %p307 = pneg %p106
      %p308 = pneg %p103
      %p309 = pneg %p127
      %p310 = pneg %p124
      %p311 = pneg %p148
      %p312 = pneg %p145
      %p313 = pneg %p169
      %p314 = pneg %p166
      %p315 = pneg %p190
      %p316 = pneg %p187
      %p317 = pneg %p211
      %p318 = pneg %p208
      %p319 = pneg %p237
      %p320 = pneg %p234
      %s321 = smul.u32 32, %s22
      %p322 = scmp.lt.s32.totalorder %s321, 63
      %s323 = scalar_select %p322, %s321, 63
      %s324 = smul.addr %s323, 8
      %s325 = scalar_lea.vmem %s9, %s324
      %s326 = smul.u32 32, %s22
      %p327 = scmp.lt.s32.totalorder %s326, 63
      %s328 = scalar_select %p327, %s326, 63
      %s329 = smul.addr %s328, 8
      %s330 = scalar_lea.vmem %s0, %s329
      %s331 = smul.u32 32, %s22
      %s332 = smul.u32 32, %s22
      %p333 = scmp.lt.s32.totalorder %s332, 63
      %s334 = scalar_select %p333, %s332, 63
      %s335 = smul.addr %s334, 8
      %s336 = scalar_lea.vmem %s9, %s335
      %s337 = smul.u32 32, %s22
      %v339 = vld [vmem:[%s330] sm:$0xff]
      %v340 = vld [vmem:[%s330 + $0x8] sm:$0xff]
      %v341 = vld [vmem:[%s330 + $0x10] sm:$0xff]
      %v342 = vld [vmem:[%s330 + $0x18] sm:$0xff]
      %v343 = vld [vmem:[%s330 + $0x20] sm:$0xff]
      %v344 = vld [vmem:[%s330 + $0x28] sm:$0xff]
      %v345 = vld [vmem:[%s330 + $0x30] sm:$0xff]
      %v346 = vld [vmem:[%s330 + $0x38] sm:$0xff]
      %v347 = vld [vmem:[%s330 + $0x40] sm:$0xff]
      %v348 = vld [vmem:[%s330 + $0x48] sm:$0xff]
      %v349 = vld [vmem:[%s330 + $0x50] sm:$0xff]
      %v350 = vld [vmem:[%s330 + $0x58] sm:$0xff]
      %v351 = vld [vmem:[%s330 + $0x60] sm:$0xff]
      %v352 = vld [vmem:[%s330 + $0x68] sm:$0xff]
      %v353 = vld [vmem:[%s330 + $0x70] sm:$0xff]
      %v354 = vld [vmem:[%s330 + $0x78] sm:$0xff]
      %v355 = vld [vmem:[%s330 + $0x80] sm:$0xff]
      %v356 = vld [vmem:[%s330 + $0x88] sm:$0xff]
      %v357 = vld [vmem:[%s330 + $0x90] sm:$0xff]
      %v358 = vld [vmem:[%s330 + $0x98] sm:$0xff]
      %v359 = vld [vmem:[%s330 + $0xa0] sm:$0xff]
      %v360 = vld [vmem:[%s330 + $0xa8] sm:$0xff]
      %v361 = vld [vmem:[%s330 + $0xb0] sm:$0xff]
      %v362 = vld [vmem:[%s330 + $0xb8] sm:$0xff]
      %v363 = vld [vmem:[%s330 + $0xc0] sm:$0xff]
      %v364 = vld [vmem:[%s330 + $0xc8] sm:$0xff]
      %v365 = vld [vmem:[%s330 + $0xd0] sm:$0xff]
      %v366 = vld [vmem:[%s330 + $0xd8] sm:$0xff]
      %v367 = vld [vmem:[%s330 + $0xe0] sm:$0xff]
      %v368 = vld [vmem:[%s330 + $0xe8] sm:$0xff]
      %v369 = vld [vmem:[%s330 + $0xf0] sm:$0xff]
      %v370 = vld [vmem:[%s330 + $0xf8] sm:$0xff]
      %v371 = vpack.c.bf16 %v340, %v339
      %v372 = vpack.c.bf16 %v342, %v341
      %v373 = vpack.c.bf16 %v344, %v343
      %v374 = vpack.c.bf16 %v346, %v345
      %v375 = vpack.c.bf16 %v348, %v347
      %v376 = vpack.c.bf16 %v350, %v349
      %v377 = vpack.c.bf16 %v352, %v351
      %v378 = vpack.c.bf16 %v354, %v353
      %v379 = vpack.c.bf16 %v356, %v355
      %v380 = vpack.c.bf16 %v358, %v357
      %v381 = vpack.c.bf16 %v360, %v359
      %v382 = vpack.c.bf16 %v362, %v361
      %v383 = vpack.c.bf16 %v364, %v363
      %v384 = vpack.c.bf16 %v366, %v365
      %v385 = vpack.c.bf16 %v368, %v367
      %v386 = vpack.c.bf16 %v370, %v369
      %v387 = vld [vmem:[%s1] sm:$0xf]
      %v388 = vld [vmem:[%s1 + $0x4] sm:$0xf]
      %v389 = vld [vmem:[%s1 + $0x8] sm:$0xf]
      %v390 = vld [vmem:[%s1 + $0xc] sm:$0xf]
      %v391 = vld [vmem:[%s1 + $0x10] sm:$0xf]
      %v392 = vld [vmem:[%s1 + $0x14] sm:$0xf]
      %v393 = vld [vmem:[%s1 + $0x18] sm:$0xf]
      %v394 = vld [vmem:[%s1 + $0x1c] sm:$0xf]
      %v395 = vld [vmem:[%s1 + $0x20] sm:$0xf]
      %v396 = vld [vmem:[%s1 + $0x24] sm:$0xf]
      %v397 = vld [vmem:[%s1 + $0x28] sm:$0xf]
      %v398 = vld [vmem:[%s1 + $0x2c] sm:$0xf]
      %v399 = vld [vmem:[%s1 + $0x30] sm:$0xf]
      %v400 = vld [vmem:[%s1 + $0x34] sm:$0x7]
      %v401 = vld [vmem:[%s2] sm:$0x1]
      %v403 = vlaneseq
      %v404 = vshrl.u32 %v403, 7
      %v405 = vsub.s32 0, %v404
      %v406 = vrot.slane %v401, %v405
      %v422 = vunpack.c.l.b16 %v387
      %v423 = vunpack.c.l.b16 %v388
      %v424 = vunpack.c.l.b16 %v389
      %v425 = vunpack.c.l.b16 %v390
      %v426 = vunpack.c.l.b16 %v391
      %v427 = vunpack.c.l.b16 %v392
      %v428 = vunpack.c.l.b16 %v393
      %v429 = vunpack.c.l.b16 %v394
      %v430 = vunpack.c.l.b16 %v395
      %v431 = vunpack.c.l.b16 %v396
      %v432 = vunpack.c.l.b16 %v397
      %v433 = vunpack.c.l.b16 %v398
      %v434 = vunpack.c.l.b16 %v399
      %v435 = vunpack.c.l.b16 %v400
      %v436 = vpack.c.b16 %v423, %v422
      %v437 = vpack.c.b16 %v425, %v424
      %v438 = vpack.c.b16 %v427, %v426
      %v439 = vpack.c.b16 %v429, %v428
      %v440 = vpack.c.b16 %v431, %v430
      %v441 = vpack.c.b16 %v433, %v432
      %v442 = vpack.c.b16 %v435, %v434
      %vm449 = vcmask 900096
      %v451 = vsel %vm449, %v371, 0
      %v454 = vsel %vm449, %v372, 0
      %v457 = vsel %vm449, %v373, 0
      %v460 = vsel %vm449, %v374, 0
      %v463 = vsel %vm449, %v375, 0
      %v466 = vsel %vm449, %v376, 0
      %v469 = vsel %vm449, %v377, 0
      %v472 = vsel %vm449, %v378, 0
      %v475 = vsel %vm449, %v379, 0
      %v478 = vsel %vm449, %v380, 0
      %v481 = vsel %vm449, %v381, 0
      %v484 = vsel %vm449, %v382, 0
      %v487 = vsel %vm449, %v383, 0
      %v490 = vsel %vm449, %v384, 0
      %v493 = vsel %vm449, %v385, 0
      %v496 = vsel %vm449, %v386, 0
      %vm498 = vcmask 1046528
      %v500 = vsel %vm498, %v442, 0
      %502 = vmatprep.subr.bf16.mxu0 0
      %503 = vmatpush1.bf16.msra.mxu0 %v436
      %504 = vmatprep.subr.bf16.mxu0 0
      %505 = vmatpush1.bf16.msra.mxu0 %v437
      %506 = vmatprep.subr.bf16.mxu0 0
      %507 = vmatpush1.bf16.msra.mxu0 %v438
      %508 = vmatprep.subr.bf16.mxu0 0
      %509 = vmatpush1.bf16.msra.mxu0 %v439
      %510 = vmatprep.subr.bf16.mxu0 0
      %511 = vmatpush1.bf16.msra.mxu0 %v440
      %512 = vmatprep.subr.bf16.mxu0 0
      %513 = vmatpush1.bf16.msra.mxu0 %v441
      %514 = vmatprep.subr.bf16.mxu0 0
      %515 = vmatpush1.bf16.msra.mxu0 %v500
      %516 = vmatprep.subr.bf16.mxu0 0
      %517 = vmatpush1.bf16.msra.mxu0 0
      %518 = vmatprep.subr.bf16.mxu0 0
      %519 = vmatpush1.bf16.msra.mxu0 0
      %520 = vmatprep.subr.bf16.mxu0 0
      %521 = vmatpush1.bf16.msra.mxu0 0
      %522 = vmatprep.subr.bf16.mxu0 0
      %523 = vmatpush1.bf16.msra.mxu0 0
      %524 = vmatprep.subr.bf16.mxu0 0
      %525 = vmatpush1.bf16.msra.mxu0 0
      %526 = vmatprep.subr.bf16.mxu0 0
      %527 = vmatpush1.bf16.msra.mxu0 0
      %528 = vmatprep.subr.bf16.mxu0 0
      %529 = vmatpush1.bf16.msra.mxu0 0
      %530 = vmatprep.subr.bf16.mxu0 0
      %531 = vmatpush1.bf16.msra.mxu0 0
      %532 = vmatprep.subr.bf16.mxu0 0
      %533 = vmatpush1.bf16.msra.mxu0 0
      %534 = vmatprep.mubr.bf16.mxu0 0
      %535 = vmatmul.mubr.bf16.gmra.mrb[0].mxu0 %v451
      %v536 = vpop.f32.mrb[0].mxu0
      %v537 = vadd.f32 %v406, %v536
      %v538 = vpop.f32.mrb[0].mxu0
      %v539 = vpop.f32.mrb[0].mxu0
      %v540 = vadd.f32 %v406, %v539
      %v541 = vpop.f32.mrb[0].mxu0
      %542 = vmatprep.mubr.bf16.mxu0 0
      %543 = vmatmul.mubr.bf16.gmra.mrb[0].mxu0 %v454
      %v544 = vpop.f32.mrb[0].mxu0
      %v545 = vadd.f32 %v406, %v544
      %v546 = vpop.f32.mrb[0].mxu0
      %v547 = vpop.f32.mrb[0].mxu0
      %v548 = vadd.f32 %v406, %v547
      %v549 = vpop.f32.mrb[0].mxu0
      %550 = vmatprep.mubr.bf16.mxu0 0
      %551 = vmatmul.mubr.bf16.gmra.mrb[0].mxu0 %v457
      %v552 = vpop.f32.mrb[0].mxu0
      %v553 = vadd.f32 %v406, %v552
      %v554 = vpop.f32.mrb[0].mxu0
      %v555 = vpop.f32.mrb[0].mxu0
      %v556 = vadd.f32 %v406, %v555
      %v557 = vpop.f32.mrb[0].mxu0
      %558 = vmatprep.mubr.bf16.mxu0 0
      %559 = vmatmul.mubr.bf16.gmra.mrb[0].mxu0 %v460
      %v560 = vpop.f32.mrb[0].mxu0
      %v561 = vadd.f32 %v406, %v560
      %v562 = vpop.f32.mrb[0].mxu0
      %v563 = vpop.f32.mrb[0].mxu0
      %v564 = vadd.f32 %v406, %v563
      %v565 = vpop.f32.mrb[0].mxu0
      %566 = vmatprep.mubr.bf16.mxu0 0
      %567 = vmatmul.mubr.bf16.gmra.mrb[0].mxu0 %v463
      %v568 = vpop.f32.mrb[0].mxu0
      %v569 = vadd.f32 %v406, %v568
      %v570 = vpop.f32.mrb[0].mxu0
      %v571 = vpop.f32.mrb[0].mxu0
      %v572 = vadd.f32 %v406, %v571
      %v573 = vpop.f32.mrb[0].mxu0
      %574 = vmatprep.mubr.bf16.mxu0 0
      %575 = vmatmul.mubr.bf16.gmra.mrb[0].mxu0 %v466
      %v576 = vpop.f32.mrb[0].mxu0
      %v577 = vadd.f32 %v406, %v576
      %v578 = vpop.f32.mrb[0].mxu0
      %v579 = vpop.f32.mrb[0].mxu0
      %v580 = vadd.f32 %v406, %v579
      %v581 = vpop.f32.mrb[0].mxu0
      %582 = vmatprep.mubr.bf16.mxu0 0
      %583 = vmatmul.mubr.bf16.gmra.mrb[0].mxu0 %v469
      %v584 = vpop.f32.mrb[0].mxu0
      %v585 = vadd.f32 %v406, %v584
      %v586 = vpop.f32.mrb[0].mxu0
      %v587 = vpop.f32.mrb[0].mxu0
      %v588 = vadd.f32 %v406, %v587
      %v589 = vpop.f32.mrb[0].mxu0
      %590 = vmatprep.mubr.bf16.mxu0 0
      %591 = vmatmul.mubr.bf16.gmra.mrb[0].mxu0 %v472
      %v592 = vpop.f32.mrb[0].mxu0
      %v593 = vadd.f32 %v406, %v592
      %v594 = vpop.f32.mrb[0].mxu0
      %v595 = vpop.f32.mrb[0].mxu0
      %v596 = vadd.f32 %v406, %v595
      %v597 = vpop.f32.mrb[0].mxu0
      %598 = vmatprep.mubr.bf16.mxu0 0
      %599 = vmatmul.mubr.bf16.gmra.mrb[0].mxu0 %v475
      %v600 = vpop.f32.mrb[0].mxu0
      %v601 = vadd.f32 %v406, %v600
      %v602 = vpop.f32.mrb[0].mxu0
      %v603 = vpop.f32.mrb[0].mxu0
      %v604 = vadd.f32 %v406, %v603
      %v605 = vpop.f32.mrb[0].mxu0
      %606 = vmatprep.mubr.bf16.mxu0 0
      %607 = vmatmul.mubr.bf16.gmra.mrb[0].mxu0 %v478
      %v608 = vpop.f32.mrb[0].mxu0
      %v609 = vadd.f32 %v406, %v608
      %v610 = vpop.f32.mrb[0].mxu0
      %v611 = vpop.f32.mrb[0].mxu0
      %v612 = vadd.f32 %v406, %v611
      %v613 = vpop.f32.mrb[0].mxu0
      %614 = vmatprep.mubr.bf16.mxu0 0
      %615 = vmatmul.mubr.bf16.gmra.mrb[0].mxu0 %v481
      %v616 = vpop.f32.mrb[0].mxu0
      %v617 = vadd.f32 %v406, %v616
      %v618 = vpop.f32.mrb[0].mxu0
      %v619 = vpop.f32.mrb[0].mxu0
      %v620 = vadd.f32 %v406, %v619
      %v621 = vpop.f32.mrb[0].mxu0
      %622 = vmatprep.mubr.bf16.mxu0 0
      %623 = vmatmul.mubr.bf16.gmra.mrb[0].mxu0 %v484
      %v624 = vpop.f32.mrb[0].mxu0
      %v625 = vadd.f32 %v406, %v624
      %v626 = vpop.f32.mrb[0].mxu0
      %v627 = vpop.f32.mrb[0].mxu0
      %v628 = vadd.f32 %v406, %v627
      %v629 = vpop.f32.mrb[0].mxu0
      %630 = vmatprep.mubr.bf16.mxu0 0
      %631 = vmatmul.mubr.bf16.gmra.mrb[0].mxu0 %v487
      %v632 = vpop.f32.mrb[0].mxu0
      %v633 = vadd.f32 %v406, %v632
      %v634 = vpop.f32.mrb[0].mxu0
      %v635 = vpop.f32.mrb[0].mxu0
      %v636 = vadd.f32 %v406, %v635
      %v637 = vpop.f32.mrb[0].mxu0
      %638 = vmatprep.mubr.bf16.mxu0 0
      %639 = vmatmul.mubr.bf16.gmra.mrb[0].mxu0 %v490
      %v640 = vpop.f32.mrb[0].mxu0
      %v641 = vadd.f32 %v406, %v640
      %v642 = vpop.f32.mrb[0].mxu0
      %v643 = vpop.f32.mrb[0].mxu0
      %v644 = vadd.f32 %v406, %v643
      %v645 = vpop.f32.mrb[0].mxu0
      %646 = vmatprep.mubr.bf16.mxu0 0
      %647 = vmatmul.mubr.bf16.gmra.mrb[0].mxu0 %v493
      %v648 = vpop.f32.mrb[0].mxu0
      %v649 = vadd.f32 %v406, %v648
      %v650 = vpop.f32.mrb[0].mxu0
      %v651 = vpop.f32.mrb[0].mxu0
      %v652 = vadd.f32 %v406, %v651
      %v653 = vpop.f32.mrb[0].mxu0
      %654 = vmatprep.mubr.bf16.mxu0 0
      %655 = vmatmul.mubr.bf16.gmra.mrb[0].mxu0 %v496
      %v656 = vpop.f32.mrb[0].mxu0
      %v657 = vadd.f32 %v406, %v656
      %v658 = vpop.f32.mrb[0].mxu0
      %v659 = vpop.f32.mrb[0].mxu0
      %v660 = vadd.f32 %v406, %v659
      %v661 = vpop.f32.mrb[0].mxu0
      %662 = vdwg.mxu0
      %v663 = vmax.f32 %v537, 0.0
      %v664 = vmax.f32 %v540, 0.0
      %v665 = vmax.f32 %v545, 0.0
      %v666 = vmax.f32 %v548, 0.0
      %v667 = vmax.f32 %v553, 0.0
      %v668 = vmax.f32 %v556, 0.0
      %v669 = vmax.f32 %v561, 0.0
      %v670 = vmax.f32 %v564, 0.0
      %v671 = vmax.f32 %v569, 0.0
      %v672 = vmax.f32 %v572, 0.0
      %v673 = vmax.f32 %v577, 0.0
      %v674 = vmax.f32 %v580, 0.0
      %v675 = vmax.f32 %v585, 0.0
      %v676 = vmax.f32 %v588, 0.0
      %v677 = vmax.f32 %v593, 0.0
      %v678 = vmax.f32 %v596, 0.0
      %v679 = vmax.f32 %v601, 0.0
      %v680 = vmax.f32 %v604, 0.0
      %v681 = vmax.f32 %v609, 0.0
      %v682 = vmax.f32 %v612, 0.0
      %v683 = vmax.f32 %v617, 0.0
      %v684 = vmax.f32 %v620, 0.0
      %v685 = vmax.f32 %v625, 0.0
      %v686 = vmax.f32 %v628, 0.0
      %v687 = vmax.f32 %v633, 0.0
      %v688 = vmax.f32 %v636, 0.0
      %v689 = vmax.f32 %v641, 0.0
      %v690 = vmax.f32 %v644, 0.0
      %v691 = vmax.f32 %v649, 0.0
      %v692 = vmax.f32 %v652, 0.0
      %v693 = vmax.f32 %v657, 0.0
      %v694 = vmax.f32 %v660, 0.0
      %v695 = vpack.c.bf16 %v664, %v663
      %v696 = vpack.c.bf16 %v666, %v665
      %v697 = vpack.c.bf16 %v668, %v667
      %v698 = vpack.c.bf16 %v670, %v669
      %v699 = vpack.c.bf16 %v672, %v671
      %v700 = vpack.c.bf16 %v674, %v673
      %v701 = vpack.c.bf16 %v676, %v675
      %v702 = vpack.c.bf16 %v678, %v677
      %v703 = vpack.c.bf16 %v680, %v679
      %v704 = vpack.c.bf16 %v682, %v681
      %v705 = vpack.c.bf16 %v684, %v683
      %v706 = vpack.c.bf16 %v686, %v685
      %v707 = vpack.c.bf16 %v688, %v687
      %v708 = vpack.c.bf16 %v690, %v689
      %v709 = vpack.c.bf16 %v692, %v691
      %v710 = vpack.c.bf16 %v694, %v693
      %v711 = vld [vmem:[%s3] sm:$0xff]
      %v712 = vld [vmem:[%s3 + $0x8] sm:$0xff]
      %v713 = vld [vmem:[%s3 + $0x10] sm:$0xff]
      %v714 = vld [vmem:[%s3 + $0x18] sm:$0xf]
      %v715 = vld [vmem:[%s3 + $0x1c] sm:$0xff]
      %v716 = vld [vmem:[%s3 + $0x24] sm:$0xff]
      %v717 = vld [vmem:[%s3 + $0x2c] sm:$0xff]
      %v718 = vld [vmem:[%s3 + $0x34] sm:$0xf]
      %v719 = vld [vmem:[%s3 + $0x38] sm:$0xff]
      %v720 = vld [vmem:[%s3 + $0x40] sm:$0xff]
      %v721 = vld [vmem:[%s3 + $0x48] sm:$0xff]
      %v722 = vld [vmem:[%s3 + $0x50] sm:$0xf]
      %v723 = vld [vmem:[%s3 + $0x54] sm:$0xff]
      %v724 = vld [vmem:[%s3 + $0x5c] sm:$0xff]
      %v725 = vld [vmem:[%s3 + $0x64] sm:$0xff]
      %v726 = vld [vmem:[%s3 + $0x6c] sm:$0xf]
      %v727 = vld [vmem:[%s3 + $0x70] sm:$0xff]
      %v728 = vld [vmem:[%s3 + $0x78] sm:$0xff]
      %v729 = vld [vmem:[%s3 + $0x80] sm:$0xff]
      %v730 = vld [vmem:[%s3 + $0x88] sm:$0xf]
      %v731 = vld [vmem:[%s3 + $0x8c] sm:$0xff]
      %v732 = vld [vmem:[%s3 + $0x94] sm:$0xff]
      %v733 = vld [vmem:[%s3 + $0x9c] sm:$0xff]
      %v734 = vld [vmem:[%s3 + $0xa4] sm:$0xf]
      %v735 = vld [vmem:[%s3 + $0xa8] sm:$0xff]
      %v736 = vld [vmem:[%s3 + $0xb0] sm:$0xff]
      %v737 = vld [vmem:[%s3 + $0xb8] sm:$0xff]
      %v738 = vld [vmem:[%s3 + $0xc0] sm:$0xf]
      %v739 = vld [vmem:[%s3 + $0xc4] sm:$0xff]
      %v740 = vld [vmem:[%s3 + $0xcc] sm:$0xff]
      %v741 = vld [vmem:[%s3 + $0xd4] sm:$0xff]
      %v742 = vld [vmem:[%s3 + $0xdc] sm:$0xf]
      %v743 = vld [vmem:[%s3 + $0xe0] sm:$0xff]
      %v744 = vld [vmem:[%s3 + $0xe8] sm:$0xff]
      %v745 = vld [vmem:[%s3 + $0xf0] sm:$0xff]
      %v746 = vld [vmem:[%s3 + $0xf8] sm:$0xf]
      %v747 = vld [vmem:[%s3 + $0xfc] sm:$0xff]
      %v748 = vld [vmem:[%s3 + $0x104] sm:$0xff]
      %v749 = vld [vmem:[%s3 + $0x10c] sm:$0xff]
      %v750 = vld [vmem:[%s3 + $0x114] sm:$0xf]
      %v751 = vld [vmem:[%s3 + $0x118] sm:$0xff]
      %v752 = vld [vmem:[%s3 + $0x120] sm:$0xff]
      %v753 = vld [vmem:[%s3 + $0x128] sm:$0xff]
      %v754 = vld [vmem:[%s3 + $0x130] sm:$0xf]
      %v755 = vld [vmem:[%s3 + $0x134] sm:$0xff]
      %v756 = vld [vmem:[%s3 + $0x13c] sm:$0xff]
      %v757 = vld [vmem:[%s3 + $0x144] sm:$0xff]
      %v758 = vld [vmem:[%s3 + $0x14c] sm:$0xf]
      %v759 = vld [vmem:[%s3 + $0x150] sm:$0xff]
      %v760 = vld [vmem:[%s3 + $0x158] sm:$0xff]
      %v761 = vld [vmem:[%s3 + $0x160] sm:$0xff]
      %v762 = vld [vmem:[%s3 + $0x168] sm:$0xf]
      %v763 = vld [vmem:[%s3 + $0x16c] sm:$0xff]
      %v764 = vld [vmem:[%s3 + $0x174] sm:$0xff]
      %v765 = vld [vmem:[%s3 + $0x17c] sm:$0xff]
      %v766 = vld [vmem:[%s3 + $0x184] sm:$0xf]
      %v767 = vld [vmem:[%s3 + $0x188] sm:$0xff]
      %v768 = vld [vmem:[%s3 + $0x190] sm:$0xff]
      %v769 = vld [vmem:[%s3 + $0x198] sm:$0xff]
      %v770 = vld [vmem:[%s3 + $0x1a0] sm:$0xf]
      %v771 = vld [vmem:[%s3 + $0x1a4] sm:$0xff]
      %v772 = vld [vmem:[%s3 + $0x1ac] sm:$0xff]
      %v773 = vld [vmem:[%s3 + $0x1b4] sm:$0xff]
      %v774 = vld [vmem:[%s3 + $0x1bc] sm:$0xf]
      %v775 = vld [vmem:[%s4] sm:$0xff]
      %v777 = vlaneseq
      %v778 = vshrl.u32 %v777, 7
      %v779 = vsub.s32 0, %v778
      %v780 = vrot.slane %v775, %v779
      %v781 = vlaneseq
      %v782 = vshrl.u32 %v781, 7
      %v783 = vsub.s32 1, %v782
      %v784 = vrot.slane %v775, %v783
      %v785 = vlaneseq
      %v786 = vshrl.u32 %v785, 7
      %v787 = vsub.s32 2, %v786
      %v788 = vrot.slane %v775, %v787
      %v789 = vlaneseq
      %v790 = vshrl.u32 %v789, 7
      %v791 = vsub.s32 3, %v790
      %v792 = vrot.slane %v775, %v791
      %v793 = vlaneseq
      %v794 = vshrl.u32 %v793, 7
      %v795 = vsub.s32 4, %v794
      %v796 = vrot.slane %v775, %v795
      %v797 = vlaneseq
      %v798 = vshrl.u32 %v797, 7
      %v799 = vsub.s32 5, %v798
      %v800 = vrot.slane %v775, %v799
      %v801 = vlaneseq
      %v802 = vshrl.u32 %v801, 7
      %v803 = vsub.s32 6, %v802
      %v804 = vrot.slane %v775, %v803
      %v876 = vunpack.c.l.b16 %v711
      %v877 = vunpack.c.h.b16 %v711
      %v878 = vunpack.c.l.b16 %v712
      %v879 = vunpack.c.h.b16 %v712
      %v880 = vunpack.c.l.b16 %v713
      %v881 = vunpack.c.h.b16 %v713
      %v882 = vunpack.c.l.b16 %v714
      %v883 = vunpack.c.l.b16 %v715
      %v884 = vunpack.c.h.b16 %v715
      %v885 = vunpack.c.l.b16 %v716
      %v886 = vunpack.c.h.b16 %v716
      %v887 = vunpack.c.l.b16 %v717
      %v888 = vunpack.c.h.b16 %v717
      %v889 = vunpack.c.l.b16 %v718
      %v890 = vunpack.c.l.b16 %v719
      %v891 = vunpack.c.h.b16 %v719
      %v892 = vunpack.c.l.b16 %v720
      %v893 = vunpack.c.h.b16 %v720
      %v894 = vunpack.c.l.b16 %v721
      %v895 = vunpack.c.h.b16 %v721
      %v896 = vunpack.c.l.b16 %v722
      %v897 = vunpack.c.l.b16 %v723
      %v898 = vunpack.c.h.b16 %v723
      %v899 = vunpack.c.l.b16 %v724
      %v900 = vunpack.c.h.b16 %v724
      %v901 = vunpack.c.l.b16 %v725
      %v902 = vunpack.c.h.b16 %v725
      %v903 = vunpack.c.l.b16 %v726
      %v904 = vunpack.c.l.b16 %v727
      %v905 = vunpack.c.h.b16 %v727
      %v906 = vunpack.c.l.b16 %v728
      %v907 = vunpack.c.h.b16 %v728
      %v908 = vunpack.c.l.b16 %v729
      %v909 = vunpack.c.h.b16 %v729
      %v910 = vunpack.c.l.b16 %v730
      %v911 = vunpack.c.l.b16 %v731
      %v912 = vunpack.c.h.b16 %v731
      %v913 = vunpack.c.l.b16 %v732
      %v914 = vunpack.c.h.b16 %v732
      %v915 = vunpack.c.l.b16 %v733
      %v916 = vunpack.c.h.b16 %v733
      %v917 = vunpack.c.l.b16 %v734
      %v918 = vunpack.c.l.b16 %v735
      %v919 = vunpack.c.h.b16 %v735
      %v920 = vunpack.c.l.b16 %v736
      %v921 = vunpack.c.h.b16 %v736
      %v922 = vunpack.c.l.b16 %v737
      %v923 = vunpack.c.h.b16 %v737
      %v924 = vunpack.c.l.b16 %v738
      %v925 = vunpack.c.l.b16 %v739
      %v926 = vunpack.c.h.b16 %v739
      %v927 = vunpack.c.l.b16 %v740
      %v928 = vunpack.c.h.b16 %v740
      %v929 = vunpack.c.l.b16 %v741
      %v930 = vunpack.c.h.b16 %v741
      %v931 = vunpack.c.l.b16 %v742
      %v932 = vunpack.c.l.b16 %v743
      %v933 = vunpack.c.h.b16 %v743
      %v934 = vunpack.c.l.b16 %v744
      %v935 = vunpack.c.h.b16 %v744
      %v936 = vunpack.c.l.b16 %v745
      %v937 = vunpack.c.h.b16 %v745
      %v938 = vunpack.c.l.b16 %v746
      %v939 = vunpack.c.l.b16 %v747
      %v940 = vunpack.c.h.b16 %v747
      %v941 = vunpack.c.l.b16 %v748
      %v942 = vunpack.c.h.b16 %v748
      %v943 = vunpack.c.l.b16 %v749
      %v944 = vunpack.c.h.b16 %v749
      %v945 = vunpack.c.l.b16 %v750
      %v946 = vunpack.c.l.b16 %v751
      %v947 = vunpack.c.h.b16 %v751
      %v948 = vunpack.c.l.b16 %v752
      %v949 = vunpack.c.h.b16 %v752
      %v950 = vunpack.c.l.b16 %v753
      %v951 = vunpack.c.h.b16 %v753
      %v952 = vunpack.c.l.b16 %v754
      %v953 = vunpack.c.l.b16 %v755
      %v954 = vunpack.c.h.b16 %v755
      %v955 = vunpack.c.l.b16 %v756
      %v956 = vunpack.c.h.b16 %v756
      %v957 = vunpack.c.l.b16 %v757
      %v958 = vunpack.c.h.b16 %v757
      %v959 = vunpack.c.l.b16 %v758
      %v960 = vunpack.c.l.b16 %v759
      %v961 = vunpack.c.h.b16 %v759
      %v962 = vunpack.c.l.b16 %v760
      %v963 = vunpack.c.h.b16 %v760
      %v964 = vunpack.c.l.b16 %v761
      %v965 = vunpack.c.h.b16 %v761
      %v966 = vunpack.c.l.b16 %v762
      %v967 = vunpack.c.l.b16 %v763
      %v968 = vunpack.c.h.b16 %v763
      %v969 = vunpack.c.l.b16 %v764
      %v970 = vunpack.c.h.b16 %v764
      %v971 = vunpack.c.l.b16 %v765
      %v972 = vunpack.c.h.b16 %v765
      %v973 = vunpack.c.l.b16 %v766
      %v974 = vunpack.c.l.b16 %v767
      %v975 = vunpack.c.h.b16 %v767
      %v976 = vunpack.c.l.b16 %v768
      %v977 = vunpack.c.h.b16 %v768
      %v978 = vunpack.c.l.b16 %v769
      %v979 = vunpack.c.h.b16 %v769
      %v980 = vunpack.c.l.b16 %v770
      %v981 = vunpack.c.l.b16 %v771
      %v982 = vunpack.c.h.b16 %v771
      %v983 = vunpack.c.l.b16 %v772
      %v984 = vunpack.c.h.b16 %v772
      %v985 = vunpack.c.l.b16 %v773
      %v986 = vunpack.c.h.b16 %v773
      %v987 = vunpack.c.l.b16 %v774
      %v988 = vpack.c.b16 %v883, %v876
      %v989 = vpack.c.b16 %v884, %v877
      %v990 = vpack.c.b16 %v885, %v878
      %v991 = vpack.c.b16 %v886, %v879
      %v992 = vpack.c.b16 %v887, %v880
      %v993 = vpack.c.b16 %v888, %v881
      %v994 = vpack.c.b16 %v889, %v882
      %v995 = vpack.c.b16 %v897, %v890
      %v996 = vpack.c.b16 %v898, %v891
      %v997 = vpack.c.b16 %v899, %v892
      %v998 = vpack.c.b16 %v900, %v893
      %v999 = vpack.c.b16 %v901, %v894
      %v1000 = vpack.c.b16 %v902, %v895
      %v1001 = vpack.c.b16 %v903, %v896
      %v1002 = vpack.c.b16 %v911, %v904
      %v1003 = vpack.c.b16 %v912, %v905
      %v1004 = vpack.c.b16 %v913, %v906
      %v1005 = vpack.c.b16 %v914, %v907
      %v1006 = vpack.c.b16 %v915, %v908
      %v1007 = vpack.c.b16 %v916, %v909
      %v1008 = vpack.c.b16 %v917, %v910
      %v1009 = vpack.c.b16 %v925, %v918
      %v1010 = vpack.c.b16 %v926, %v919
      %v1011 = vpack.c.b16 %v927, %v920
      %v1012 = vpack.c.b16 %v928, %v921
      %v1013 = vpack.c.b16 %v929, %v922
      %v1014 = vpack.c.b16 %v930, %v923
      %v1015 = vpack.c.b16 %v931, %v924
      %v1016 = vpack.c.b16 %v939, %v932
      %v1017 = vpack.c.b16 %v940, %v933
      %v1018 = vpack.c.b16 %v941, %v934
      %v1019 = vpack.c.b16 %v942, %v935
      %v1020 = vpack.c.b16 %v943, %v936
      %v1021 = vpack.c.b16 %v944, %v937
      %v1022 = vpack.c.b16 %v945, %v938
      %v1023 = vpack.c.b16 %v953, %v946
      %v1024 = vpack.c.b16 %v954, %v947
      %v1025 = vpack.c.b16 %v955, %v948
      %v1026 = vpack.c.b16 %v956, %v949
      %v1027 = vpack.c.b16 %v957, %v950
      %v1028 = vpack.c.b16 %v958, %v951
      %v1029 = vpack.c.b16 %v959, %v952
      %v1030 = vpack.c.b16 %v967, %v960
      %v1031 = vpack.c.b16 %v968, %v961
      %v1032 = vpack.c.b16 %v969, %v962
      %v1033 = vpack.c.b16 %v970, %v963
      %v1034 = vpack.c.b16 %v971, %v964
      %v1035 = vpack.c.b16 %v972, %v965
      %v1036 = vpack.c.b16 %v973, %v966
      %v1037 = vpack.c.b16 %v981, %v974
      %v1038 = vpack.c.b16 %v982, %v975
      %v1039 = vpack.c.b16 %v983, %v976
      %v1040 = vpack.c.b16 %v984, %v977
      %v1041 = vpack.c.b16 %v985, %v978
      %v1042 = vpack.c.b16 %v986, %v979
      %v1043 = vpack.c.b16 %v987, %v980
      %1100 = vmatprep.subr.bf16.mxu0 %v989
      %1101 = vmatpush1.bf16.msra.mxu0 %v988
      %1102 = vmatprep.subr.bf16.mxu0 %v996
      %1103 = vmatpush1.bf16.msra.mxu0 %v995
      %1104 = vmatprep.subr.bf16.mxu0 %v1003
      %1105 = vmatpush1.bf16.msra.mxu0 %v1002
      %1106 = vmatprep.subr.bf16.mxu0 %v1010
      %1107 = vmatpush1.bf16.msra.mxu0 %v1009
      %1108 = vmatprep.subr.bf16.mxu0 %v1017
      %1109 = vmatpush1.bf16.msra.mxu0 %v1016
      %1110 = vmatprep.subr.bf16.mxu0 %v1024
      %1111 = vmatpush1.bf16.msra.mxu0 %v1023
      %1112 = vmatprep.subr.bf16.mxu0 %v1031
      %1113 = vmatpush1.bf16.msra.mxu0 %v1030
      %1114 = vmatprep.subr.bf16.mxu0 %v1038
      %1115 = vmatpush1.bf16.msra.mxu0 %v1037
      %1116 = vmatprep.subr.bf16.mxu0 0
      %1117 = vmatpush1.bf16.msra.mxu0 0
      %1118 = vmatprep.subr.bf16.mxu0 0
      %1119 = vmatpush1.bf16.msra.mxu0 0
      %1120 = vmatprep.subr.bf16.mxu0 0
      %1121 = vmatpush1.bf16.msra.mxu0 0
      %1122 = vmatprep.subr.bf16.mxu0 0
      %1123 = vmatpush1.bf16.msra.mxu0 0
      %1124 = vmatprep.subr.bf16.mxu0 0
      %1125 = vmatpush1.bf16.msra.mxu0 0
      %1126 = vmatprep.subr.bf16.mxu0 0
      %1127 = vmatpush1.bf16.msra.mxu0 0
      %1128 = vmatprep.subr.bf16.mxu0 0
      %1129 = vmatpush1.bf16.msra.mxu0 0
      %1130 = vmatprep.subr.bf16.mxu0 0
      %1131 = vmatpush1.bf16.msra.mxu0 0
      %1132 = vmatprep.mubr.bf16.mxu0 0
      %1133 = vmatmul.mubr.bf16.gmra.mrb[0].mxu0 %v695
      %v1134 = vpop.f32.mrb[0].mxu0
      %v1135 = vadd.f32 %v780, %v1134
      %v1136 = vpop.f32.mrb[0].mxu0
      %v1137 = vadd.f32 %v784, %v1136
      %v1138 = vpop.f32.mrb[0].mxu0
      %v1139 = vadd.f32 %v780, %v1138
      %v1140 = vpop.f32.mrb[0].mxu0
      %v1141 = vadd.f32 %v784, %v1140
      %1142 = vmatprep.mubr.bf16.mxu0 0
      %1143 = vmatmul.mubr.bf16.gmra.mrb[0].mxu0 %v696
      %v1144 = vpop.f32.mrb[0].mxu0
      %v1145 = vadd.f32 %v780, %v1144
      %v1146 = vpop.f32.mrb[0].mxu0
      %v1147 = vadd.f32 %v784, %v1146
      %v1148 = vpop.f32.mrb[0].mxu0
      %v1149 = vadd.f32 %v780, %v1148
      %v1150 = vpop.f32.mrb[0].mxu0
      %v1151 = vadd.f32 %v784, %v1150
      %1152 = vmatprep.mubr.bf16.mxu0 0
      %1153 = vmatmul.mubr.bf16.gmra.mrb[0].mxu0 %v697
      %v1154 = vpop.f32.mrb[0].mxu0
      %v1155 = vadd.f32 %v780, %v1154
      %v1156 = vpop.f32.mrb[0].mxu0
      %v1157 = vadd.f32 %v784, %v1156
      %v1158 = vpop.f32.mrb[0].mxu0
      %v1159 = vadd.f32 %v780, %v1158
      %v1160 = vpop.f32.mrb[0].mxu0
      %v1161 = vadd.f32 %v784, %v1160
      %1162 = vmatprep.mubr.bf16.mxu0 0
      %1163 = vmatmul.mubr.bf16.gmra.mrb[0].mxu0 %v698
      %v1164 = vpop.f32.mrb[0].mxu0
      %v1165 = vadd.f32 %v780, %v1164
      %v1166 = vpop.f32.mrb[0].mxu0
      %v1167 = vadd.f32 %v784, %v1166
      %v1168 = vpop.f32.mrb[0].mxu0
      %v1169 = vadd.f32 %v780, %v1168
      %v1170 = vpop.f32.mrb[0].mxu0
      %v1171 = vadd.f32 %v784, %v1170
      %1172 = vmatprep.mubr.bf16.mxu0 0
      %1173 = vmatmul.mubr.bf16.gmra.mrb[0].mxu0 %v699
      %v1174 = vpop.f32.mrb[0].mxu0
      %v1175 = vadd.f32 %v780, %v1174
      %v1176 = vpop.f32.mrb[0].mxu0
      %v1177 = vadd.f32 %v784, %v1176
      %v1178 = vpop.f32.mrb[0].mxu0
      %v1179 = vadd.f32 %v780, %v1178
      %v1180 = vpop.f32.mrb[0].mxu0
      %v1181 = vadd.f32 %v784, %v1180
      %1182 = vmatprep.mubr.bf16.mxu0 0
      %1183 = vmatmul.mubr.bf16.gmra.mrb[0].mxu0 %v700
      %v1184 = vpop.f32.mrb[0].mxu0
      %v1185 = vadd.f32 %v780, %v1184
      %v1186 = vpop.f32.mrb[0].mxu0
      %v1187 = vadd.f32 %v784, %v1186
      %v1188 = vpop.f32.mrb[0].mxu0
      %v1189 = vadd.f32 %v780, %v1188
      %v1190 = vpop.f32.mrb[0].mxu0
      %v1191 = vadd.f32 %v784, %v1190
      %1192 = vmatprep.mubr.bf16.mxu0 0
      %1193 = vmatmul.mubr.bf16.gmra.mrb[0].mxu0 %v701
      %v1194 = vpop.f32.mrb[0].mxu0
      %v1195 = vadd.f32 %v780, %v1194
      %v1196 = vpop.f32.mrb[0].mxu0
      %v1197 = vadd.f32 %v784, %v1196
      %v1198 = vpop.f32.mrb[0].mxu0
      %v1199 = vadd.f32 %v780, %v1198
      %v1200 = vpop.f32.mrb[0].mxu0
      %v1201 = vadd.f32 %v784, %v1200
      %1202 = vmatprep.mubr.bf16.mxu0 0
      %1203 = vmatmul.mubr.bf16.gmra.mrb[0].mxu0 %v702
      %v1204 = vpop.f32.mrb[0].mxu0
      %v1205 = vadd.f32 %v780, %v1204
      %v1206 = vpop.f32.mrb[0].mxu0
      %v1207 = vadd.f32 %v784, %v1206
      %v1208 = vpop.f32.mrb[0].mxu0
      %v1209 = vadd.f32 %v780, %v1208
      %v1210 = vpop.f32.mrb[0].mxu0
      %v1211 = vadd.f32 %v784, %v1210
      %1212 = vmatprep.mubr.bf16.mxu0 0
      %1213 = vmatmul.mubr.bf16.gmra.mrb[0].mxu0 %v703
      %v1214 = vpop.f32.mrb[0].mxu0
      %v1215 = vadd.f32 %v780, %v1214
      %v1216 = vpop.f32.mrb[0].mxu0
      %v1217 = vadd.f32 %v784, %v1216
      %v1218 = vpop.f32.mrb[0].mxu0
      %v1219 = vadd.f32 %v780, %v1218
      %v1220 = vpop.f32.mrb[0].mxu0
      %v1221 = vadd.f32 %v784, %v1220
      %1222 = vmatprep.mubr.bf16.mxu0 0
      %1223 = vmatmul.mubr.bf16.gmra.mrb[0].mxu0 %v704
      %v1224 = vpop.f32.mrb[0].mxu0
      %v1225 = vadd.f32 %v780, %v1224
      %v1226 = vpop.f32.mrb[0].mxu0
      %v1227 = vadd.f32 %v784, %v1226
      %v1228 = vpop.f32.mrb[0].mxu0
      %v1229 = vadd.f32 %v780, %v1228
      %v1230 = vpop.f32.mrb[0].mxu0
      %v1231 = vadd.f32 %v784, %v1230
      %1232 = vmatprep.mubr.bf16.mxu0 0
      %1233 = vmatmul.mubr.bf16.gmra.mrb[0].mxu0 %v705
      %v1234 = vpop.f32.mrb[0].mxu0
      %v1235 = vadd.f32 %v780, %v1234
      %v1236 = vpop.f32.mrb[0].mxu0
      %v1237 = vadd.f32 %v784, %v1236
      %v1238 = vpop.f32.mrb[0].mxu0
      %v1239 = vadd.f32 %v780, %v1238
      %v1240 = vpop.f32.mrb[0].mxu0
      %v1241 = vadd.f32 %v784, %v1240
      %1242 = vmatprep.mubr.bf16.mxu0 0
      %1243 = vmatmul.mubr.bf16.gmra.mrb[0].mxu0 %v706
      %v1244 = vpop.f32.mrb[0].mxu0
      %v1245 = vadd.f32 %v780, %v1244
      %v1246 = vpop.f32.mrb[0].mxu0
      %v1247 = vadd.f32 %v784, %v1246
      %v1248 = vpop.f32.mrb[0].mxu0
      %v1249 = vadd.f32 %v780, %v1248
      %v1250 = vpop.f32.mrb[0].mxu0
      %v1251 = vadd.f32 %v784, %v1250
      %1252 = vmatprep.mubr.bf16.mxu0 0
      %1253 = vmatmul.mubr.bf16.gmra.mrb[0].mxu0 %v707
      %v1254 = vpop.f32.mrb[0].mxu0
      %v1255 = vadd.f32 %v780, %v1254
      %v1256 = vpop.f32.mrb[0].mxu0
      %v1257 = vadd.f32 %v784, %v1256
      %v1258 = vpop.f32.mrb[0].mxu0
      %v1259 = vadd.f32 %v780, %v1258
      %v1260 = vpop.f32.mrb[0].mxu0
      %v1261 = vadd.f32 %v784, %v1260
      %1262 = vmatprep.mubr.bf16.mxu0 0
      %1263 = vmatmul.mubr.bf16.gmra.mrb[0].mxu0 %v708
      %v1264 = vpop.f32.mrb[0].mxu0
      %v1265 = vadd.f32 %v780, %v1264
      %v1266 = vpop.f32.mrb[0].mxu0
      %v1267 = vadd.f32 %v784, %v1266
      %v1268 = vpop.f32.mrb[0].mxu0
      %v1269 = vadd.f32 %v780, %v1268
      %v1270 = vpop.f32.mrb[0].mxu0
      %v1271 = vadd.f32 %v784, %v1270
      %1272 = vmatprep.mubr.bf16.mxu0 0
      %1273 = vmatmul.mubr.bf16.gmra.mrb[0].mxu0 %v709
      %v1274 = vpop.f32.mrb[0].mxu0
      %v1275 = vadd.f32 %v780, %v1274
      %v1276 = vpop.f32.mrb[0].mxu0
      %v1277 = vadd.f32 %v784, %v1276
      %v1278 = vpop.f32.mrb[0].mxu0
      %v1279 = vadd.f32 %v780, %v1278
      %v1280 = vpop.f32.mrb[0].mxu0
      %v1281 = vadd.f32 %v784, %v1280
      %1282 = vmatprep.mubr.bf16.mxu0 0
      %1283 = vmatmul.mubr.bf16.gmra.mrb[0].mxu0 %v710
      %v1284 = vpop.f32.mrb[0].mxu0
      %v1285 = vadd.f32 %v780, %v1284
      %v1286 = vpop.f32.mrb[0].mxu0
      %v1287 = vadd.f32 %v784, %v1286
      %v1288 = vpop.f32.mrb[0].mxu0
      %v1289 = vadd.f32 %v780, %v1288
      %v1290 = vpop.f32.mrb[0].mxu0
      %v1291 = vadd.f32 %v784, %v1290
      %1292 = vdwg.mxu0
      %1293 = vmatprep.subr.bf16.mxu0 %v991
      %1294 = vmatpush1.bf16.msra.mxu0 %v990
      %1295 = vmatprep.subr.bf16.mxu0 %v998
      %1296 = vmatpush1.bf16.msra.mxu0 %v997
      %1297 = vmatprep.subr.bf16.mxu0 %v1005
      %1298 = vmatpush1.bf16.msra.mxu0 %v1004
      %1299 = vmatprep.subr.bf16.mxu0 %v1012
      %1300 = vmatpush1.bf16.msra.mxu0 %v1011
      %1301 = vmatprep.subr.bf16.mxu0 %v1019
      %1302 = vmatpush1.bf16.msra.mxu0 %v1018
      %1303 = vmatprep.subr.bf16.mxu0 %v1026
      %1304 = vmatpush1.bf16.msra.mxu0 %v1025
      %1305 = vmatprep.subr.bf16.mxu0 %v1033
      %1306 = vmatpush1.bf16.msra.mxu0 %v1032
      %1307 = vmatprep.subr.bf16.mxu0 %v1040
      %1308 = vmatpush1.bf16.msra.mxu0 %v1039
      %1309 = vmatprep.subr.bf16.mxu0 0
      %1310 = vmatpush1.bf16.msra.mxu0 0
      %1311 = vmatprep.subr.bf16.mxu0 0
      %1312 = vmatpush1.bf16.msra.mxu0 0
      %1313 = vmatprep.subr.bf16.mxu0 0
      %1314 = vmatpush1.bf16.msra.mxu0 0
      %1315 = vmatprep.subr.bf16.mxu0 0
      %1316 = vmatpush1.bf16.msra.mxu0 0
      %1317 = vmatprep.subr.bf16.mxu0 0
      %1318 = vmatpush1.bf16.msra.mxu0 0
      %1319 = vmatprep.subr.bf16.mxu0 0
      %1320 = vmatpush1.bf16.msra.mxu0 0
      %1321 = vmatprep.subr.bf16.mxu0 0
      %1322 = vmatpush1.bf16.msra.mxu0 0
      %1323 = vmatprep.subr.bf16.mxu0 0
      %1324 = vmatpush1.bf16.msra.mxu0 0
      %1325 = vmatprep.mubr.bf16.mxu0 0
      %1326 = vmatmul.mubr.bf16.gmra.mrb[0].mxu0 %v695
      %v1327 = vpop.f32.mrb[0].mxu0
      %v1328 = vadd.f32 %v788, %v1327
      %v1329 = vpop.f32.mrb[0].mxu0
      %v1330 = vadd.f32 %v792, %v1329
      %v1331 = vpop.f32.mrb[0].mxu0
      %v1332 = vadd.f32 %v788, %v1331
      %v1333 = vpop.f32.mrb[0].mxu0
      %v1334 = vadd.f32 %v792, %v1333
      %1335 = vmatprep.mubr.bf16.mxu0 0
      %1336 = vmatmul.mubr.bf16.gmra.mrb[0].mxu0 %v696
      %v1337 = vpop.f32.mrb[0].mxu0
      %v1338 = vadd.f32 %v788, %v1337
      %v1339 = vpop.f32.mrb[0].mxu0
      %v1340 = vadd.f32 %v792, %v1339
      %v1341 = vpop.f32.mrb[0].mxu0
      %v1342 = vadd.f32 %v788, %v1341
      %v1343 = vpop.f32.mrb[0].mxu0
      %v1344 = vadd.f32 %v792, %v1343
      %1345 = vmatprep.mubr.bf16.mxu0 0
      %1346 = vmatmul.mubr.bf16.gmra.mrb[0].mxu0 %v697
      %v1347 = vpop.f32.mrb[0].mxu0
      %v1348 = vadd.f32 %v788, %v1347
      %v1349 = vpop.f32.mrb[0].mxu0
      %v1350 = vadd.f32 %v792, %v1349
      %v1351 = vpop.f32.mrb[0].mxu0
      %v1352 = vadd.f32 %v788, %v1351
      %v1353 = vpop.f32.mrb[0].mxu0
      %v1354 = vadd.f32 %v792, %v1353
      %1355 = vmatprep.mubr.bf16.mxu0 0
      %1356 = vmatmul.mubr.bf16.gmra.mrb[0].mxu0 %v698
      %v1357 = vpop.f32.mrb[0].mxu0
      %v1358 = vadd.f32 %v788, %v1357
      %v1359 = vpop.f32.mrb[0].mxu0
      %v1360 = vadd.f32 %v792, %v1359
      %v1361 = vpop.f32.mrb[0].mxu0
      %v1362 = vadd.f32 %v788, %v1361
      %v1363 = vpop.f32.mrb[0].mxu0
      %v1364 = vadd.f32 %v792, %v1363
      %1365 = vmatprep.mubr.bf16.mxu0 0
      %1366 = vmatmul.mubr.bf16.gmra.mrb[0].mxu0 %v699
      %v1367 = vpop.f32.mrb[0].mxu0
      %v1368 = vadd.f32 %v788, %v1367
      %v1369 = vpop.f32.mrb[0].mxu0
      %v1370 = vadd.f32 %v792, %v1369
      %v1371 = vpop.f32.mrb[0].mxu0
      %v1372 = vadd.f32 %v788, %v1371
      %v1373 = vpop.f32.mrb[0].mxu0
      %v1374 = vadd.f32 %v792, %v1373
      %1375 = vmatprep.mubr.bf16.mxu0 0
      %1376 = vmatmul.mubr.bf16.gmra.mrb[0].mxu0 %v700
      %v1377 = vpop.f32.mrb[0].mxu0
      %v1378 = vadd.f32 %v788, %v1377
      %v1379 = vpop.f32.mrb[0].mxu0
      %v1380 = vadd.f32 %v792, %v1379
      %v1381 = vpop.f32.mrb[0].mxu0
      %v1382 = vadd.f32 %v788, %v1381
      %v1383 = vpop.f32.mrb[0].mxu0
      %v1384 = vadd.f32 %v792, %v1383
      %1385 = vmatprep.mubr.bf16.mxu0 0
      %1386 = vmatmul.mubr.bf16.gmra.mrb[0].mxu0 %v701
      %v1387 = vpop.f32.mrb[0].mxu0
      %v1388 = vadd.f32 %v788, %v1387
      %v1389 = vpop.f32.mrb[0].mxu0
      %v1390 = vadd.f32 %v792, %v1389
      %v1391 = vpop.f32.mrb[0].mxu0
      %v1392 = vadd.f32 %v788, %v1391
      %v1393 = vpop.f32.mrb[0].mxu0
      %v1394 = vadd.f32 %v792, %v1393
      %1395 = vmatprep.mubr.bf16.mxu0 0
      %1396 = vmatmul.mubr.bf16.gmra.mrb[0].mxu0 %v702
      %v1397 = vpop.f32.mrb[0].mxu0
      %v1398 = vadd.f32 %v788, %v1397
      %v1399 = vpop.f32.mrb[0].mxu0
      %v1400 = vadd.f32 %v792, %v1399
      %v1401 = vpop.f32.mrb[0].mxu0
      %v1402 = vadd.f32 %v788, %v1401
      %v1403 = vpop.f32.mrb[0].mxu0
      %v1404 = vadd.f32 %v792, %v1403
      %1405 = vmatprep.mubr.bf16.mxu0 0
      %1406 = vmatmul.mubr.bf16.gmra.mrb[0].mxu0 %v703
      %v1407 = vpop.f32.mrb[0].mxu0
      %v1408 = vadd.f32 %v788, %v1407
      %v1409 = vpop.f32.mrb[0].mxu0
      %v1410 = vadd.f32 %v792, %v1409
      %v1411 = vpop.f32.mrb[0].mxu0
      %v1412 = vadd.f32 %v788, %v1411
      %v1413 = vpop.f32.mrb[0].mxu0
      %v1414 = vadd.f32 %v792, %v1413
      %1415 = vmatprep.mubr.bf16.mxu0 0
      %1416 = vmatmul.mubr.bf16.gmra.mrb[0].mxu0 %v704
      %v1417 = vpop.f32.mrb[0].mxu0
      %v1418 = vadd.f32 %v788, %v1417
      %v1419 = vpop.f32.mrb[0].mxu0
      %v1420 = vadd.f32 %v792, %v1419
      %v1421 = vpop.f32.mrb[0].mxu0
      %v1422 = vadd.f32 %v788, %v1421
      %v1423 = vpop.f32.mrb[0].mxu0
      %v1424 = vadd.f32 %v792, %v1423
      %1425 = vmatprep.mubr.bf16.mxu0 0
      %1426 = vmatmul.mubr.bf16.gmra.mrb[0].mxu0 %v705
      %v1427 = vpop.f32.mrb[0].mxu0
      %v1428 = vadd.f32 %v788, %v1427
      %v1429 = vpop.f32.mrb[0].mxu0
      %v1430 = vadd.f32 %v792, %v1429
      %v1431 = vpop.f32.mrb[0].mxu0
      %v1432 = vadd.f32 %v788, %v1431
      %v1433 = vpop.f32.mrb[0].mxu0
      %v1434 = vadd.f32 %v792, %v1433
      %1435 = vmatprep.mubr.bf16.mxu0 0
      %1436 = vmatmul.mubr.bf16.gmra.mrb[0].mxu0 %v706
      %v1437 = vpop.f32.mrb[0].mxu0
      %v1438 = vadd.f32 %v788, %v1437
      %v1439 = vpop.f32.mrb[0].mxu0
      %v1440 = vadd.f32 %v792, %v1439
      %v1441 = vpop.f32.mrb[0].mxu0
      %v1442 = vadd.f32 %v788, %v1441
      %v1443 = vpop.f32.mrb[0].mxu0
      %v1444 = vadd.f32 %v792, %v1443
      %1445 = vmatprep.mubr.bf16.mxu0 0
      %1446 = vmatmul.mubr.bf16.gmra.mrb[0].mxu0 %v707
      %v1447 = vpop.f32.mrb[0].mxu0
      %v1448 = vadd.f32 %v788, %v1447
      %v1449 = vpop.f32.mrb[0].mxu0
      %v1450 = vadd.f32 %v792, %v1449
      %v1451 = vpop.f32.mrb[0].mxu0
      %v1452 = vadd.f32 %v788, %v1451
      %v1453 = vpop.f32.mrb[0].mxu0
      %v1454 = vadd.f32 %v792, %v1453
      %1455 = vmatprep.mubr.bf16.mxu0 0
      %1456 = vmatmul.mubr.bf16.gmra.mrb[0].mxu0 %v708
      %v1457 = vpop.f32.mrb[0].mxu0
      %v1458 = vadd.f32 %v788, %v1457
      %v1459 = vpop.f32.mrb[0].mxu0
      %v1460 = vadd.f32 %v792, %v1459
      %v1461 = vpop.f32.mrb[0].mxu0
      %v1462 = vadd.f32 %v788, %v1461
      %v1463 = vpop.f32.mrb[0].mxu0
      %v1464 = vadd.f32 %v792, %v1463
      %1465 = vmatprep.mubr.bf16.mxu0 0
      %1466 = vmatmul.mubr.bf16.gmra.mrb[0].mxu0 %v709
      %v1467 = vpop.f32.mrb[0].mxu0
      %v1468 = vadd.f32 %v788, %v1467
      %v1469 = vpop.f32.mrb[0].mxu0
      %v1470 = vadd.f32 %v792, %v1469
      %v1471 = vpop.f32.mrb[0].mxu0
      %v1472 = vadd.f32 %v788, %v1471
      %v1473 = vpop.f32.mrb[0].mxu0
      %v1474 = vadd.f32 %v792, %v1473
      %1475 = vmatprep.mubr.bf16.mxu0 0
      %1476 = vmatmul.mubr.bf16.gmra.mrb[0].mxu0 %v710
      %v1477 = vpop.f32.mrb[0].mxu0
      %v1478 = vadd.f32 %v788, %v1477
      %v1479 = vpop.f32.mrb[0].mxu0
      %v1480 = vadd.f32 %v792, %v1479
      %v1481 = vpop.f32.mrb[0].mxu0
      %v1482 = vadd.f32 %v788, %v1481
      %v1483 = vpop.f32.mrb[0].mxu0
      %v1484 = vadd.f32 %v792, %v1483
      %1485 = vdwg.mxu0
      %1486 = vmatprep.subr.bf16.mxu0 %v993
      %1487 = vmatpush1.bf16.msra.mxu0 %v992
      %1488 = vmatprep.subr.bf16.mxu0 %v1000
      %1489 = vmatpush1.bf16.msra.mxu0 %v999
      %1490 = vmatprep.subr.bf16.mxu0 %v1007
      %1491 = vmatpush1.bf16.msra.mxu0 %v1006
      %1492 = vmatprep.subr.bf16.mxu0 %v1014
      %1493 = vmatpush1.bf16.msra.mxu0 %v1013
      %1494 = vmatprep.subr.bf16.mxu0 %v1021
      %1495 = vmatpush1.bf16.msra.mxu0 %v1020
      %1496 = vmatprep.subr.bf16.mxu0 %v1028
      %1497 = vmatpush1.bf16.msra.mxu0 %v1027
      %1498 = vmatprep.subr.bf16.mxu0 %v1035
      %1499 = vmatpush1.bf16.msra.mxu0 %v1034
      %1500 = vmatprep.subr.bf16.mxu0 %v1042
      %1501 = vmatpush1.bf16.msra.mxu0 %v1041
      %1502 = vmatprep.subr.bf16.mxu0 0
      %1503 = vmatpush1.bf16.msra.mxu0 0
      %1504 = vmatprep.subr.bf16.mxu0 0
      %1505 = vmatpush1.bf16.msra.mxu0 0
      %1506 = vmatprep.subr.bf16.mxu0 0
      %1507 = vmatpush1.bf16.msra.mxu0 0
      %1508 = vmatprep.subr.bf16.mxu0 0
      %1509 = vmatpush1.bf16.msra.mxu0 0
      %1510 = vmatprep.subr.bf16.mxu0 0
      %1511 = vmatpush1.bf16.msra.mxu0 0
      %1512 = vmatprep.subr.bf16.mxu0 0
      %1513 = vmatpush1.bf16.msra.mxu0 0
      %1514 = vmatprep.subr.bf16.mxu0 0
      %1515 = vmatpush1.bf16.msra.mxu0 0
      %1516 = vmatprep.subr.bf16.mxu0 0
      %1517 = vmatpush1.bf16.msra.mxu0 0
      %1518 = vmatprep.mubr.bf16.mxu0 0
      %1519 = vmatmul.mubr.bf16.gmra.mrb[0].mxu0 %v695
      %v1520 = vpop.f32.mrb[0].mxu0
      %v1521 = vadd.f32 %v796, %v1520
      %v1522 = vpop.f32.mrb[0].mxu0
      %v1523 = vadd.f32 %v800, %v1522
      %v1524 = vpop.f32.mrb[0].mxu0
      %v1525 = vadd.f32 %v796, %v1524
      %v1526 = vpop.f32.mrb[0].mxu0
      %v1527 = vadd.f32 %v800, %v1526
      %1528 = vmatprep.mubr.bf16.mxu0 0
      %1529 = vmatmul.mubr.bf16.gmra.mrb[0].mxu0 %v696
      %v1530 = vpop.f32.mrb[0].mxu0
      %v1531 = vadd.f32 %v796, %v1530
      %v1532 = vpop.f32.mrb[0].mxu0
      %v1533 = vadd.f32 %v800, %v1532
      %v1534 = vpop.f32.mrb[0].mxu0
      %v1535 = vadd.f32 %v796, %v1534
      %v1536 = vpop.f32.mrb[0].mxu0
      %v1537 = vadd.f32 %v800, %v1536
      %1538 = vmatprep.mubr.bf16.mxu0 0
      %1539 = vmatmul.mubr.bf16.gmra.mrb[0].mxu0 %v697
      %v1540 = vpop.f32.mrb[0].mxu0
      %v1541 = vadd.f32 %v796, %v1540
      %v1542 = vpop.f32.mrb[0].mxu0
      %v1543 = vadd.f32 %v800, %v1542
      %v1544 = vpop.f32.mrb[0].mxu0
      %v1545 = vadd.f32 %v796, %v1544
      %v1546 = vpop.f32.mrb[0].mxu0
      %v1547 = vadd.f32 %v800, %v1546
      %1548 = vmatprep.mubr.bf16.mxu0 0
      %1549 = vmatmul.mubr.bf16.gmra.mrb[0].mxu0 %v698
      %v1550 = vpop.f32.mrb[0].mxu0
      %v1551 = vadd.f32 %v796, %v1550
      %v1552 = vpop.f32.mrb[0].mxu0
      %v1553 = vadd.f32 %v800, %v1552
      %v1554 = vpop.f32.mrb[0].mxu0
      %v1555 = vadd.f32 %v796, %v1554
      %v1556 = vpop.f32.mrb[0].mxu0
      %v1557 = vadd.f32 %v800, %v1556
      %1558 = vmatprep.mubr.bf16.mxu0 0
      %1559 = vmatmul.mubr.bf16.gmra.mrb[0].mxu0 %v699
      %v1560 = vpop.f32.mrb[0].mxu0
      %v1561 = vadd.f32 %v796, %v1560
      %v1562 = vpop.f32.mrb[0].mxu0
      %v1563 = vadd.f32 %v800, %v1562
      %v1564 = vpop.f32.mrb[0].mxu0
      %v1565 = vadd.f32 %v796, %v1564
      %v1566 = vpop.f32.mrb[0].mxu0
      %v1567 = vadd.f32 %v800, %v1566
      %1568 = vmatprep.mubr.bf16.mxu0 0
      %1569 = vmatmul.mubr.bf16.gmra.mrb[0].mxu0 %v700
      %v1570 = vpop.f32.mrb[0].mxu0
      %v1571 = vadd.f32 %v796, %v1570
      %v1572 = vpop.f32.mrb[0].mxu0
      %v1573 = vadd.f32 %v800, %v1572
      %v1574 = vpop.f32.mrb[0].mxu0
      %v1575 = vadd.f32 %v796, %v1574
      %v1576 = vpop.f32.mrb[0].mxu0
      %v1577 = vadd.f32 %v800, %v1576
      %1578 = vmatprep.mubr.bf16.mxu0 0
      %1579 = vmatmul.mubr.bf16.gmra.mrb[0].mxu0 %v701
      %v1580 = vpop.f32.mrb[0].mxu0
      %v1581 = vadd.f32 %v796, %v1580
      %v1582 = vpop.f32.mrb[0].mxu0
      %v1583 = vadd.f32 %v800, %v1582
      %v1584 = vpop.f32.mrb[0].mxu0
      %v1585 = vadd.f32 %v796, %v1584
      %v1586 = vpop.f32.mrb[0].mxu0
      %v1587 = vadd.f32 %v800, %v1586
      %1588 = vmatprep.mubr.bf16.mxu0 0
      %1589 = vmatmul.mubr.bf16.gmra.mrb[0].mxu0 %v702
      %v1590 = vpop.f32.mrb[0].mxu0
      %v1591 = vadd.f32 %v796, %v1590
      %v1592 = vpop.f32.mrb[0].mxu0
      %v1593 = vadd.f32 %v800, %v1592
      %v1594 = vpop.f32.mrb[0].mxu0
      %v1595 = vadd.f32 %v796, %v1594
      %v1596 = vpop.f32.mrb[0].mxu0
      %v1597 = vadd.f32 %v800, %v1596
      %1598 = vmatprep.mubr.bf16.mxu0 0
      %1599 = vmatmul.mubr.bf16.gmra.mrb[0].mxu0 %v703
      %v1600 = vpop.f32.mrb[0].mxu0
      %v1601 = vadd.f32 %v796, %v1600
      %v1602 = vpop.f32.mrb[0].mxu0
      %v1603 = vadd.f32 %v800, %v1602
      %v1604 = vpop.f32.mrb[0].mxu0
      %v1605 = vadd.f32 %v796, %v1604
      %v1606 = vpop.f32.mrb[0].mxu0
      %v1607 = vadd.f32 %v800, %v1606
      %1608 = vmatprep.mubr.bf16.mxu0 0
      %1609 = vmatmul.mubr.bf16.gmra.mrb[0].mxu0 %v704
      %v1610 = vpop.f32.mrb[0].mxu0
      %v1611 = vadd.f32 %v796, %v1610
      %v1612 = vpop.f32.mrb[0].mxu0
      %v1613 = vadd.f32 %v800, %v1612
      %v1614 = vpop.f32.mrb[0].mxu0
      %v1615 = vadd.f32 %v796, %v1614
      %v1616 = vpop.f32.mrb[0].mxu0
      %v1617 = vadd.f32 %v800, %v1616
      %1618 = vmatprep.mubr.bf16.mxu0 0
      %1619 = vmatmul.mubr.bf16.gmra.mrb[0].mxu0 %v705
      %v1620 = vpop.f32.mrb[0].mxu0
      %v1621 = vadd.f32 %v796, %v1620
      %v1622 = vpop.f32.mrb[0].mxu0
      %v1623 = vadd.f32 %v800, %v1622
      %v1624 = vpop.f32.mrb[0].mxu0
      %v1625 = vadd.f32 %v796, %v1624
      %v1626 = vpop.f32.mrb[0].mxu0
      %v1627 = vadd.f32 %v800, %v1626
      %1628 = vmatprep.mubr.bf16.mxu0 0
      %1629 = vmatmul.mubr.bf16.gmra.mrb[0].mxu0 %v706
      %v1630 = vpop.f32.mrb[0].mxu0
      %v1631 = vadd.f32 %v796, %v1630
      %v1632 = vpop.f32.mrb[0].mxu0
      %v1633 = vadd.f32 %v800, %v1632
      %v1634 = vpop.f32.mrb[0].mxu0
      %v1635 = vadd.f32 %v796, %v1634
      %v1636 = vpop.f32.mrb[0].mxu0
      %v1637 = vadd.f32 %v800, %v1636
      %1638 = vmatprep.mubr.bf16.mxu0 0
      %1639 = vmatmul.mubr.bf16.gmra.mrb[0].mxu0 %v707
      %v1640 = vpop.f32.mrb[0].mxu0
      %v1641 = vadd.f32 %v796, %v1640
      %v1642 = vpop.f32.mrb[0].mxu0
      %v1643 = vadd.f32 %v800, %v1642
      %v1644 = vpop.f32.mrb[0].mxu0
      %v1645 = vadd.f32 %v796, %v1644
      %v1646 = vpop.f32.mrb[0].mxu0
      %v1647 = vadd.f32 %v800, %v1646
      %1648 = vmatprep.mubr.bf16.mxu0 0
      %1649 = vmatmul.mubr.bf16.gmra.mrb[0].mxu0 %v708
      %v1650 = vpop.f32.mrb[0].mxu0
      %v1651 = vadd.f32 %v796, %v1650
      %v1652 = vpop.f32.mrb[0].mxu0
      %v1653 = vadd.f32 %v800, %v1652
      %v1654 = vpop.f32.mrb[0].mxu0
      %v1655 = vadd.f32 %v796, %v1654
      %v1656 = vpop.f32.mrb[0].mxu0
      %v1657 = vadd.f32 %v800, %v1656
      %1658 = vmatprep.mubr.bf16.mxu0 0
      %1659 = vmatmul.mubr.bf16.gmra.mrb[0].mxu0 %v709
      %v1660 = vpop.f32.mrb[0].mxu0
      %v1661 = vadd.f32 %v796, %v1660
      %v1662 = vpop.f32.mrb[0].mxu0
      %v1663 = vadd.f32 %v800, %v1662
      %v1664 = vpop.f32.mrb[0].mxu0
      %v1665 = vadd.f32 %v796, %v1664
      %v1666 = vpop.f32.mrb[0].mxu0
      %v1667 = vadd.f32 %v800, %v1666
      %1668 = vmatprep.mubr.bf16.mxu0 0
      %1669 = vmatmul.mubr.bf16.gmra.mrb[0].mxu0 %v710
      %v1670 = vpop.f32.mrb[0].mxu0
      %v1671 = vadd.f32 %v796, %v1670
      %v1672 = vpop.f32.mrb[0].mxu0
      %v1673 = vadd.f32 %v800, %v1672
      %v1674 = vpop.f32.mrb[0].mxu0
      %v1675 = vadd.f32 %v796, %v1674
      %v1676 = vpop.f32.mrb[0].mxu0
      %v1677 = vadd.f32 %v800, %v1676
      %1678 = vdwg.mxu0
      %1679 = vmatprep.subr.bf16.mxu0 0
      %1680 = vmatpush1.bf16.msra.mxu0 %v994
      %1681 = vmatprep.subr.bf16.mxu0 0
      %1682 = vmatpush1.bf16.msra.mxu0 %v1001
      %1683 = vmatprep.subr.bf16.mxu0 0
      %1684 = vmatpush1.bf16.msra.mxu0 %v1008
      %1685 = vmatprep.subr.bf16.mxu0 0
      %1686 = vmatpush1.bf16.msra.mxu0 %v1015
      %1687 = vmatprep.subr.bf16.mxu0 0
      %1688 = vmatpush1.bf16.msra.mxu0 %v1022
      %1689 = vmatprep.subr.bf16.mxu0 0
      %1690 = vmatpush1.bf16.msra.mxu0 %v1029
      %1691 = vmatprep.subr.bf16.mxu0 0
      %1692 = vmatpush1.bf16.msra.mxu0 %v1036
      %1693 = vmatprep.subr.bf16.mxu0 0
      %1694 = vmatpush1.bf16.msra.mxu0 %v1043
      %1695 = vmatprep.subr.bf16.mxu0 0
      %1696 = vmatpush1.bf16.msra.mxu0 0
      %1697 = vmatprep.subr.bf16.mxu0 0
      %1698 = vmatpush1.bf16.msra.mxu0 0
      %1699 = vmatprep.subr.bf16.mxu0 0
      %1700 = vmatpush1.bf16.msra.mxu0 0
      %1701 = vmatprep.subr.bf16.mxu0 0
      %1702 = vmatpush1.bf16.msra.mxu0 0
      %1703 = vmatprep.subr.bf16.mxu0 0
      %1704 = vmatpush1.bf16.msra.mxu0 0
      %1705 = vmatprep.subr.bf16.mxu0 0
      %1706 = vmatpush1.bf16.msra.mxu0 0
      %1707 = vmatprep.subr.bf16.mxu0 0
      %1708 = vmatpush1.bf16.msra.mxu0 0
      %1709 = vmatprep.subr.bf16.mxu0 0
      %1710 = vmatpush1.bf16.msra.mxu0 0
      %1711 = vmatprep.mubr.bf16.mxu0 0
      %1712 = vmatmul.mubr.bf16.gmra.mrb[0].mxu0 %v695
      %v1713 = vpop.f32.mrb[0].mxu0
      %v1714 = vadd.f32 %v804, %v1713
      %v1715 = vpop.f32.mrb[0].mxu0
      %v1716 = vpop.f32.mrb[0].mxu0
      %v1717 = vadd.f32 %v804, %v1716
      %v1718 = vpop.f32.mrb[0].mxu0
      %1719 = vmatprep.mubr.bf16.mxu0 0
      %1720 = vmatmul.mubr.bf16.gmra.mrb[0].mxu0 %v696
      %v1721 = vpop.f32.mrb[0].mxu0
      %v1722 = vadd.f32 %v804, %v1721
      %v1723 = vpop.f32.mrb[0].mxu0
      %v1724 = vpop.f32.mrb[0].mxu0
      %v1725 = vadd.f32 %v804, %v1724
      %v1726 = vpop.f32.mrb[0].mxu0
      %1727 = vmatprep.mubr.bf16.mxu0 0
      %1728 = vmatmul.mubr.bf16.gmra.mrb[0].mxu0 %v697
      %v1729 = vpop.f32.mrb[0].mxu0
      %v1730 = vadd.f32 %v804, %v1729
      %v1731 = vpop.f32.mrb[0].mxu0
      %v1732 = vpop.f32.mrb[0].mxu0
      %v1733 = vadd.f32 %v804, %v1732
      %v1734 = vpop.f32.mrb[0].mxu0
      %1735 = vmatprep.mubr.bf16.mxu0 0
      %1736 = vmatmul.mubr.bf16.gmra.mrb[0].mxu0 %v698
      %v1737 = vpop.f32.mrb[0].mxu0
      %v1738 = vadd.f32 %v804, %v1737
      %v1739 = vpop.f32.mrb[0].mxu0
      %v1740 = vpop.f32.mrb[0].mxu0
      %v1741 = vadd.f32 %v804, %v1740
      %v1742 = vpop.f32.mrb[0].mxu0
      %1743 = vmatprep.mubr.bf16.mxu0 0
      %1744 = vmatmul.mubr.bf16.gmra.mrb[0].mxu0 %v699
      %v1745 = vpop.f32.mrb[0].mxu0
      %v1746 = vadd.f32 %v804, %v1745
      %v1747 = vpop.f32.mrb[0].mxu0
      %v1748 = vpop.f32.mrb[0].mxu0
      %v1749 = vadd.f32 %v804, %v1748
      %v1750 = vpop.f32.mrb[0].mxu0
      %1751 = vmatprep.mubr.bf16.mxu0 0
      %1752 = vmatmul.mubr.bf16.gmra.mrb[0].mxu0 %v700
      %v1753 = vpop.f32.mrb[0].mxu0
      %v1754 = vadd.f32 %v804, %v1753
      %v1755 = vpop.f32.mrb[0].mxu0
      %v1756 = vpop.f32.mrb[0].mxu0
      %v1757 = vadd.f32 %v804, %v1756
      %v1758 = vpop.f32.mrb[0].mxu0
      %1759 = vmatprep.mubr.bf16.mxu0 0
      %1760 = vmatmul.mubr.bf16.gmra.mrb[0].mxu0 %v701
      %v1761 = vpop.f32.mrb[0].mxu0
      %v1762 = vadd.f32 %v804, %v1761
      %v1763 = vpop.f32.mrb[0].mxu0
      %v1764 = vpop.f32.mrb[0].mxu0
      %v1765 = vadd.f32 %v804, %v1764
      %v1766 = vpop.f32.mrb[0].mxu0
      %1767 = vmatprep.mubr.bf16.mxu0 0
      %1768 = vmatmul.mubr.bf16.gmra.mrb[0].mxu0 %v702
      %v1769 = vpop.f32.mrb[0].mxu0
      %v1770 = vadd.f32 %v804, %v1769
      %v1771 = vpop.f32.mrb[0].mxu0
      %v1772 = vpop.f32.mrb[0].mxu0
      %v1773 = vadd.f32 %v804, %v1772
      %v1774 = vpop.f32.mrb[0].mxu0
      %1775 = vmatprep.mubr.bf16.mxu0 0
      %1776 = vmatmul.mubr.bf16.gmra.mrb[0].mxu0 %v703
      %v1777 = vpop.f32.mrb[0].mxu0
      %v1778 = vadd.f32 %v804, %v1777
      %v1779 = vpop.f32.mrb[0].mxu0
      %v1780 = vpop.f32.mrb[0].mxu0
      %v1781 = vadd.f32 %v804, %v1780
      %v1782 = vpop.f32.mrb[0].mxu0
      %1783 = vmatprep.mubr.bf16.mxu0 0
      %1784 = vmatmul.mubr.bf16.gmra.mrb[0].mxu0 %v704
      %v1785 = vpop.f32.mrb[0].mxu0
      %v1786 = vadd.f32 %v804, %v1785
      %v1787 = vpop.f32.mrb[0].mxu0
      %v1788 = vpop.f32.mrb[0].mxu0
      %v1789 = vadd.f32 %v804, %v1788
      %v1790 = vpop.f32.mrb[0].mxu0
      %1791 = vmatprep.mubr.bf16.mxu0 0
      %1792 = vmatmul.mubr.bf16.gmra.mrb[0].mxu0 %v705
      %v1793 = vpop.f32.mrb[0].mxu0
      %v1794 = vadd.f32 %v804, %v1793
      %v1795 = vpop.f32.mrb[0].mxu0
      %v1796 = vpop.f32.mrb[0].mxu0
      %v1797 = vadd.f32 %v804, %v1796
      %v1798 = vpop.f32.mrb[0].mxu0
      %1799 = vmatprep.mubr.bf16.mxu0 0
      %1800 = vmatmul.mubr.bf16.gmra.mrb[0].mxu0 %v706
      %v1801 = vpop.f32.mrb[0].mxu0
      %v1802 = vadd.f32 %v804, %v1801
      %v1803 = vpop.f32.mrb[0].mxu0
      %v1804 = vpop.f32.mrb[0].mxu0
      %v1805 = vadd.f32 %v804, %v1804
      %v1806 = vpop.f32.mrb[0].mxu0
      %1807 = vmatprep.mubr.bf16.mxu0 0
      %1808 = vmatmul.mubr.bf16.gmra.mrb[0].mxu0 %v707
      %v1809 = vpop.f32.mrb[0].mxu0
      %v1810 = vadd.f32 %v804, %v1809
      %v1811 = vpop.f32.mrb[0].mxu0
      %v1812 = vpop.f32.mrb[0].mxu0
      %v1813 = vadd.f32 %v804, %v1812
      %v1814 = vpop.f32.mrb[0].mxu0
      %1815 = vmatprep.mubr.bf16.mxu0 0
      %1816 = vmatmul.mubr.bf16.gmra.mrb[0].mxu0 %v708
      %v1817 = vpop.f32.mrb[0].mxu0
      %v1818 = vadd.f32 %v804, %v1817
      %v1819 = vpop.f32.mrb[0].mxu0
      %v1820 = vpop.f32.mrb[0].mxu0
      %v1821 = vadd.f32 %v804, %v1820
      %v1822 = vpop.f32.mrb[0].mxu0
      %1823 = vmatprep.mubr.bf16.mxu0 0
      %1824 = vmatmul.mubr.bf16.gmra.mrb[0].mxu0 %v709
      %v1825 = vpop.f32.mrb[0].mxu0
      %v1826 = vadd.f32 %v804, %v1825
      %v1827 = vpop.f32.mrb[0].mxu0
      %v1828 = vpop.f32.mrb[0].mxu0
      %v1829 = vadd.f32 %v804, %v1828
      %v1830 = vpop.f32.mrb[0].mxu0
      %1831 = vmatprep.mubr.bf16.mxu0 0
      %1832 = vmatmul.mubr.bf16.gmra.mrb[0].mxu0 %v710
      %v1833 = vpop.f32.mrb[0].mxu0
      %v1834 = vadd.f32 %v804, %v1833
      %v1835 = vpop.f32.mrb[0].mxu0
      %v1836 = vpop.f32.mrb[0].mxu0
      %v1837 = vadd.f32 %v804, %v1836
      %v1838 = vpop.f32.mrb[0].mxu0
      %1839 = vdwg.mxu0
      %v1840 = vtanh.pop %v1135
      %v1841 = vtanh.pop %v1137
      %v1842 = vtanh.pop %v1328
      %v1843 = vtanh.pop %v1330
      %v1844 = vtanh.pop %v1521
      %v1845 = vtanh.pop %v1523
      %v1846 = vtanh.pop %v1714
      %v1847 = vtanh.pop %v1139
      %v1848 = vtanh.pop %v1141
      %v1849 = vtanh.pop %v1332
      %v1850 = vtanh.pop %v1334
      %v1851 = vtanh.pop %v1525
      %v1852 = vtanh.pop %v1527
      %v1853 = vtanh.pop %v1717
      %v1854 = vtanh.pop %v1145
      %v1855 = vtanh.pop %v1147
      %v1856 = vtanh.pop %v1338
      %v1857 = vtanh.pop %v1340
      %v1858 = vtanh.pop %v1531
      %v1859 = vtanh.pop %v1533
      %v1860 = vtanh.pop %v1722
      %v1861 = vtanh.pop %v1149
      %v1862 = vtanh.pop %v1151
      %v1863 = vtanh.pop %v1342
      %v1864 = vtanh.pop %v1344
      %v1865 = vtanh.pop %v1535
      %v1866 = vtanh.pop %v1537
      %v1867 = vtanh.pop %v1725
      %v1868 = vtanh.pop %v1155
      %v1869 = vtanh.pop %v1157
      %v1870 = vtanh.pop %v1348
      %v1871 = vtanh.pop %v1350
      %v1872 = vtanh.pop %v1541
      %v1873 = vtanh.pop %v1543
      %v1874 = vtanh.pop %v1730
      %v1875 = vtanh.pop %v1159
      %v1876 = vtanh.pop %v1161
      %v1877 = vtanh.pop %v1352
      %v1878 = vtanh.pop %v1354
      %v1879 = vtanh.pop %v1545
      %v1880 = vtanh.pop %v1547
      %v1881 = vtanh.pop %v1733
      %v1882 = vtanh.pop %v1165
      %v1883 = vtanh.pop %v1167
      %v1884 = vtanh.pop %v1358
      %v1885 = vtanh.pop %v1360
      %v1886 = vtanh.pop %v1551
      %v1887 = vtanh.pop %v1553
      %v1888 = vtanh.pop %v1738
      %v1889 = vtanh.pop %v1169
      %v1890 = vtanh.pop %v1171
      %v1891 = vtanh.pop %v1362
      %v1892 = vtanh.pop %v1364
      %v1893 = vtanh.pop %v1555
      %v1894 = vtanh.pop %v1557
      %v1895 = vtanh.pop %v1741
      %v1896 = vtanh.pop %v1175
      %v1897 = vtanh.pop %v1177
      %v1898 = vtanh.pop %v1368
      %v1899 = vtanh.pop %v1370
      %v1900 = vtanh.pop %v1561
      %v1901 = vtanh.pop %v1563
      %v1902 = vtanh.pop %v1746
      %v1903 = vtanh.pop %v1179
      %v1904 = vtanh.pop %v1181
      %v1905 = vtanh.pop %v1372
      %v1906 = vtanh.pop %v1374
      %v1907 = vtanh.pop %v1565
      %v1908 = vtanh.pop %v1567
      %v1909 = vtanh.pop %v1749
      %v1910 = vtanh.pop %v1185
      %v1911 = vtanh.pop %v1187
      %v1912 = vtanh.pop %v1378
      %v1913 = vtanh.pop %v1380
      %v1914 = vtanh.pop %v1571
      %v1915 = vtanh.pop %v1573
      %v1916 = vtanh.pop %v1754
      %v1917 = vtanh.pop %v1189
      %v1918 = vtanh.pop %v1191
      %v1919 = vtanh.pop %v1382
      %v1920 = vtanh.pop %v1384
      %v1921 = vtanh.pop %v1575
      %v1922 = vtanh.pop %v1577
      %v1923 = vtanh.pop %v1757
      %v1924 = vtanh.pop %v1195
      %v1925 = vtanh.pop %v1197
      %v1926 = vtanh.pop %v1388
      %v1927 = vtanh.pop %v1390
      %v1928 = vtanh.pop %v1581
      %v1929 = vtanh.pop %v1583
      %v1930 = vtanh.pop %v1762
      %v1931 = vtanh.pop %v1199
      %v1932 = vtanh.pop %v1201
      %v1933 = vtanh.pop %v1392
      %v1934 = vtanh.pop %v1394
      %v1935 = vtanh.pop %v1585
      %v1936 = vtanh.pop %v1587
      %v1937 = vtanh.pop %v1765
      %v1938 = vtanh.pop %v1205
      %v1939 = vtanh.pop %v1207
      %v1940 = vtanh.pop %v1398
      %v1941 = vtanh.pop %v1400
      %v1942 = vtanh.pop %v1591
      %v1943 = vtanh.pop %v1593
      %v1944 = vtanh.pop %v1770
      %v1945 = vtanh.pop %v1209
      %v1946 = vtanh.pop %v1211
      %v1947 = vtanh.pop %v1402
      %v1948 = vtanh.pop %v1404
      %v1949 = vtanh.pop %v1595
      %v1950 = vtanh.pop %v1597
      %v1951 = vtanh.pop %v1773
      %v1952 = vtanh.pop %v1215
      %v1953 = vtanh.pop %v1217
      %v1954 = vtanh.pop %v1408
      %v1955 = vtanh.pop %v1410
      %v1956 = vtanh.pop %v1601
      %v1957 = vtanh.pop %v1603
      %v1958 = vtanh.pop %v1778
      %v1959 = vtanh.pop %v1219
      %v1960 = vtanh.pop %v1221
      %v1961 = vtanh.pop %v1412
      %v1962 = vtanh.pop %v1414
      %v1963 = vtanh.pop %v1605
      %v1964 = vtanh.pop %v1607
      %v1965 = vtanh.pop %v1781
      %v1966 = vtanh.pop %v1225
      %v1967 = vtanh.pop %v1227
      %v1968 = vtanh.pop %v1418
      %v1969 = vtanh.pop %v1420
      %v1970 = vtanh.pop %v1611
      %v1971 = vtanh.pop %v1613
      %v1972 = vtanh.pop %v1786
      %v1973 = vtanh.pop %v1229
      %v1974 = vtanh.pop %v1231
      %v1975 = vtanh.pop %v1422
      %v1976 = vtanh.pop %v1424
      %v1977 = vtanh.pop %v1615
      %v1978 = vtanh.pop %v1617
      %v1979 = vtanh.pop %v1789
      %v1980 = vtanh.pop %v1235
      %v1981 = vtanh.pop %v1237
      %v1982 = vtanh.pop %v1428
      %v1983 = vtanh.pop %v1430
      %v1984 = vtanh.pop %v1621
      %v1985 = vtanh.pop %v1623
      %v1986 = vtanh.pop %v1794
      %v1987 = vtanh.pop %v1239
      %v1988 = vtanh.pop %v1241
      %v1989 = vtanh.pop %v1432
      %v1990 = vtanh.pop %v1434
      %v1991 = vtanh.pop %v1625
      %v1992 = vtanh.pop %v1627
      %v1993 = vtanh.pop %v1797
      %v1994 = vtanh.pop %v1245
      %v1995 = vtanh.pop %v1247
      %v1996 = vtanh.pop %v1438
      %v1997 = vtanh.pop %v1440
      %v1998 = vtanh.pop %v1631
      %v1999 = vtanh.pop %v1633
      %v2000 = vtanh.pop %v1802
      %v2001 = vtanh.pop %v1249
      %v2002 = vtanh.pop %v1251
      %v2003 = vtanh.pop %v1442
      %v2004 = vtanh.pop %v1444
      %v2005 = vtanh.pop %v1635
      %v2006 = vtanh.pop %v1637
      %v2007 = vtanh.pop %v1805
      %v2008 = vtanh.pop %v1255
      %v2009 = vtanh.pop %v1257
      %v2010 = vtanh.pop %v1448
      %v2011 = vtanh.pop %v1450
      %v2012 = vtanh.pop %v1641
      %v2013 = vtanh.pop %v1643
      %v2014 = vtanh.pop %v1810
      %v2015 = vtanh.pop %v1259
      %v2016 = vtanh.pop %v1261
      %v2017 = vtanh.pop %v1452
      %v2018 = vtanh.pop %v1454
      %v2019 = vtanh.pop %v1645
      %v2020 = vtanh.pop %v1647
      %v2021 = vtanh.pop %v1813
      %v2022 = vtanh.pop %v1265
      %v2023 = vtanh.pop %v1267
      %v2024 = vtanh.pop %v1458
      %v2025 = vtanh.pop %v1460
      %v2026 = vtanh.pop %v1651
      %v2027 = vtanh.pop %v1653
      %v2028 = vtanh.pop %v1818
      %v2029 = vtanh.pop %v1269
      %v2030 = vtanh.pop %v1271
      %v2031 = vtanh.pop %v1462
      %v2032 = vtanh.pop %v1464
      %v2033 = vtanh.pop %v1655
      %v2034 = vtanh.pop %v1657
      %v2035 = vtanh.pop %v1821
      %v2036 = vtanh.pop %v1275
      %v2037 = vtanh.pop %v1277
      %v2038 = vtanh.pop %v1468
      %v2039 = vtanh.pop %v1470
      %v2040 = vtanh.pop %v1661
      %v2041 = vtanh.pop %v1663
      %v2042 = vtanh.pop %v1826
      %v2043 = vtanh.pop %v1279
      %v2044 = vtanh.pop %v1281
      %v2045 = vtanh.pop %v1472
      %v2046 = vtanh.pop %v1474
      %v2047 = vtanh.pop %v1665
      %v2048 = vtanh.pop %v1667
      %v2049 = vtanh.pop %v1829
      %v2050 = vtanh.pop %v1285
      %v2051 = vtanh.pop %v1287
      %v2052 = vtanh.pop %v1478
      %v2053 = vtanh.pop %v1480
      %v2054 = vtanh.pop %v1671
      %v2055 = vtanh.pop %v1673
      %v2056 = vtanh.pop %v1834
      %v2057 = vtanh.pop %v1289
      %v2058 = vtanh.pop %v1291
      %v2059 = vtanh.pop %v1482
      %v2060 = vtanh.pop %v1484
      %v2061 = vtanh.pop %v1675
      %v2062 = vtanh.pop %v1677
      %v2063 = vtanh.pop %v1837
      %v2064 = vpack.c.bf16 %v1847, %v1840
      %v2065 = vpack.c.bf16 %v1848, %v1841
      %v2066 = vpack.c.bf16 %v1849, %v1842
      %v2067 = vpack.c.bf16 %v1850, %v1843
      %v2068 = vpack.c.bf16 %v1851, %v1844
      %v2069 = vpack.c.bf16 %v1852, %v1845
      %v2070 = vpack.c.bf16 %v1853, %v1846
      %v2071 = vpack.c.bf16 %v1861, %v1854
      %v2072 = vpack.c.bf16 %v1862, %v1855
      %v2073 = vpack.c.bf16 %v1863, %v1856
      %v2074 = vpack.c.bf16 %v1864, %v1857
      %v2075 = vpack.c.bf16 %v1865, %v1858
      %v2076 = vpack.c.bf16 %v1866, %v1859
      %v2077 = vpack.c.bf16 %v1867, %v1860
      %v2078 = vpack.c.bf16 %v1875, %v1868
      %v2079 = vpack.c.bf16 %v1876, %v1869
      %v2080 = vpack.c.bf16 %v1877, %v1870
      %v2081 = vpack.c.bf16 %v1878, %v1871
      %v2082 = vpack.c.bf16 %v1879, %v1872
      %v2083 = vpack.c.bf16 %v1880, %v1873
      %v2084 = vpack.c.bf16 %v1881, %v1874
      %v2085 = vpack.c.bf16 %v1889, %v1882
      %v2086 = vpack.c.bf16 %v1890, %v1883
      %v2087 = vpack.c.bf16 %v1891, %v1884
      %v2088 = vpack.c.bf16 %v1892, %v1885
      %v2089 = vpack.c.bf16 %v1893, %v1886
      %v2090 = vpack.c.bf16 %v1894, %v1887
      %v2091 = vpack.c.bf16 %v1895, %v1888
      %v2092 = vpack.c.bf16 %v1903, %v1896
      %v2093 = vpack.c.bf16 %v1904, %v1897
      %v2094 = vpack.c.bf16 %v1905, %v1898
      %v2095 = vpack.c.bf16 %v1906, %v1899
      %v2096 = vpack.c.bf16 %v1907, %v1900
      %v2097 = vpack.c.bf16 %v1908, %v1901
      %v2098 = vpack.c.bf16 %v1909, %v1902
      %v2099 = vpack.c.bf16 %v1917, %v1910
      %v2100 = vpack.c.bf16 %v1918, %v1911
      %v2101 = vpack.c.bf16 %v1919, %v1912
      %v2102 = vpack.c.bf16 %v1920, %v1913
      %v2103 = vpack.c.bf16 %v1921, %v1914
      %v2104 = vpack.c.bf16 %v1922, %v1915
      %v2105 = vpack.c.bf16 %v1923, %v1916
      %v2106 = vpack.c.bf16 %v1931, %v1924
      %v2107 = vpack.c.bf16 %v1932, %v1925
      %v2108 = vpack.c.bf16 %v1933, %v1926
      %v2109 = vpack.c.bf16 %v1934, %v1927
      %v2110 = vpack.c.bf16 %v1935, %v1928
      %v2111 = vpack.c.bf16 %v1936, %v1929
      %v2112 = vpack.c.bf16 %v1937, %v1930
      %v2113 = vpack.c.bf16 %v1945, %v1938
      %v2114 = vpack.c.bf16 %v1946, %v1939
      %v2115 = vpack.c.bf16 %v1947, %v1940
      %v2116 = vpack.c.bf16 %v1948, %v1941
      %v2117 = vpack.c.bf16 %v1949, %v1942
      %v2118 = vpack.c.bf16 %v1950, %v1943
      %v2119 = vpack.c.bf16 %v1951, %v1944
      %v2120 = vpack.c.bf16 %v1959, %v1952
      %v2121 = vpack.c.bf16 %v1960, %v1953
      %v2122 = vpack.c.bf16 %v1961, %v1954
      %v2123 = vpack.c.bf16 %v1962, %v1955
      %v2124 = vpack.c.bf16 %v1963, %v1956
      %v2125 = vpack.c.bf16 %v1964, %v1957
      %v2126 = vpack.c.bf16 %v1965, %v1958
      %v2127 = vpack.c.bf16 %v1973, %v1966
      %v2128 = vpack.c.bf16 %v1974, %v1967
      %v2129 = vpack.c.bf16 %v1975, %v1968
      %v2130 = vpack.c.bf16 %v1976, %v1969
      %v2131 = vpack.c.bf16 %v1977, %v1970
      %v2132 = vpack.c.bf16 %v1978, %v1971
      %v2133 = vpack.c.bf16 %v1979, %v1972
      %v2134 = vpack.c.bf16 %v1987, %v1980
      %v2135 = vpack.c.bf16 %v1988, %v1981
      %v2136 = vpack.c.bf16 %v1989, %v1982
      %v2137 = vpack.c.bf16 %v1990, %v1983
      %v2138 = vpack.c.bf16 %v1991, %v1984
      %v2139 = vpack.c.bf16 %v1992, %v1985
      %v2140 = vpack.c.bf16 %v1993, %v1986
      %v2141 = vpack.c.bf16 %v2001, %v1994
      %v2142 = vpack.c.bf16 %v2002, %v1995
      %v2143 = vpack.c.bf16 %v2003, %v1996
      %v2144 = vpack.c.bf16 %v2004, %v1997
      %v2145 = vpack.c.bf16 %v2005, %v1998
      %v2146 = vpack.c.bf16 %v2006, %v1999
      %v2147 = vpack.c.bf16 %v2007, %v2000
      %v2148 = vpack.c.bf16 %v2015, %v2008
      %v2149 = vpack.c.bf16 %v2016, %v2009
      %v2150 = vpack.c.bf16 %v2017, %v2010
      %v2151 = vpack.c.bf16 %v2018, %v2011
      %v2152 = vpack.c.bf16 %v2019, %v2012
      %v2153 = vpack.c.bf16 %v2020, %v2013
      %v2154 = vpack.c.bf16 %v2021, %v2014
      %v2155 = vpack.c.bf16 %v2029, %v2022
      %v2156 = vpack.c.bf16 %v2030, %v2023
      %v2157 = vpack.c.bf16 %v2031, %v2024
      %v2158 = vpack.c.bf16 %v2032, %v2025
      %v2159 = vpack.c.bf16 %v2033, %v2026
      %v2160 = vpack.c.bf16 %v2034, %v2027
      %v2161 = vpack.c.bf16 %v2035, %v2028
      %v2162 = vpack.c.bf16 %v2043, %v2036
      %v2163 = vpack.c.bf16 %v2044, %v2037
      %v2164 = vpack.c.bf16 %v2045, %v2038
      %v2165 = vpack.c.bf16 %v2046, %v2039
      %v2166 = vpack.c.bf16 %v2047, %v2040
      %v2167 = vpack.c.bf16 %v2048, %v2041
      %v2168 = vpack.c.bf16 %v2049, %v2042
      %v2169 = vpack.c.bf16 %v2057, %v2050
      %v2170 = vpack.c.bf16 %v2058, %v2051
      %v2171 = vpack.c.bf16 %v2059, %v2052
      %v2172 = vpack.c.bf16 %v2060, %v2053
      %v2173 = vpack.c.bf16 %v2061, %v2054
      %v2174 = vpack.c.bf16 %v2062, %v2055
      %v2175 = vpack.c.bf16 %v2063, %v2056
      %v2176 = vld [vmem:[%s5] sm:$0xf]
      %v2177 = vld [vmem:[%s5 + $0x4] sm:$0xf]
      %v2178 = vld [vmem:[%s5 + $0x8] sm:$0xf]
      %v2179 = vld [vmem:[%s5 + $0xc] sm:$0xf]
      %v2180 = vld [vmem:[%s5 + $0x10] sm:$0xf]
      %v2181 = vld [vmem:[%s5 + $0x14] sm:$0xf]
      %v2182 = vld [vmem:[%s5 + $0x18] sm:$0xf]
      %v2183 = vld [vmem:[%s5 + $0x1c] sm:$0xf]
      %v2184 = vld [vmem:[%s5 + $0x20] sm:$0xf]
      %v2185 = vld [vmem:[%s5 + $0x24] sm:$0xf]
      %v2186 = vld [vmem:[%s5 + $0x28] sm:$0xf]
      %v2187 = vld [vmem:[%s5 + $0x2c] sm:$0xf]
      %v2188 = vld [vmem:[%s5 + $0x30] sm:$0xf]
      %v2189 = vld [vmem:[%s5 + $0x34] sm:$0xf]
      %v2190 = vld [vmem:[%s5 + $0x38] sm:$0xf]
      %v2191 = vld [vmem:[%s5 + $0x3c] sm:$0xf]
      %v2192 = vld [vmem:[%s5 + $0x40] sm:$0xf]
      %v2193 = vld [vmem:[%s5 + $0x44] sm:$0xf]
      %v2194 = vld [vmem:[%s5 + $0x48] sm:$0xf]
      %v2195 = vld [vmem:[%s5 + $0x4c] sm:$0xf]
      %v2196 = vld [vmem:[%s5 + $0x50] sm:$0xf]
      %v2197 = vld [vmem:[%s5 + $0x54] sm:$0xf]
      %v2198 = vld [vmem:[%s5 + $0x58] sm:$0xf]
      %v2199 = vld [vmem:[%s5 + $0x5c] sm:$0xf]
      %v2200 = vld [vmem:[%s5 + $0x60] sm:$0xf]
      %v2201 = vld [vmem:[%s5 + $0x64] sm:$0xf]
      %v2202 = vld [vmem:[%s5 + $0x68] sm:$0xf]
      %v2203 = vld [vmem:[%s5 + $0x6c] sm:$0xf]
      %v2204 = vld [vmem:[%s5 + $0x70] sm:$0xf]
      %v2205 = vld [vmem:[%s5 + $0x74] sm:$0xf]
      %v2206 = vld [vmem:[%s5 + $0x78] sm:$0xf]
      %v2207 = vld [vmem:[%s5 + $0x7c] sm:$0xf]
      %v2208 = vld [vmem:[%s5 + $0x80] sm:$0xf]
      %v2209 = vld [vmem:[%s5 + $0x84] sm:$0xf]
      %v2210 = vld [vmem:[%s5 + $0x88] sm:$0xf]
      %v2211 = vld [vmem:[%s5 + $0x8c] sm:$0xf]
      %v2212 = vld [vmem:[%s5 + $0x90] sm:$0xf]
      %v2213 = vld [vmem:[%s5 + $0x94] sm:$0xf]
      %v2214 = vld [vmem:[%s5 + $0x98] sm:$0xf]
      %v2215 = vld [vmem:[%s5 + $0x9c] sm:$0xf]
      %v2216 = vld [vmem:[%s5 + $0xa0] sm:$0xf]
      %v2217 = vld [vmem:[%s5 + $0xa4] sm:$0xf]
      %v2218 = vld [vmem:[%s5 + $0xa8] sm:$0xf]
      %v2219 = vld [vmem:[%s5 + $0xac] sm:$0xf]
      %v2220 = vld [vmem:[%s5 + $0xb0] sm:$0xf]
      %v2221 = vld [vmem:[%s5 + $0xb4] sm:$0xf]
      %v2222 = vld [vmem:[%s5 + $0xb8] sm:$0xf]
      %v2223 = vld [vmem:[%s5 + $0xbc] sm:$0xf]
      %v2224 = vld [vmem:[%s5 + $0xc0] sm:$0xf]
      %v2225 = vld [vmem:[%s5 + $0xc4] sm:$0xf]
      %v2226 = vld [vmem:[%s5 + $0xc8] sm:$0xf]
      %v2227 = vld [vmem:[%s5 + $0xcc] sm:$0xf]
      %v2228 = vld [vmem:[%s5 + $0xd0] sm:$0xf]
      %v2229 = vld [vmem:[%s5 + $0xd4] sm:$0xf]
      %v2230 = vld [vmem:[%s5 + $0xd8] sm:$0xf]
      %v2231 = vld [vmem:[%s5 + $0xdc] sm:$0xf]
      %v2232 = vld [vmem:[%s5 + $0xe0] sm:$0xf]
      %v2233 = vld [vmem:[%s5 + $0xe4] sm:$0xf]
      %v2234 = vld [vmem:[%s5 + $0xe8] sm:$0xf]
      %v2235 = vld [vmem:[%s5 + $0xec] sm:$0xf]
      %v2236 = vld [vmem:[%s5 + $0xf0] sm:$0xf]
      %v2237 = vld [vmem:[%s5 + $0xf4] sm:$0xf]
      %v2238 = vld [vmem:[%s5 + $0xf8] sm:$0xf]
      %v2239 = vld [vmem:[%s5 + $0xfc] sm:$0xf]
      %v2240 = vld [vmem:[%s5 + $0x100] sm:$0xf]
      %v2241 = vld [vmem:[%s5 + $0x104] sm:$0xf]
      %v2242 = vld [vmem:[%s5 + $0x108] sm:$0xf]
      %v2243 = vld [vmem:[%s5 + $0x10c] sm:$0xf]
      %v2244 = vld [vmem:[%s5 + $0x110] sm:$0xf]
      %v2245 = vld [vmem:[%s5 + $0x114] sm:$0xf]
      %v2246 = vld [vmem:[%s5 + $0x118] sm:$0xf]
      %v2247 = vld [vmem:[%s5 + $0x11c] sm:$0xf]
      %v2248 = vld [vmem:[%s5 + $0x120] sm:$0xf]
      %v2249 = vld [vmem:[%s5 + $0x124] sm:$0xf]
      %v2250 = vld [vmem:[%s5 + $0x128] sm:$0xf]
      %v2251 = vld [vmem:[%s5 + $0x12c] sm:$0xf]
      %v2252 = vld [vmem:[%s5 + $0x130] sm:$0xf]
      %v2253 = vld [vmem:[%s5 + $0x134] sm:$0xf]
      %v2254 = vld [vmem:[%s5 + $0x138] sm:$0xf]
      %v2255 = vld [vmem:[%s5 + $0x13c] sm:$0xf]
      %v2256 = vld [vmem:[%s5 + $0x140] sm:$0xf]
      %v2257 = vld [vmem:[%s5 + $0x144] sm:$0xf]
      %v2258 = vld [vmem:[%s5 + $0x148] sm:$0xf]
      %v2259 = vld [vmem:[%s5 + $0x14c] sm:$0xf]
      %v2260 = vld [vmem:[%s5 + $0x150] sm:$0xf]
      %v2261 = vld [vmem:[%s5 + $0x154] sm:$0xf]
      %v2262 = vld [vmem:[%s5 + $0x158] sm:$0xf]
      %v2263 = vld [vmem:[%s5 + $0x15c] sm:$0xf]
      %v2264 = vld [vmem:[%s5 + $0x160] sm:$0xf]
      %v2265 = vld [vmem:[%s5 + $0x164] sm:$0xf]
      %v2266 = vld [vmem:[%s5 + $0x168] sm:$0xf]
      %v2267 = vld [vmem:[%s5 + $0x16c] sm:$0xf]
      %v2268 = vld [vmem:[%s5 + $0x170] sm:$0xf]
      %v2269 = vld [vmem:[%s5 + $0x174] sm:$0xf]
      %v2270 = vld [vmem:[%s5 + $0x178] sm:$0xf]
      %v2271 = vld [vmem:[%s5 + $0x17c] sm:$0xf]
      %v2272 = vld [vmem:[%s5 + $0x180] sm:$0xf]
      %v2273 = vld [vmem:[%s5 + $0x184] sm:$0xf]
      %v2274 = vld [vmem:[%s5 + $0x188] sm:$0xf]
      %v2275 = vld [vmem:[%s5 + $0x18c] sm:$0xf]
      %v2276 = vld [vmem:[%s5 + $0x190] sm:$0xf]
      %v2277 = vld [vmem:[%s5 + $0x194] sm:$0xf]
      %v2278 = vld [vmem:[%s5 + $0x198] sm:$0xf]
      %v2279 = vld [vmem:[%s5 + $0x19c] sm:$0xf]
      %v2280 = vld [vmem:[%s5 + $0x1a0] sm:$0xf]
      %v2281 = vld [vmem:[%s5 + $0x1a4] sm:$0xf]
      %v2282 = vld [vmem:[%s5 + $0x1a8] sm:$0xf]
      %v2283 = vld [vmem:[%s5 + $0x1ac] sm:$0xf]
      %v2284 = vld [vmem:[%s5 + $0x1b0] sm:$0xf]
      %v2285 = vld [vmem:[%s5 + $0x1b4] sm:$0xf]
      %v2286 = vld [vmem:[%s5 + $0x1b8] sm:$0xf]
      %v2287 = vld [vmem:[%s5 + $0x1bc] sm:$0xf]
      %v2288 = vld [vmem:[%s6] sm:$0x1]
      %v2290 = vlaneseq
      %v2291 = vshrl.u32 %v2290, 7
      %v2292 = vsub.s32 0, %v2291
      %v2293 = vrot.slane %v2288, %v2292
      %v2407 = vunpack.c.l.b16 %v2176
      %v2408 = vunpack.c.l.b16 %v2177
      %v2409 = vunpack.c.l.b16 %v2178
      %v2410 = vunpack.c.l.b16 %v2179
      %v2411 = vunpack.c.l.b16 %v2180
      %v2412 = vunpack.c.l.b16 %v2181
      %v2413 = vunpack.c.l.b16 %v2182
      %v2414 = vunpack.c.l.b16 %v2183
      %v2415 = vunpack.c.l.b16 %v2184
      %v2416 = vunpack.c.l.b16 %v2185
      %v2417 = vunpack.c.l.b16 %v2186
      %v2418 = vunpack.c.l.b16 %v2187
      %v2419 = vunpack.c.l.b16 %v2188
      %v2420 = vunpack.c.l.b16 %v2189
      %v2421 = vunpack.c.l.b16 %v2190
      %v2422 = vunpack.c.l.b16 %v2191
      %v2423 = vunpack.c.l.b16 %v2192
      %v2424 = vunpack.c.l.b16 %v2193
      %v2425 = vunpack.c.l.b16 %v2194
      %v2426 = vunpack.c.l.b16 %v2195
      %v2427 = vunpack.c.l.b16 %v2196
      %v2428 = vunpack.c.l.b16 %v2197
      %v2429 = vunpack.c.l.b16 %v2198
      %v2430 = vunpack.c.l.b16 %v2199
      %v2431 = vunpack.c.l.b16 %v2200
      %v2432 = vunpack.c.l.b16 %v2201
      %v2433 = vunpack.c.l.b16 %v2202
      %v2434 = vunpack.c.l.b16 %v2203
      %v2435 = vunpack.c.l.b16 %v2204
      %v2436 = vunpack.c.l.b16 %v2205
      %v2437 = vunpack.c.l.b16 %v2206
      %v2438 = vunpack.c.l.b16 %v2207
      %v2439 = vunpack.c.l.b16 %v2208
      %v2440 = vunpack.c.l.b16 %v2209
      %v2441 = vunpack.c.l.b16 %v2210
      %v2442 = vunpack.c.l.b16 %v2211
      %v2443 = vunpack.c.l.b16 %v2212
      %v2444 = vunpack.c.l.b16 %v2213
      %v2445 = vunpack.c.l.b16 %v2214
      %v2446 = vunpack.c.l.b16 %v2215
      %v2447 = vunpack.c.l.b16 %v2216
      %v2448 = vunpack.c.l.b16 %v2217
      %v2449 = vunpack.c.l.b16 %v2218
      %v2450 = vunpack.c.l.b16 %v2219
      %v2451 = vunpack.c.l.b16 %v2220
      %v2452 = vunpack.c.l.b16 %v2221
      %v2453 = vunpack.c.l.b16 %v2222
      %v2454 = vunpack.c.l.b16 %v2223
      %v2455 = vunpack.c.l.b16 %v2224
      %v2456 = vunpack.c.l.b16 %v2225
      %v2457 = vunpack.c.l.b16 %v2226
      %v2458 = vunpack.c.l.b16 %v2227
      %v2459 = vunpack.c.l.b16 %v2228
      %v2460 = vunpack.c.l.b16 %v2229
      %v2461 = vunpack.c.l.b16 %v2230
      %v2462 = vunpack.c.l.b16 %v2231
      %v2463 = vunpack.c.l.b16 %v2232
      %v2464 = vunpack.c.l.b16 %v2233
      %v2465 = vunpack.c.l.b16 %v2234
      %v2466 = vunpack.c.l.b16 %v2235
      %v2467 = vunpack.c.l.b16 %v2236
      %v2468 = vunpack.c.l.b16 %v2237
      %v2469 = vunpack.c.l.b16 %v2238
      %v2470 = vunpack.c.l.b16 %v2239
      %v2471 = vunpack.c.l.b16 %v2240
      %v2472 = vunpack.c.l.b16 %v2241
      %v2473 = vunpack.c.l.b16 %v2242
      %v2474 = vunpack.c.l.b16 %v2243
      %v2475 = vunpack.c.l.b16 %v2244
      %v2476 = vunpack.c.l.b16 %v2245
      %v2477 = vunpack.c.l.b16 %v2246
      %v2478 = vunpack.c.l.b16 %v2247
      %v2479 = vunpack.c.l.b16 %v2248
      %v2480 = vunpack.c.l.b16 %v2249
      %v2481 = vunpack.c.l.b16 %v2250
      %v2482 = vunpack.c.l.b16 %v2251
      %v2483 = vunpack.c.l.b16 %v2252
      %v2484 = vunpack.c.l.b16 %v2253
      %v2485 = vunpack.c.l.b16 %v2254
      %v2486 = vunpack.c.l.b16 %v2255
      %v2487 = vunpack.c.l.b16 %v2256
      %v2488 = vunpack.c.l.b16 %v2257
      %v2489 = vunpack.c.l.b16 %v2258
      %v2490 = vunpack.c.l.b16 %v2259
      %v2491 = vunpack.c.l.b16 %v2260
      %v2492 = vunpack.c.l.b16 %v2261
      %v2493 = vunpack.c.l.b16 %v2262
      %v2494 = vunpack.c.l.b16 %v2263
      %v2495 = vunpack.c.l.b16 %v2264
      %v2496 = vunpack.c.l.b16 %v2265
      %v2497 = vunpack.c.l.b16 %v2266
      %v2498 = vunpack.c.l.b16 %v2267
      %v2499 = vunpack.c.l.b16 %v2268
      %v2500 = vunpack.c.l.b16 %v2269
      %v2501 = vunpack.c.l.b16 %v2270
      %v2502 = vunpack.c.l.b16 %v2271
      %v2503 = vunpack.c.l.b16 %v2272
      %v2504 = vunpack.c.l.b16 %v2273
      %v2505 = vunpack.c.l.b16 %v2274
      %v2506 = vunpack.c.l.b16 %v2275
      %v2507 = vunpack.c.l.b16 %v2276
      %v2508 = vunpack.c.l.b16 %v2277
      %v2509 = vunpack.c.l.b16 %v2278
      %v2510 = vunpack.c.l.b16 %v2279
      %v2511 = vunpack.c.l.b16 %v2280
      %v2512 = vunpack.c.l.b16 %v2281
      %v2513 = vunpack.c.l.b16 %v2282
      %v2514 = vunpack.c.l.b16 %v2283
      %v2515 = vunpack.c.l.b16 %v2284
      %v2516 = vunpack.c.l.b16 %v2285
      %v2517 = vunpack.c.l.b16 %v2286
      %v2518 = vunpack.c.l.b16 %v2287
      %v2519 = vpack.c.b16 %v2408, %v2407
      %v2520 = vpack.c.b16 %v2410, %v2409
      %v2521 = vpack.c.b16 %v2412, %v2411
      %v2522 = vpack.c.b16 %v2414, %v2413
      %v2523 = vpack.c.b16 %v2416, %v2415
      %v2524 = vpack.c.b16 %v2418, %v2417
      %v2525 = vpack.c.b16 %v2420, %v2419
      %v2526 = vpack.c.b16 %v2422, %v2421
      %v2527 = vpack.c.b16 %v2424, %v2423
      %v2528 = vpack.c.b16 %v2426, %v2425
      %v2529 = vpack.c.b16 %v2428, %v2427
      %v2530 = vpack.c.b16 %v2430, %v2429
      %v2531 = vpack.c.b16 %v2432, %v2431
      %v2532 = vpack.c.b16 %v2434, %v2433
      %v2533 = vpack.c.b16 %v2436, %v2435
      %v2534 = vpack.c.b16 %v2438, %v2437
      %v2535 = vpack.c.b16 %v2440, %v2439
      %v2536 = vpack.c.b16 %v2442, %v2441
      %v2537 = vpack.c.b16 %v2444, %v2443
      %v2538 = vpack.c.b16 %v2446, %v2445
      %v2539 = vpack.c.b16 %v2448, %v2447
      %v2540 = vpack.c.b16 %v2450, %v2449
      %v2541 = vpack.c.b16 %v2452, %v2451
      %v2542 = vpack.c.b16 %v2454, %v2453
      %v2543 = vpack.c.b16 %v2456, %v2455
      %v2544 = vpack.c.b16 %v2458, %v2457
      %v2545 = vpack.c.b16 %v2460, %v2459
      %v2546 = vpack.c.b16 %v2462, %v2461
      %v2547 = vpack.c.b16 %v2464, %v2463
      %v2548 = vpack.c.b16 %v2466, %v2465
      %v2549 = vpack.c.b16 %v2468, %v2467
      %v2550 = vpack.c.b16 %v2470, %v2469
      %v2551 = vpack.c.b16 %v2472, %v2471
      %v2552 = vpack.c.b16 %v2474, %v2473
      %v2553 = vpack.c.b16 %v2476, %v2475
      %v2554 = vpack.c.b16 %v2478, %v2477
      %v2555 = vpack.c.b16 %v2480, %v2479
      %v2556 = vpack.c.b16 %v2482, %v2481
      %v2557 = vpack.c.b16 %v2484, %v2483
      %v2558 = vpack.c.b16 %v2486, %v2485
      %v2559 = vpack.c.b16 %v2488, %v2487
      %v2560 = vpack.c.b16 %v2490, %v2489
      %v2561 = vpack.c.b16 %v2492, %v2491
      %v2562 = vpack.c.b16 %v2494, %v2493
      %v2563 = vpack.c.b16 %v2496, %v2495
      %v2564 = vpack.c.b16 %v2498, %v2497
      %v2565 = vpack.c.b16 %v2500, %v2499
      %v2566 = vpack.c.b16 %v2502, %v2501
      %v2567 = vpack.c.b16 %v2504, %v2503
      %v2568 = vpack.c.b16 %v2506, %v2505
      %v2569 = vpack.c.b16 %v2508, %v2507
      %v2570 = vpack.c.b16 %v2510, %v2509
      %v2571 = vpack.c.b16 %v2512, %v2511
      %v2572 = vpack.c.b16 %v2514, %v2513
      %v2573 = vpack.c.b16 %v2516, %v2515
      %v2574 = vpack.c.b16 %v2518, %v2517
      %2631 = vmatprep.subr.bf16.mxu0 0
      %2632 = vmatpush1.bf16.msra.mxu0 %v2519
      %2633 = vmatprep.subr.bf16.mxu0 0
      %2634 = vmatpush1.bf16.msra.mxu0 %v2520
      %2635 = vmatprep.subr.bf16.mxu0 0
      %2636 = vmatpush1.bf16.msra.mxu0 %v2521
      %2637 = vmatprep.subr.bf16.mxu0 0
      %2638 = vmatpush1.bf16.msra.mxu0 %v2522
      %2639 = vmatprep.subr.bf16.mxu0 0
      %2640 = vmatpush1.bf16.msra.mxu0 %v2523
      %2641 = vmatprep.subr.bf16.mxu0 0
      %2642 = vmatpush1.bf16.msra.mxu0 %v2524
      %2643 = vmatprep.subr.bf16.mxu0 0
      %2644 = vmatpush1.bf16.msra.mxu0 %v2525
      %2645 = vmatprep.subr.bf16.mxu0 0
      %2646 = vmatpush1.bf16.msra.mxu0 %v2526
      %2647 = vmatprep.subr.bf16.mxu0 0
      %2648 = vmatpush1.bf16.msra.mxu0 %v2527
      %2649 = vmatprep.subr.bf16.mxu0 0
      %2650 = vmatpush1.bf16.msra.mxu0 %v2528
      %2651 = vmatprep.subr.bf16.mxu0 0
      %2652 = vmatpush1.bf16.msra.mxu0 %v2529
      %2653 = vmatprep.subr.bf16.mxu0 0
      %2654 = vmatpush1.bf16.msra.mxu0 %v2530
      %2655 = vmatprep.subr.bf16.mxu0 0
      %2656 = vmatpush1.bf16.msra.mxu0 %v2531
      %2657 = vmatprep.subr.bf16.mxu0 0
      %2658 = vmatpush1.bf16.msra.mxu0 %v2532
      %2659 = vmatprep.subr.bf16.mxu0 0
      %2660 = vmatpush1.bf16.msra.mxu0 %v2533
      %2661 = vmatprep.subr.bf16.mxu0 0
      %2662 = vmatpush1.bf16.msra.mxu0 %v2534
      %2663 = vmatprep.mubr.bf16.mxu0 %v2065
      %2664 = vmatmul.mubr.bf16.gmra.mrb[0].mxu0 %v2064
      %v2665 = vpop.f32.mrb[0].mxu0
      %v2666 = vadd.f32 %v2293, %v2665
      %v2667 = vpop.f32.mrb[0].mxu0
      %v2668 = vpop.f32.mrb[0].mxu0
      %v2669 = vadd.f32 %v2293, %v2668
      %v2670 = vpop.f32.mrb[0].mxu0
      %2671 = vmatprep.mubr.bf16.mxu0 %v2072
      %2672 = vmatmul.mubr.bf16.gmra.mrb[0].mxu0 %v2071
      %v2673 = vpop.f32.mrb[0].mxu0
      %v2674 = vadd.f32 %v2293, %v2673
      %v2675 = vpop.f32.mrb[0].mxu0
      %v2676 = vpop.f32.mrb[0].mxu0
      %v2677 = vadd.f32 %v2293, %v2676
      %v2678 = vpop.f32.mrb[0].mxu0
      %2679 = vmatprep.mubr.bf16.mxu0 %v2079
      %2680 = vmatmul.mubr.bf16.gmra.mrb[0].mxu0 %v2078
      %v2681 = vpop.f32.mrb[0].mxu0
      %v2682 = vadd.f32 %v2293, %v2681
      %v2683 = vpop.f32.mrb[0].mxu0
      %v2684 = vpop.f32.mrb[0].mxu0
      %v2685 = vadd.f32 %v2293, %v2684
      %v2686 = vpop.f32.mrb[0].mxu0
      %2687 = vmatprep.mubr.bf16.mxu0 %v2086
      %2688 = vmatmul.mubr.bf16.gmra.mrb[0].mxu0 %v2085
      %v2689 = vpop.f32.mrb[0].mxu0
      %v2690 = vadd.f32 %v2293, %v2689
      %v2691 = vpop.f32.mrb[0].mxu0
      %v2692 = vpop.f32.mrb[0].mxu0
      %v2693 = vadd.f32 %v2293, %v2692
      %v2694 = vpop.f32.mrb[0].mxu0
      %2695 = vmatprep.mubr.bf16.mxu0 %v2093
      %2696 = vmatmul.mubr.bf16.gmra.mrb[0].mxu0 %v2092
      %v2697 = vpop.f32.mrb[0].mxu0
      %v2698 = vadd.f32 %v2293, %v2697
      %v2699 = vpop.f32.mrb[0].mxu0
      %v2700 = vpop.f32.mrb[0].mxu0
      %v2701 = vadd.f32 %v2293, %v2700
      %v2702 = vpop.f32.mrb[0].mxu0
      %2703 = vmatprep.mubr.bf16.mxu0 %v2100
      %2704 = vmatmul.mubr.bf16.gmra.mrb[0].mxu0 %v2099
      %v2705 = vpop.f32.mrb[0].mxu0
      %v2706 = vadd.f32 %v2293, %v2705
      %v2707 = vpop.f32.mrb[0].mxu0
      %v2708 = vpop.f32.mrb[0].mxu0
      %v2709 = vadd.f32 %v2293, %v2708
      %v2710 = vpop.f32.mrb[0].mxu0
      %2711 = vmatprep.mubr.bf16.mxu0 %v2107
      %2712 = vmatmul.mubr.bf16.gmra.mrb[0].mxu0 %v2106
      %v2713 = vpop.f32.mrb[0].mxu0
      %v2714 = vadd.f32 %v2293, %v2713
      %v2715 = vpop.f32.mrb[0].mxu0
      %v2716 = vpop.f32.mrb[0].mxu0
      %v2717 = vadd.f32 %v2293, %v2716
      %v2718 = vpop.f32.mrb[0].mxu0
      %2719 = vmatprep.mubr.bf16.mxu0 %v2114
      %2720 = vmatmul.mubr.bf16.gmra.mrb[0].mxu0 %v2113
      %v2721 = vpop.f32.mrb[0].mxu0
      %v2722 = vadd.f32 %v2293, %v2721
      %v2723 = vpop.f32.mrb[0].mxu0
      %v2724 = vpop.f32.mrb[0].mxu0
      %v2725 = vadd.f32 %v2293, %v2724
      %v2726 = vpop.f32.mrb[0].mxu0
      %2727 = vmatprep.mubr.bf16.mxu0 %v2121
      %2728 = vmatmul.mubr.bf16.gmra.mrb[0].mxu0 %v2120
      %v2729 = vpop.f32.mrb[0].mxu0
      %v2730 = vadd.f32 %v2293, %v2729
      %v2731 = vpop.f32.mrb[0].mxu0
      %v2732 = vpop.f32.mrb[0].mxu0
      %v2733 = vadd.f32 %v2293, %v2732
      %v2734 = vpop.f32.mrb[0].mxu0
      %2735 = vmatprep.mubr.bf16.mxu0 %v2128
      %2736 = vmatmul.mubr.bf16.gmra.mrb[0].mxu0 %v2127
      %v2737 = vpop.f32.mrb[0].mxu0
      %v2738 = vadd.f32 %v2293, %v2737
      %v2739 = vpop.f32.mrb[0].mxu0
      %v2740 = vpop.f32.mrb[0].mxu0
      %v2741 = vadd.f32 %v2293, %v2740
      %v2742 = vpop.f32.mrb[0].mxu0
      %2743 = vmatprep.mubr.bf16.mxu0 %v2135
      %2744 = vmatmul.mubr.bf16.gmra.mrb[0].mxu0 %v2134
      %v2745 = vpop.f32.mrb[0].mxu0
      %v2746 = vadd.f32 %v2293, %v2745
      %v2747 = vpop.f32.mrb[0].mxu0
      %v2748 = vpop.f32.mrb[0].mxu0
      %v2749 = vadd.f32 %v2293, %v2748
      %v2750 = vpop.f32.mrb[0].mxu0
      %2751 = vmatprep.mubr.bf16.mxu0 %v2142
      %2752 = vmatmul.mubr.bf16.gmra.mrb[0].mxu0 %v2141
      %v2753 = vpop.f32.mrb[0].mxu0
      %v2754 = vadd.f32 %v2293, %v2753
      %v2755 = vpop.f32.mrb[0].mxu0
      %v2756 = vpop.f32.mrb[0].mxu0
      %v2757 = vadd.f32 %v2293, %v2756
      %v2758 = vpop.f32.mrb[0].mxu0
      %2759 = vmatprep.mubr.bf16.mxu0 %v2149
      %2760 = vmatmul.mubr.bf16.gmra.mrb[0].mxu0 %v2148
      %v2761 = vpop.f32.mrb[0].mxu0
      %v2762 = vadd.f32 %v2293, %v2761
      %v2763 = vpop.f32.mrb[0].mxu0
      %v2764 = vpop.f32.mrb[0].mxu0
      %v2765 = vadd.f32 %v2293, %v2764
      %v2766 = vpop.f32.mrb[0].mxu0
      %2767 = vmatprep.mubr.bf16.mxu0 %v2156
      %2768 = vmatmul.mubr.bf16.gmra.mrb[0].mxu0 %v2155
      %v2769 = vpop.f32.mrb[0].mxu0
      %v2770 = vadd.f32 %v2293, %v2769
      %v2771 = vpop.f32.mrb[0].mxu0
      %v2772 = vpop.f32.mrb[0].mxu0
      %v2773 = vadd.f32 %v2293, %v2772
      %v2774 = vpop.f32.mrb[0].mxu0
      %2775 = vmatprep.mubr.bf16.mxu0 %v2163
      %2776 = vmatmul.mubr.bf16.gmra.mrb[0].mxu0 %v2162
      %v2777 = vpop.f32.mrb[0].mxu0
      %v2778 = vadd.f32 %v2293, %v2777
      %v2779 = vpop.f32.mrb[0].mxu0
      %v2780 = vpop.f32.mrb[0].mxu0
      %v2781 = vadd.f32 %v2293, %v2780
      %v2782 = vpop.f32.mrb[0].mxu0
      %2783 = vmatprep.mubr.bf16.mxu0 %v2170
      %2784 = vmatmul.mubr.bf16.gmra.mrb[0].mxu0 %v2169
      %v2785 = vpop.f32.mrb[0].mxu0
      %v2786 = vadd.f32 %v2293, %v2785
      %v2787 = vpop.f32.mrb[0].mxu0
      %v2788 = vpop.f32.mrb[0].mxu0
      %v2789 = vadd.f32 %v2293, %v2788
      %v2790 = vpop.f32.mrb[0].mxu0
      %2791 = vdwg.mxu0
      %2792 = vmatprep.subr.bf16.mxu0 0
      %2793 = vmatpush1.bf16.msra.mxu0 %v2535
      %2794 = vmatprep.subr.bf16.mxu0 0
      %2795 = vmatpush1.bf16.msra.mxu0 %v2536
      %2796 = vmatprep.subr.bf16.mxu0 0
      %2797 = vmatpush1.bf16.msra.mxu0 %v2537
      %2798 = vmatprep.subr.bf16.mxu0 0
      %2799 = vmatpush1.bf16.msra.mxu0 %v2538
      %2800 = vmatprep.subr.bf16.mxu0 0
      %2801 = vmatpush1.bf16.msra.mxu0 %v2539
      %2802 = vmatprep.subr.bf16.mxu0 0
      %2803 = vmatpush1.bf16.msra.mxu0 %v2540
      %2804 = vmatprep.subr.bf16.mxu0 0
      %2805 = vmatpush1.bf16.msra.mxu0 %v2541
      %2806 = vmatprep.subr.bf16.mxu0 0
      %2807 = vmatpush1.bf16.msra.mxu0 %v2542
      %2808 = vmatprep.subr.bf16.mxu0 0
      %2809 = vmatpush1.bf16.msra.mxu0 %v2543
      %2810 = vmatprep.subr.bf16.mxu0 0
      %2811 = vmatpush1.bf16.msra.mxu0 %v2544
      %2812 = vmatprep.subr.bf16.mxu0 0
      %2813 = vmatpush1.bf16.msra.mxu0 %v2545
      %2814 = vmatprep.subr.bf16.mxu0 0
      %2815 = vmatpush1.bf16.msra.mxu0 %v2546
      %2816 = vmatprep.subr.bf16.mxu0 0
      %2817 = vmatpush1.bf16.msra.mxu0 %v2547
      %2818 = vmatprep.subr.bf16.mxu0 0
      %2819 = vmatpush1.bf16.msra.mxu0 %v2548
      %2820 = vmatprep.subr.bf16.mxu0 0
      %2821 = vmatpush1.bf16.msra.mxu0 %v2549
      %2822 = vmatprep.subr.bf16.mxu0 0
      %2823 = vmatpush1.bf16.msra.mxu0 %v2550
      %2824 = vmatprep.mubr.bf16.mxu0 %v2067
      %2825 = vmatmul.mubr.bf16.gmra.mrb[0].mxu0 %v2066
      %v2826 = vpop.f32.mrb[0].mxu0
      %v2827 = vadd.f32 %v2666, %v2826
      %v2828 = vpop.f32.mrb[0].mxu0
      %v2829 = vpop.f32.mrb[0].mxu0
      %v2830 = vadd.f32 %v2669, %v2829
      %v2831 = vpop.f32.mrb[0].mxu0
      %2832 = vmatprep.mubr.bf16.mxu0 %v2074
      %2833 = vmatmul.mubr.bf16.gmra.mrb[0].mxu0 %v2073
      %v2834 = vpop.f32.mrb[0].mxu0
      %v2835 = vadd.f32 %v2674, %v2834
      %v2836 = vpop.f32.mrb[0].mxu0
      %v2837 = vpop.f32.mrb[0].mxu0
      %v2838 = vadd.f32 %v2677, %v2837
      %v2839 = vpop.f32.mrb[0].mxu0
      %2840 = vmatprep.mubr.bf16.mxu0 %v2081
      %2841 = vmatmul.mubr.bf16.gmra.mrb[0].mxu0 %v2080
      %v2842 = vpop.f32.mrb[0].mxu0
      %v2843 = vadd.f32 %v2682, %v2842
      %v2844 = vpop.f32.mrb[0].mxu0
      %v2845 = vpop.f32.mrb[0].mxu0
      %v2846 = vadd.f32 %v2685, %v2845
      %v2847 = vpop.f32.mrb[0].mxu0
      %2848 = vmatprep.mubr.bf16.mxu0 %v2088
      %2849 = vmatmul.mubr.bf16.gmra.mrb[0].mxu0 %v2087
      %v2850 = vpop.f32.mrb[0].mxu0
      %v2851 = vadd.f32 %v2690, %v2850
      %v2852 = vpop.f32.mrb[0].mxu0
      %v2853 = vpop.f32.mrb[0].mxu0
      %v2854 = vadd.f32 %v2693, %v2853
      %v2855 = vpop.f32.mrb[0].mxu0
      %2856 = vmatprep.mubr.bf16.mxu0 %v2095
      %2857 = vmatmul.mubr.bf16.gmra.mrb[0].mxu0 %v2094
      %v2858 = vpop.f32.mrb[0].mxu0
      %v2859 = vadd.f32 %v2698, %v2858
      %v2860 = vpop.f32.mrb[0].mxu0
      %v2861 = vpop.f32.mrb[0].mxu0
      %v2862 = vadd.f32 %v2701, %v2861
      %v2863 = vpop.f32.mrb[0].mxu0
      %2864 = vmatprep.mubr.bf16.mxu0 %v2102
      %2865 = vmatmul.mubr.bf16.gmra.mrb[0].mxu0 %v2101
      %v2866 = vpop.f32.mrb[0].mxu0
      %v2867 = vadd.f32 %v2706, %v2866
      %v2868 = vpop.f32.mrb[0].mxu0
      %v2869 = vpop.f32.mrb[0].mxu0
      %v2870 = vadd.f32 %v2709, %v2869
      %v2871 = vpop.f32.mrb[0].mxu0
      %2872 = vmatprep.mubr.bf16.mxu0 %v2109
      %2873 = vmatmul.mubr.bf16.gmra.mrb[0].mxu0 %v2108
      %v2874 = vpop.f32.mrb[0].mxu0
      %v2875 = vadd.f32 %v2714, %v2874
      %v2876 = vpop.f32.mrb[0].mxu0
      %v2877 = vpop.f32.mrb[0].mxu0
      %v2878 = vadd.f32 %v2717, %v2877
      %v2879 = vpop.f32.mrb[0].mxu0
      %2880 = vmatprep.mubr.bf16.mxu0 %v2116
      %2881 = vmatmul.mubr.bf16.gmra.mrb[0].mxu0 %v2115
      %v2882 = vpop.f32.mrb[0].mxu0
      %v2883 = vadd.f32 %v2722, %v2882
      %v2884 = vpop.f32.mrb[0].mxu0
      %v2885 = vpop.f32.mrb[0].mxu0
      %v2886 = vadd.f32 %v2725, %v2885
      %v2887 = vpop.f32.mrb[0].mxu0
      %2888 = vmatprep.mubr.bf16.mxu0 %v2123
      %2889 = vmatmul.mubr.bf16.gmra.mrb[0].mxu0 %v2122
      %v2890 = vpop.f32.mrb[0].mxu0
      %v2891 = vadd.f32 %v2730, %v2890
      %v2892 = vpop.f32.mrb[0].mxu0
      %v2893 = vpop.f32.mrb[0].mxu0
      %v2894 = vadd.f32 %v2733, %v2893
      %v2895 = vpop.f32.mrb[0].mxu0
      %2896 = vmatprep.mubr.bf16.mxu0 %v2130
      %2897 = vmatmul.mubr.bf16.gmra.mrb[0].mxu0 %v2129
      %v2898 = vpop.f32.mrb[0].mxu0
      %v2899 = vadd.f32 %v2738, %v2898
      %v2900 = vpop.f32.mrb[0].mxu0
      %v2901 = vpop.f32.mrb[0].mxu0
      %v2902 = vadd.f32 %v2741, %v2901
      %v2903 = vpop.f32.mrb[0].mxu0
      %2904 = vmatprep.mubr.bf16.mxu0 %v2137
      %2905 = vmatmul.mubr.bf16.gmra.mrb[0].mxu0 %v2136
      %v2906 = vpop.f32.mrb[0].mxu0
      %v2907 = vadd.f32 %v2746, %v2906
      %v2908 = vpop.f32.mrb[0].mxu0
      %v2909 = vpop.f32.mrb[0].mxu0
      %v2910 = vadd.f32 %v2749, %v2909
      %v2911 = vpop.f32.mrb[0].mxu0
      %2912 = vmatprep.mubr.bf16.mxu0 %v2144
      %2913 = vmatmul.mubr.bf16.gmra.mrb[0].mxu0 %v2143
      %v2914 = vpop.f32.mrb[0].mxu0
      %v2915 = vadd.f32 %v2754, %v2914
      %v2916 = vpop.f32.mrb[0].mxu0
      %v2917 = vpop.f32.mrb[0].mxu0
      %v2918 = vadd.f32 %v2757, %v2917
      %v2919 = vpop.f32.mrb[0].mxu0
      %2920 = vmatprep.mubr.bf16.mxu0 %v2151
      %2921 = vmatmul.mubr.bf16.gmra.mrb[0].mxu0 %v2150
      %v2922 = vpop.f32.mrb[0].mxu0
      %v2923 = vadd.f32 %v2762, %v2922
      %v2924 = vpop.f32.mrb[0].mxu0
      %v2925 = vpop.f32.mrb[0].mxu0
      %v2926 = vadd.f32 %v2765, %v2925
      %v2927 = vpop.f32.mrb[0].mxu0
      %2928 = vmatprep.mubr.bf16.mxu0 %v2158
      %2929 = vmatmul.mubr.bf16.gmra.mrb[0].mxu0 %v2157
      %v2930 = vpop.f32.mrb[0].mxu0
      %v2931 = vadd.f32 %v2770, %v2930
      %v2932 = vpop.f32.mrb[0].mxu0
      %v2933 = vpop.f32.mrb[0].mxu0
      %v2934 = vadd.f32 %v2773, %v2933
      %v2935 = vpop.f32.mrb[0].mxu0
      %2936 = vmatprep.mubr.bf16.mxu0 %v2165
      %2937 = vmatmul.mubr.bf16.gmra.mrb[0].mxu0 %v2164
      %v2938 = vpop.f32.mrb[0].mxu0
      %v2939 = vadd.f32 %v2778, %v2938
      %v2940 = vpop.f32.mrb[0].mxu0
      %v2941 = vpop.f32.mrb[0].mxu0
      %v2942 = vadd.f32 %v2781, %v2941
      %v2943 = vpop.f32.mrb[0].mxu0
      %2944 = vmatprep.mubr.bf16.mxu0 %v2172
      %2945 = vmatmul.mubr.bf16.gmra.mrb[0].mxu0 %v2171
      %v2946 = vpop.f32.mrb[0].mxu0
      %v2947 = vadd.f32 %v2786, %v2946
      %v2948 = vpop.f32.mrb[0].mxu0
      %v2949 = vpop.f32.mrb[0].mxu0
      %v2950 = vadd.f32 %v2789, %v2949
      %v2951 = vpop.f32.mrb[0].mxu0
      %2952 = vdwg.mxu0
      %2953 = vmatprep.subr.bf16.mxu0 0
      %2954 = vmatpush1.bf16.msra.mxu0 %v2551
      %2955 = vmatprep.subr.bf16.mxu0 0
      %2956 = vmatpush1.bf16.msra.mxu0 %v2552
      %2957 = vmatprep.subr.bf16.mxu0 0
      %2958 = vmatpush1.bf16.msra.mxu0 %v2553
      %2959 = vmatprep.subr.bf16.mxu0 0
      %2960 = vmatpush1.bf16.msra.mxu0 %v2554
      %2961 = vmatprep.subr.bf16.mxu0 0
      %2962 = vmatpush1.bf16.msra.mxu0 %v2555
      %2963 = vmatprep.subr.bf16.mxu0 0
      %2964 = vmatpush1.bf16.msra.mxu0 %v2556
      %2965 = vmatprep.subr.bf16.mxu0 0
      %2966 = vmatpush1.bf16.msra.mxu0 %v2557
      %2967 = vmatprep.subr.bf16.mxu0 0
      %2968 = vmatpush1.bf16.msra.mxu0 %v2558
      %2969 = vmatprep.subr.bf16.mxu0 0
      %2970 = vmatpush1.bf16.msra.mxu0 %v2559
      %2971 = vmatprep.subr.bf16.mxu0 0
      %2972 = vmatpush1.bf16.msra.mxu0 %v2560
      %2973 = vmatprep.subr.bf16.mxu0 0
      %2974 = vmatpush1.bf16.msra.mxu0 %v2561
      %2975 = vmatprep.subr.bf16.mxu0 0
      %2976 = vmatpush1.bf16.msra.mxu0 %v2562
      %2977 = vmatprep.subr.bf16.mxu0 0
      %2978 = vmatpush1.bf16.msra.mxu0 %v2563
      %2979 = vmatprep.subr.bf16.mxu0 0
      %2980 = vmatpush1.bf16.msra.mxu0 %v2564
      %2981 = vmatprep.subr.bf16.mxu0 0
      %2982 = vmatpush1.bf16.msra.mxu0 %v2565
      %2983 = vmatprep.subr.bf16.mxu0 0
      %2984 = vmatpush1.bf16.msra.mxu0 %v2566
      %2985 = vmatprep.mubr.bf16.mxu0 %v2069
      %2986 = vmatmul.mubr.bf16.gmra.mrb[0].mxu0 %v2068
      %v2987 = vpop.f32.mrb[0].mxu0
      %v2988 = vadd.f32 %v2827, %v2987
      %v2989 = vpop.f32.mrb[0].mxu0
      %v2990 = vpop.f32.mrb[0].mxu0
      %v2991 = vadd.f32 %v2830, %v2990
      %v2992 = vpop.f32.mrb[0].mxu0
      %2993 = vmatprep.mubr.bf16.mxu0 %v2076
      %2994 = vmatmul.mubr.bf16.gmra.mrb[0].mxu0 %v2075
      %v2995 = vpop.f32.mrb[0].mxu0
      %v2996 = vadd.f32 %v2835, %v2995
      %v2997 = vpop.f32.mrb[0].mxu0
      %v2998 = vpop.f32.mrb[0].mxu0
      %v2999 = vadd.f32 %v2838, %v2998
      %v3000 = vpop.f32.mrb[0].mxu0
      %3001 = vmatprep.mubr.bf16.mxu0 %v2083
      %3002 = vmatmul.mubr.bf16.gmra.mrb[0].mxu0 %v2082
      %v3003 = vpop.f32.mrb[0].mxu0
      %v3004 = vadd.f32 %v2843, %v3003
      %v3005 = vpop.f32.mrb[0].mxu0
      %v3006 = vpop.f32.mrb[0].mxu0
      %v3007 = vadd.f32 %v2846, %v3006
      %v3008 = vpop.f32.mrb[0].mxu0
      %3009 = vmatprep.mubr.bf16.mxu0 %v2090
      %3010 = vmatmul.mubr.bf16.gmra.mrb[0].mxu0 %v2089
      %v3011 = vpop.f32.mrb[0].mxu0
      %v3012 = vadd.f32 %v2851, %v3011
      %v3013 = vpop.f32.mrb[0].mxu0
      %v3014 = vpop.f32.mrb[0].mxu0
      %v3015 = vadd.f32 %v2854, %v3014
      %v3016 = vpop.f32.mrb[0].mxu0
      %3017 = vmatprep.mubr.bf16.mxu0 %v2097
      %3018 = vmatmul.mubr.bf16.gmra.mrb[0].mxu0 %v2096
      %v3019 = vpop.f32.mrb[0].mxu0
      %v3020 = vadd.f32 %v2859, %v3019
      %v3021 = vpop.f32.mrb[0].mxu0
      %v3022 = vpop.f32.mrb[0].mxu0
      %v3023 = vadd.f32 %v2862, %v3022
      %v3024 = vpop.f32.mrb[0].mxu0
      %3025 = vmatprep.mubr.bf16.mxu0 %v2104
      %3026 = vmatmul.mubr.bf16.gmra.mrb[0].mxu0 %v2103
      %v3027 = vpop.f32.mrb[0].mxu0
      %v3028 = vadd.f32 %v2867, %v3027
      %v3029 = vpop.f32.mrb[0].mxu0
      %v3030 = vpop.f32.mrb[0].mxu0
      %v3031 = vadd.f32 %v2870, %v3030
      %v3032 = vpop.f32.mrb[0].mxu0
      %3033 = vmatprep.mubr.bf16.mxu0 %v2111
      %3034 = vmatmul.mubr.bf16.gmra.mrb[0].mxu0 %v2110
      %v3035 = vpop.f32.mrb[0].mxu0
      %v3036 = vadd.f32 %v2875, %v3035
      %v3037 = vpop.f32.mrb[0].mxu0
      %v3038 = vpop.f32.mrb[0].mxu0
      %v3039 = vadd.f32 %v2878, %v3038
      %v3040 = vpop.f32.mrb[0].mxu0
      %3041 = vmatprep.mubr.bf16.mxu0 %v2118
      %3042 = vmatmul.mubr.bf16.gmra.mrb[0].mxu0 %v2117
      %v3043 = vpop.f32.mrb[0].mxu0
      %v3044 = vadd.f32 %v2883, %v3043
      %v3045 = vpop.f32.mrb[0].mxu0
      %v3046 = vpop.f32.mrb[0].mxu0
      %v3047 = vadd.f32 %v2886, %v3046
      %v3048 = vpop.f32.mrb[0].mxu0
      %3049 = vmatprep.mubr.bf16.mxu0 %v2125
      %3050 = vmatmul.mubr.bf16.gmra.mrb[0].mxu0 %v2124
      %v3051 = vpop.f32.mrb[0].mxu0
      %v3052 = vadd.f32 %v2891, %v3051
      %v3053 = vpop.f32.mrb[0].mxu0
      %v3054 = vpop.f32.mrb[0].mxu0
      %v3055 = vadd.f32 %v2894, %v3054
      %v3056 = vpop.f32.mrb[0].mxu0
      %3057 = vmatprep.mubr.bf16.mxu0 %v2132
      %3058 = vmatmul.mubr.bf16.gmra.mrb[0].mxu0 %v2131
      %v3059 = vpop.f32.mrb[0].mxu0
      %v3060 = vadd.f32 %v2899, %v3059
      %v3061 = vpop.f32.mrb[0].mxu0
      %v3062 = vpop.f32.mrb[0].mxu0
      %v3063 = vadd.f32 %v2902, %v3062
      %v3064 = vpop.f32.mrb[0].mxu0
      %3065 = vmatprep.mubr.bf16.mxu0 %v2139
      %3066 = vmatmul.mubr.bf16.gmra.mrb[0].mxu0 %v2138
      %v3067 = vpop.f32.mrb[0].mxu0
      %v3068 = vadd.f32 %v2907, %v3067
      %v3069 = vpop.f32.mrb[0].mxu0
      %v3070 = vpop.f32.mrb[0].mxu0
      %v3071 = vadd.f32 %v2910, %v3070
      %v3072 = vpop.f32.mrb[0].mxu0
      %3073 = vmatprep.mubr.bf16.mxu0 %v2146
      %3074 = vmatmul.mubr.bf16.gmra.mrb[0].mxu0 %v2145
      %v3075 = vpop.f32.mrb[0].mxu0
      %v3076 = vadd.f32 %v2915, %v3075
      %v3077 = vpop.f32.mrb[0].mxu0
      %v3078 = vpop.f32.mrb[0].mxu0
      %v3079 = vadd.f32 %v2918, %v3078
      %v3080 = vpop.f32.mrb[0].mxu0
      %3081 = vmatprep.mubr.bf16.mxu0 %v2153
      %3082 = vmatmul.mubr.bf16.gmra.mrb[0].mxu0 %v2152
      %v3083 = vpop.f32.mrb[0].mxu0
      %v3084 = vadd.f32 %v2923, %v3083
      %v3085 = vpop.f32.mrb[0].mxu0
      %v3086 = vpop.f32.mrb[0].mxu0
      %v3087 = vadd.f32 %v2926, %v3086
      %v3088 = vpop.f32.mrb[0].mxu0
      %3089 = vmatprep.mubr.bf16.mxu0 %v2160
      %3090 = vmatmul.mubr.bf16.gmra.mrb[0].mxu0 %v2159
      %v3091 = vpop.f32.mrb[0].mxu0
      %v3092 = vadd.f32 %v2931, %v3091
      %v3093 = vpop.f32.mrb[0].mxu0
      %v3094 = vpop.f32.mrb[0].mxu0
      %v3095 = vadd.f32 %v2934, %v3094
      %v3096 = vpop.f32.mrb[0].mxu0
      %3097 = vmatprep.mubr.bf16.mxu0 %v2167
      %3098 = vmatmul.mubr.bf16.gmra.mrb[0].mxu0 %v2166
      %v3099 = vpop.f32.mrb[0].mxu0
      %v3100 = vadd.f32 %v2939, %v3099
      %v3101 = vpop.f32.mrb[0].mxu0
      %v3102 = vpop.f32.mrb[0].mxu0
      %v3103 = vadd.f32 %v2942, %v3102
      %v3104 = vpop.f32.mrb[0].mxu0
      %3105 = vmatprep.mubr.bf16.mxu0 %v2174
      %3106 = vmatmul.mubr.bf16.gmra.mrb[0].mxu0 %v2173
      %v3107 = vpop.f32.mrb[0].mxu0
      %v3108 = vadd.f32 %v2947, %v3107
      %v3109 = vpop.f32.mrb[0].mxu0
      %v3110 = vpop.f32.mrb[0].mxu0
      %v3111 = vadd.f32 %v2950, %v3110
      %v3112 = vpop.f32.mrb[0].mxu0
      %3113 = vdwg.mxu0
      %3114 = vmatprep.subr.bf16.mxu0 0
      %3115 = vmatpush1.bf16.msra.mxu0 %v2567
      %3116 = vmatprep.subr.bf16.mxu0 0
      %3117 = vmatpush1.bf16.msra.mxu0 %v2568
      %3118 = vmatprep.subr.bf16.mxu0 0
      %3119 = vmatpush1.bf16.msra.mxu0 %v2569
      %3120 = vmatprep.subr.bf16.mxu0 0
      %3121 = vmatpush1.bf16.msra.mxu0 %v2570
      %3122 = vmatprep.subr.bf16.mxu0 0
      %3123 = vmatpush1.bf16.msra.mxu0 %v2571
      %3124 = vmatprep.subr.bf16.mxu0 0
      %3125 = vmatpush1.bf16.msra.mxu0 %v2572
      %3126 = vmatprep.subr.bf16.mxu0 0
      %3127 = vmatpush1.bf16.msra.mxu0 %v2573
      %3128 = vmatprep.subr.bf16.mxu0 0
      %3129 = vmatpush1.bf16.msra.mxu0 %v2574
      %3130 = vmatprep.subr.bf16.mxu0 0
      %3131 = vmatpush1.bf16.msra.mxu0 0
      %3132 = vmatprep.subr.bf16.mxu0 0
      %3133 = vmatpush1.bf16.msra.mxu0 0
      %3134 = vmatprep.subr.bf16.mxu0 0
      %3135 = vmatpush1.bf16.msra.mxu0 0
      %3136 = vmatprep.subr.bf16.mxu0 0
      %3137 = vmatpush1.bf16.msra.mxu0 0
      %3138 = vmatprep.subr.bf16.mxu0 0
      %3139 = vmatpush1.bf16.msra.mxu0 0
      %3140 = vmatprep.subr.bf16.mxu0 0
      %3141 = vmatpush1.bf16.msra.mxu0 0
      %3142 = vmatprep.subr.bf16.mxu0 0
      %3143 = vmatpush1.bf16.msra.mxu0 0
      %3144 = vmatprep.subr.bf16.mxu0 0
      %3145 = vmatpush1.bf16.msra.mxu0 0
      %3146 = vmatprep.mubr.bf16.mxu0 0
      %3147 = vmatmul.mubr.bf16.gmra.mrb[0].mxu0 %v2070
      %v3148 = vpop.f32.mrb[0].mxu0
      %v3149 = vadd.f32 %v2988, %v3148
      %v3150 = vpop.f32.mrb[0].mxu0
      %v3151 = vpop.f32.mrb[0].mxu0
      %v3152 = vadd.f32 %v2991, %v3151
      %v3153 = vpop.f32.mrb[0].mxu0
      %3154 = vmatprep.mubr.bf16.mxu0 0
      %3155 = vmatmul.mubr.bf16.gmra.mrb[0].mxu0 %v2077
      %v3156 = vpop.f32.mrb[0].mxu0
      %v3157 = vadd.f32 %v2996, %v3156
      %v3158 = vpop.f32.mrb[0].mxu0
      %v3159 = vpop.f32.mrb[0].mxu0
      %v3160 = vadd.f32 %v2999, %v3159
      %v3161 = vpop.f32.mrb[0].mxu0
      %3162 = vmatprep.mubr.bf16.mxu0 0
      %3163 = vmatmul.mubr.bf16.gmra.mrb[0].mxu0 %v2084
      %v3164 = vpop.f32.mrb[0].mxu0
      %v3165 = vadd.f32 %v3004, %v3164
      %v3166 = vpop.f32.mrb[0].mxu0
      %v3167 = vpop.f32.mrb[0].mxu0
      %v3168 = vadd.f32 %v3007, %v3167
      %v3169 = vpop.f32.mrb[0].mxu0
      %3170 = vmatprep.mubr.bf16.mxu0 0
      %3171 = vmatmul.mubr.bf16.gmra.mrb[0].mxu0 %v2091
      %v3172 = vpop.f32.mrb[0].mxu0
      %v3173 = vadd.f32 %v3012, %v3172
      %v3174 = vpop.f32.mrb[0].mxu0
      %v3175 = vpop.f32.mrb[0].mxu0
      %v3176 = vadd.f32 %v3015, %v3175
      %v3177 = vpop.f32.mrb[0].mxu0
      %3178 = vmatprep.mubr.bf16.mxu0 0
      %3179 = vmatmul.mubr.bf16.gmra.mrb[0].mxu0 %v2098
      %v3180 = vpop.f32.mrb[0].mxu0
      %v3181 = vadd.f32 %v3020, %v3180
      %v3182 = vpop.f32.mrb[0].mxu0
      %v3183 = vpop.f32.mrb[0].mxu0
      %v3184 = vadd.f32 %v3023, %v3183
      %v3185 = vpop.f32.mrb[0].mxu0
      %3186 = vmatprep.mubr.bf16.mxu0 0
      %3187 = vmatmul.mubr.bf16.gmra.mrb[0].mxu0 %v2105
      %v3188 = vpop.f32.mrb[0].mxu0
      %v3189 = vadd.f32 %v3028, %v3188
      %v3190 = vpop.f32.mrb[0].mxu0
      %v3191 = vpop.f32.mrb[0].mxu0
      %v3192 = vadd.f32 %v3031, %v3191
      %v3193 = vpop.f32.mrb[0].mxu0
      %3194 = vmatprep.mubr.bf16.mxu0 0
      %3195 = vmatmul.mubr.bf16.gmra.mrb[0].mxu0 %v2112
      %v3196 = vpop.f32.mrb[0].mxu0
      %v3197 = vadd.f32 %v3036, %v3196
      %v3198 = vpop.f32.mrb[0].mxu0
      %v3199 = vpop.f32.mrb[0].mxu0
      %v3200 = vadd.f32 %v3039, %v3199
      %v3201 = vpop.f32.mrb[0].mxu0
      %3202 = vmatprep.mubr.bf16.mxu0 0
      %3203 = vmatmul.mubr.bf16.gmra.mrb[0].mxu0 %v2119
      %v3204 = vpop.f32.mrb[0].mxu0
      %v3205 = vadd.f32 %v3044, %v3204
      %v3206 = vpop.f32.mrb[0].mxu0
      %v3207 = vpop.f32.mrb[0].mxu0
      %v3208 = vadd.f32 %v3047, %v3207
      %v3209 = vpop.f32.mrb[0].mxu0
      %3210 = vmatprep.mubr.bf16.mxu0 0
      %3211 = vmatmul.mubr.bf16.gmra.mrb[0].mxu0 %v2126
      %v3212 = vpop.f32.mrb[0].mxu0
      %v3213 = vadd.f32 %v3052, %v3212
      %v3214 = vpop.f32.mrb[0].mxu0
      %v3215 = vpop.f32.mrb[0].mxu0
      %v3216 = vadd.f32 %v3055, %v3215
      %v3217 = vpop.f32.mrb[0].mxu0
      %3218 = vmatprep.mubr.bf16.mxu0 0
      %3219 = vmatmul.mubr.bf16.gmra.mrb[0].mxu0 %v2133
      %v3220 = vpop.f32.mrb[0].mxu0
      %v3221 = vadd.f32 %v3060, %v3220
      %v3222 = vpop.f32.mrb[0].mxu0
      %v3223 = vpop.f32.mrb[0].mxu0
      %v3224 = vadd.f32 %v3063, %v3223
      %v3225 = vpop.f32.mrb[0].mxu0
      %3226 = vmatprep.mubr.bf16.mxu0 0
      %3227 = vmatmul.mubr.bf16.gmra.mrb[0].mxu0 %v2140
      %v3228 = vpop.f32.mrb[0].mxu0
      %v3229 = vadd.f32 %v3068, %v3228
      %v3230 = vpop.f32.mrb[0].mxu0
      %v3231 = vpop.f32.mrb[0].mxu0
      %v3232 = vadd.f32 %v3071, %v3231
      %v3233 = vpop.f32.mrb[0].mxu0
      %3234 = vmatprep.mubr.bf16.mxu0 0
      %3235 = vmatmul.mubr.bf16.gmra.mrb[0].mxu0 %v2147
      %v3236 = vpop.f32.mrb[0].mxu0
      %v3237 = vadd.f32 %v3076, %v3236
      %v3238 = vpop.f32.mrb[0].mxu0
      %v3239 = vpop.f32.mrb[0].mxu0
      %v3240 = vadd.f32 %v3079, %v3239
      %v3241 = vpop.f32.mrb[0].mxu0
      %3242 = vmatprep.mubr.bf16.mxu0 0
      %3243 = vmatmul.mubr.bf16.gmra.mrb[0].mxu0 %v2154
      %v3244 = vpop.f32.mrb[0].mxu0
      %v3245 = vadd.f32 %v3084, %v3244
      %v3246 = vpop.f32.mrb[0].mxu0
      %v3247 = vpop.f32.mrb[0].mxu0
      %v3248 = vadd.f32 %v3087, %v3247
      %v3249 = vpop.f32.mrb[0].mxu0
      %3250 = vmatprep.mubr.bf16.mxu0 0
      %3251 = vmatmul.mubr.bf16.gmra.mrb[0].mxu0 %v2161
      %v3252 = vpop.f32.mrb[0].mxu0
      %v3253 = vadd.f32 %v3092, %v3252
      %v3254 = vpop.f32.mrb[0].mxu0
      %v3255 = vpop.f32.mrb[0].mxu0
      %v3256 = vadd.f32 %v3095, %v3255
      %v3257 = vpop.f32.mrb[0].mxu0
      %3258 = vmatprep.mubr.bf16.mxu0 0
      %3259 = vmatmul.mubr.bf16.gmra.mrb[0].mxu0 %v2168
      %v3260 = vpop.f32.mrb[0].mxu0
      %v3261 = vadd.f32 %v3100, %v3260
      %v3262 = vpop.f32.mrb[0].mxu0
      %v3263 = vpop.f32.mrb[0].mxu0
      %v3264 = vadd.f32 %v3103, %v3263
      %v3265 = vpop.f32.mrb[0].mxu0
      %3266 = vmatprep.mubr.bf16.mxu0 0
      %3267 = vmatmul.mubr.bf16.gmra.mrb[0].mxu0 %v2175
      %v3268 = vpop.f32.mrb[0].mxu0
      %v3269 = vadd.f32 %v3108, %v3268
      %v3270 = vpop.f32.mrb[0].mxu0
      %v3271 = vpop.f32.mrb[0].mxu0
      %v3272 = vadd.f32 %v3111, %v3271
      %v3273 = vpop.f32.mrb[0].mxu0
      %3274 = vdwg.mxu0
      %vm3275 = vcmp.gt.f32.partialorder %v3149, 0.0
      %vm3276 = vcmp.gt.f32.partialorder %v3152, 0.0
      %vm3277 = vcmp.gt.f32.partialorder %v3157, 0.0
      %vm3278 = vcmp.gt.f32.partialorder %v3160, 0.0
      %vm3279 = vcmp.gt.f32.partialorder %v3165, 0.0
      %vm3280 = vcmp.gt.f32.partialorder %v3168, 0.0
      %vm3281 = vcmp.gt.f32.partialorder %v3173, 0.0
      %vm3282 = vcmp.gt.f32.partialorder %v3176, 0.0
      %vm3283 = vcmp.gt.f32.partialorder %v3181, 0.0
      %vm3284 = vcmp.gt.f32.partialorder %v3184, 0.0
      %vm3285 = vcmp.gt.f32.partialorder %v3189, 0.0
      %vm3286 = vcmp.gt.f32.partialorder %v3192, 0.0
      %vm3287 = vcmp.gt.f32.partialorder %v3197, 0.0
      %vm3288 = vcmp.gt.f32.partialorder %v3200, 0.0
      %vm3289 = vcmp.gt.f32.partialorder %v3205, 0.0
      %vm3290 = vcmp.gt.f32.partialorder %v3208, 0.0
      %vm3291 = vcmp.gt.f32.partialorder %v3213, 0.0
      %vm3292 = vcmp.gt.f32.partialorder %v3216, 0.0
      %vm3293 = vcmp.gt.f32.partialorder %v3221, 0.0
      %vm3294 = vcmp.gt.f32.partialorder %v3224, 0.0
      %vm3295 = vcmp.gt.f32.partialorder %v3229, 0.0
      %vm3296 = vcmp.gt.f32.partialorder %v3232, 0.0
      %vm3297 = vcmp.gt.f32.partialorder %v3237, 0.0
      %vm3298 = vcmp.gt.f32.partialorder %v3240, 0.0
      %vm3299 = vcmp.gt.f32.partialorder %v3245, 0.0
      %vm3300 = vcmp.gt.f32.partialorder %v3248, 0.0
      %vm3301 = vcmp.gt.f32.partialorder %v3253, 0.0
      %vm3302 = vcmp.gt.f32.partialorder %v3256, 0.0
      %vm3303 = vcmp.gt.f32.partialorder %v3261, 0.0
      %vm3304 = vcmp.gt.f32.partialorder %v3264, 0.0
      %vm3305 = vcmp.gt.f32.partialorder %v3269, 0.0
      %vm3306 = vcmp.gt.f32.partialorder %v3272, 0.0
      %v3307 = vmul.f32 %v3149, 0.2
      %v3308 = vmul.f32 %v3152, 0.2
      %v3309 = vmul.f32 %v3157, 0.2
      %v3310 = vmul.f32 %v3160, 0.2
      %v3311 = vmul.f32 %v3165, 0.2
      %v3312 = vmul.f32 %v3168, 0.2
      %v3313 = vmul.f32 %v3173, 0.2
      %v3314 = vmul.f32 %v3176, 0.2
      %v3315 = vmul.f32 %v3181, 0.2
      %v3316 = vmul.f32 %v3184, 0.2
      %v3317 = vmul.f32 %v3189, 0.2
      %v3318 = vmul.f32 %v3192, 0.2
      %v3319 = vmul.f32 %v3197, 0.2
      %v3320 = vmul.f32 %v3200, 0.2
      %v3321 = vmul.f32 %v3205, 0.2
      %v3322 = vmul.f32 %v3208, 0.2
      %v3323 = vmul.f32 %v3213, 0.2
      %v3324 = vmul.f32 %v3216, 0.2
      %v3325 = vmul.f32 %v3221, 0.2
      %v3326 = vmul.f32 %v3224, 0.2
      %v3327 = vmul.f32 %v3229, 0.2
      %v3328 = vmul.f32 %v3232, 0.2
      %v3329 = vmul.f32 %v3237, 0.2
      %v3330 = vmul.f32 %v3240, 0.2
      %v3331 = vmul.f32 %v3245, 0.2
      %v3332 = vmul.f32 %v3248, 0.2
      %v3333 = vmul.f32 %v3253, 0.2
      %v3334 = vmul.f32 %v3256, 0.2
      %v3335 = vmul.f32 %v3261, 0.2
      %v3336 = vmul.f32 %v3264, 0.2
      %v3337 = vmul.f32 %v3269, 0.2
      %v3338 = vmul.f32 %v3272, 0.2
      %v3339 = vsel %vm3275, %v3149, %v3307
      %v3340 = vsel %vm3276, %v3152, %v3308
      %v3341 = vsel %vm3277, %v3157, %v3309
      %v3342 = vsel %vm3278, %v3160, %v3310
      %v3343 = vsel %vm3279, %v3165, %v3311
      %v3344 = vsel %vm3280, %v3168, %v3312
      %v3345 = vsel %vm3281, %v3173, %v3313
      %v3346 = vsel %vm3282, %v3176, %v3314
      %v3347 = vsel %vm3283, %v3181, %v3315
      %v3348 = vsel %vm3284, %v3184, %v3316
      %v3349 = vsel %vm3285, %v3189, %v3317
      %v3350 = vsel %vm3286, %v3192, %v3318
      %v3351 = vsel %vm3287, %v3197, %v3319
      %v3352 = vsel %vm3288, %v3200, %v3320
      %v3353 = vsel %vm3289, %v3205, %v3321
      %v3354 = vsel %vm3290, %v3208, %v3322
      %v3355 = vsel %vm3291, %v3213, %v3323
      %v3356 = vsel %vm3292, %v3216, %v3324
      %v3357 = vsel %vm3293, %v3221, %v3325
      %v3358 = vsel %vm3294, %v3224, %v3326
      %v3359 = vsel %vm3295, %v3229, %v3327
      %v3360 = vsel %vm3296, %v3232, %v3328
      %v3361 = vsel %vm3297, %v3237, %v3329
      %v3362 = vsel %vm3298, %v3240, %v3330
      %v3363 = vsel %vm3299, %v3245, %v3331
      %v3364 = vsel %vm3300, %v3248, %v3332
      %v3365 = vsel %vm3301, %v3253, %v3333
      %v3366 = vsel %vm3302, %v3256, %v3334
      %v3367 = vsel %vm3303, %v3261, %v3335
      %v3368 = vsel %vm3304, %v3264, %v3336
      %v3369 = vsel %vm3305, %v3269, %v3337
      %v3370 = vsel %vm3306, %v3272, %v3338
      %v3371 = vld [vmem:[%s7] sm:$0x1]
      %v3373 = vlaneseq
      %v3374 = vshrl.u32 %v3373, 7
      %v3375 = vsub.s32 0, %v3374
      %v3376 = vrot.slane %v3371, %v3375
      %v3378 = vmul.f32 %v3339, %v3376
      %v3379 = vmul.f32 %v3340, %v3376
      %v3380 = vmul.f32 %v3341, %v3376
      %v3381 = vmul.f32 %v3342, %v3376
      %v3382 = vmul.f32 %v3343, %v3376
      %v3383 = vmul.f32 %v3344, %v3376
      %v3384 = vmul.f32 %v3345, %v3376
      %v3385 = vmul.f32 %v3346, %v3376
      %v3386 = vmul.f32 %v3347, %v3376
      %v3387 = vmul.f32 %v3348, %v3376
      %v3388 = vmul.f32 %v3349, %v3376
      %v3389 = vmul.f32 %v3350, %v3376
      %v3390 = vmul.f32 %v3351, %v3376
      %v3391 = vmul.f32 %v3352, %v3376
      %v3392 = vmul.f32 %v3353, %v3376
      %v3393 = vmul.f32 %v3354, %v3376
      %v3394 = vmul.f32 %v3355, %v3376
      %v3395 = vmul.f32 %v3356, %v3376
      %v3396 = vmul.f32 %v3357, %v3376
      %v3397 = vmul.f32 %v3358, %v3376
      %v3398 = vmul.f32 %v3359, %v3376
      %v3399 = vmul.f32 %v3360, %v3376
      %v3400 = vmul.f32 %v3361, %v3376
      %v3401 = vmul.f32 %v3362, %v3376
      %v3402 = vmul.f32 %v3363, %v3376
      %v3403 = vmul.f32 %v3364, %v3376
      %v3404 = vmul.f32 %v3365, %v3376
      %v3405 = vmul.f32 %v3366, %v3376
      %v3406 = vmul.f32 %v3367, %v3376
      %v3407 = vmul.f32 %v3368, %v3376
      %v3408 = vmul.f32 %v3369, %v3376
      %v3409 = vmul.f32 %v3370, %v3376
      %3410 = vadd.xlane.f32.xlu0 %v3378
      %v3411 = vpop.xlane.xlu0 %3410
      %3412 = vadd.xlane.f32.xlu0 %v3379
      %v3413 = vpop.xlane.xlu0 %3412
      %3414 = vadd.xlane.f32.xlu0 %v3380
      %v3415 = vpop.xlane.xlu0 %3414
      %3416 = vadd.xlane.f32.xlu0 %v3381
      %v3417 = vpop.xlane.xlu0 %3416
      %3418 = vadd.xlane.f32.xlu0 %v3382
      %v3419 = vpop.xlane.xlu0 %3418
      %3420 = vadd.xlane.f32.xlu0 %v3383
      %v3421 = vpop.xlane.xlu0 %3420
      %3422 = vadd.xlane.f32.xlu0 %v3384
      %v3423 = vpop.xlane.xlu0 %3422
      %3424 = vadd.xlane.f32.xlu0 %v3385
      %v3425 = vpop.xlane.xlu0 %3424
      %3426 = vadd.xlane.f32.xlu0 %v3386
      %v3427 = vpop.xlane.xlu0 %3426
      %3428 = vadd.xlane.f32.xlu0 %v3387
      %v3429 = vpop.xlane.xlu0 %3428
      %3430 = vadd.xlane.f32.xlu0 %v3388
      %v3431 = vpop.xlane.xlu0 %3430
      %3432 = vadd.xlane.f32.xlu0 %v3389
      %v3433 = vpop.xlane.xlu0 %3432
      %3434 = vadd.xlane.f32.xlu0 %v3390
      %v3435 = vpop.xlane.xlu0 %3434
      %3436 = vadd.xlane.f32.xlu0 %v3391
      %v3437 = vpop.xlane.xlu0 %3436
      %3438 = vadd.xlane.f32.xlu0 %v3392
      %v3439 = vpop.xlane.xlu0 %3438
      %3440 = vadd.xlane.f32.xlu0 %v3393
      %v3441 = vpop.xlane.xlu0 %3440
      %3442 = vadd.xlane.f32.xlu0 %v3394
      %v3443 = vpop.xlane.xlu0 %3442
      %3444 = vadd.xlane.f32.xlu0 %v3395
      %v3445 = vpop.xlane.xlu0 %3444
      %3446 = vadd.xlane.f32.xlu0 %v3396
      %v3447 = vpop.xlane.xlu0 %3446
      %3448 = vadd.xlane.f32.xlu0 %v3397
      %v3449 = vpop.xlane.xlu0 %3448
      %3450 = vadd.xlane.f32.xlu0 %v3398
      %v3451 = vpop.xlane.xlu0 %3450
      %3452 = vadd.xlane.f32.xlu0 %v3399
      %v3453 = vpop.xlane.xlu0 %3452
      %3454 = vadd.xlane.f32.xlu0 %v3400
      %v3455 = vpop.xlane.xlu0 %3454
      %3456 = vadd.xlane.f32.xlu0 %v3401
      %v3457 = vpop.xlane.xlu0 %3456
      %3458 = vadd.xlane.f32.xlu0 %v3402
      %v3459 = vpop.xlane.xlu0 %3458
      %3460 = vadd.xlane.f32.xlu0 %v3403
      %v3461 = vpop.xlane.xlu0 %3460
      %3462 = vadd.xlane.f32.xlu0 %v3404
      %v3463 = vpop.xlane.xlu0 %3462
      %3464 = vadd.xlane.f32.xlu0 %v3405
      %v3465 = vpop.xlane.xlu0 %3464
      %3466 = vadd.xlane.f32.xlu0 %v3406
      %v3467 = vpop.xlane.xlu0 %3466
      %3468 = vadd.xlane.f32.xlu0 %v3407
      %v3469 = vpop.xlane.xlu0 %3468
      %3470 = vadd.xlane.f32.xlu0 %v3408
      %v3471 = vpop.xlane.xlu0 %3470
      %3472 = vadd.xlane.f32.xlu0 %v3409
      %v3473 = vpop.xlane.xlu0 %3472
      %v3474 = vld [vmem:[#allocation2] sm:$0x1]
      %v3476 = vlaneseq
      %v3477 = vshrl.u32 %v3476, 7
      %v3478 = vsub.s32 0, %v3477
      %v3479 = vrot.slane %v3474, %v3478
      %v3481 = vadd.f32 %v3411, %v3479
      %v3482 = vadd.f32 %v3413, %v3479
      %v3483 = vadd.f32 %v3415, %v3479
      %v3484 = vadd.f32 %v3417, %v3479
      %v3485 = vadd.f32 %v3419, %v3479
      %v3486 = vadd.f32 %v3421, %v3479
      %v3487 = vadd.f32 %v3423, %v3479
      %v3488 = vadd.f32 %v3425, %v3479
      %v3489 = vadd.f32 %v3427, %v3479
      %v3490 = vadd.f32 %v3429, %v3479
      %v3491 = vadd.f32 %v3431, %v3479
      %v3492 = vadd.f32 %v3433, %v3479
      %v3493 = vadd.f32 %v3435, %v3479
      %v3494 = vadd.f32 %v3437, %v3479
      %v3495 = vadd.f32 %v3439, %v3479
      %v3496 = vadd.f32 %v3441, %v3479
      %v3497 = vadd.f32 %v3443, %v3479
      %v3498 = vadd.f32 %v3445, %v3479
      %v3499 = vadd.f32 %v3447, %v3479
      %v3500 = vadd.f32 %v3449, %v3479
      %v3501 = vadd.f32 %v3451, %v3479
      %v3502 = vadd.f32 %v3453, %v3479
      %v3503 = vadd.f32 %v3455, %v3479
      %v3504 = vadd.f32 %v3457, %v3479
      %v3505 = vadd.f32 %v3459, %v3479
      %v3506 = vadd.f32 %v3461, %v3479
      %v3507 = vadd.f32 %v3463, %v3479
      %v3508 = vadd.f32 %v3465, %v3479
      %v3509 = vadd.f32 %v3467, %v3479
      %v3510 = vadd.f32 %v3469, %v3479
      %v3511 = vadd.f32 %v3471, %v3479
      %v3512 = vadd.f32 %v3473, %v3479
      %v3513 = vxor.u32 %v3481, 2147483648
      %v3514 = vxor.u32 %v3482, 2147483648
      %v3515 = vxor.u32 %v3483, 2147483648
      %v3516 = vxor.u32 %v3484, 2147483648
      %v3517 = vxor.u32 %v3485, 2147483648
      %v3518 = vxor.u32 %v3486, 2147483648
      %v3519 = vxor.u32 %v3487, 2147483648
      %v3520 = vxor.u32 %v3488, 2147483648
      %v3521 = vxor.u32 %v3489, 2147483648
      %v3522 = vxor.u32 %v3490, 2147483648
      %v3523 = vxor.u32 %v3491, 2147483648
      %v3524 = vxor.u32 %v3492, 2147483648
      %v3525 = vxor.u32 %v3493, 2147483648
      %v3526 = vxor.u32 %v3494, 2147483648
      %v3527 = vxor.u32 %v3495, 2147483648
      %v3528 = vxor.u32 %v3496, 2147483648
      %v3529 = vxor.u32 %v3497, 2147483648
      %v3530 = vxor.u32 %v3498, 2147483648
      %v3531 = vxor.u32 %v3499, 2147483648
      %v3532 = vxor.u32 %v3500, 2147483648
      %v3533 = vxor.u32 %v3501, 2147483648
      %v3534 = vxor.u32 %v3502, 2147483648
      %v3535 = vxor.u32 %v3503, 2147483648
      %v3536 = vxor.u32 %v3504, 2147483648
      %v3537 = vxor.u32 %v3505, 2147483648
      %v3538 = vxor.u32 %v3506, 2147483648
      %v3539 = vxor.u32 %v3507, 2147483648
      %v3540 = vxor.u32 %v3508, 2147483648
      %v3541 = vxor.u32 %v3509, 2147483648
      %v3542 = vxor.u32 %v3510, 2147483648
      %v3543 = vxor.u32 %v3511, 2147483648
      %v3544 = vxor.u32 %v3512, 2147483648
      %v3545 = vmul.f32 %v3513, 1.442695
      %v3546 = vpow.pop %v3545
      %v3547 = vmul.f32 %v3514, 1.442695
      %v3548 = vpow.pop %v3547
      %v3549 = vmul.f32 %v3515, 1.442695
      %v3550 = vpow.pop %v3549
      %v3551 = vmul.f32 %v3516, 1.442695
      %v3552 = vpow.pop %v3551
      %v3553 = vmul.f32 %v3517, 1.442695
      %v3554 = vpow.pop %v3553
      %v3555 = vmul.f32 %v3518, 1.442695
      %v3556 = vpow.pop %v3555
      %v3557 = vmul.f32 %v3519, 1.442695
      %v3558 = vpow.pop %v3557
      %v3559 = vmul.f32 %v3520, 1.442695
      %v3560 = vpow.pop %v3559
      %v3561 = vmul.f32 %v3521, 1.442695
      %v3562 = vpow.pop %v3561
      %v3563 = vmul.f32 %v3522, 1.442695
      %v3564 = vpow.pop %v3563
      %v3565 = vmul.f32 %v3523, 1.442695
      %v3566 = vpow.pop %v3565
      %v3567 = vmul.f32 %v3524, 1.442695
      %v3568 = vpow.pop %v3567
      %v3569 = vmul.f32 %v3525, 1.442695
      %v3570 = vpow.pop %v3569
      %v3571 = vmul.f32 %v3526, 1.442695
      %v3572 = vpow.pop %v3571
      %v3573 = vmul.f32 %v3527, 1.442695
      %v3574 = vpow.pop %v3573
      %v3575 = vmul.f32 %v3528, 1.442695
      %v3576 = vpow.pop %v3575
      %v3577 = vmul.f32 %v3529, 1.442695
      %v3578 = vpow.pop %v3577
      %v3579 = vmul.f32 %v3530, 1.442695
      %v3580 = vpow.pop %v3579
      %v3581 = vmul.f32 %v3531, 1.442695
      %v3582 = vpow.pop %v3581
      %v3583 = vmul.f32 %v3532, 1.442695
      %v3584 = vpow.pop %v3583
      %v3585 = vmul.f32 %v3533, 1.442695
      %v3586 = vpow.pop %v3585
      %v3587 = vmul.f32 %v3534, 1.442695
      %v3588 = vpow.pop %v3587
      %v3589 = vmul.f32 %v3535, 1.442695
      %v3590 = vpow.pop %v3589
      %v3591 = vmul.f32 %v3536, 1.442695
      %v3592 = vpow.pop %v3591
      %v3593 = vmul.f32 %v3537, 1.442695
      %v3594 = vpow.pop %v3593
      %v3595 = vmul.f32 %v3538, 1.442695
      %v3596 = vpow.pop %v3595
      %v3597 = vmul.f32 %v3539, 1.442695
      %v3598 = vpow.pop %v3597
      %v3599 = vmul.f32 %v3540, 1.442695
      %v3600 = vpow.pop %v3599
      %v3601 = vmul.f32 %v3541, 1.442695
      %v3602 = vpow.pop %v3601
      %v3603 = vmul.f32 %v3542, 1.442695
      %v3604 = vpow.pop %v3603
      %v3605 = vmul.f32 %v3543, 1.442695
      %v3606 = vpow.pop %v3605
      %v3607 = vmul.f32 %v3544, 1.442695
      %v3608 = vpow.pop %v3607
      %v3609 = vadd.f32 %v3546, 1.0
      %v3610 = vadd.f32 %v3548, 1.0
      %v3611 = vadd.f32 %v3550, 1.0
      %v3612 = vadd.f32 %v3552, 1.0
      %v3613 = vadd.f32 %v3554, 1.0
      %v3614 = vadd.f32 %v3556, 1.0
      %v3615 = vadd.f32 %v3558, 1.0
      %v3616 = vadd.f32 %v3560, 1.0
      %v3617 = vadd.f32 %v3562, 1.0
      %v3618 = vadd.f32 %v3564, 1.0
      %v3619 = vadd.f32 %v3566, 1.0
      %v3620 = vadd.f32 %v3568, 1.0
      %v3621 = vadd.f32 %v3570, 1.0
      %v3622 = vadd.f32 %v3572, 1.0
      %v3623 = vadd.f32 %v3574, 1.0
      %v3624 = vadd.f32 %v3576, 1.0
      %v3625 = vadd.f32 %v3578, 1.0
      %v3626 = vadd.f32 %v3580, 1.0
      %v3627 = vadd.f32 %v3582, 1.0
      %v3628 = vadd.f32 %v3584, 1.0
      %v3629 = vadd.f32 %v3586, 1.0
      %v3630 = vadd.f32 %v3588, 1.0
      %v3631 = vadd.f32 %v3590, 1.0
      %v3632 = vadd.f32 %v3592, 1.0
      %v3633 = vadd.f32 %v3594, 1.0
      %v3634 = vadd.f32 %v3596, 1.0
      %v3635 = vadd.f32 %v3598, 1.0
      %v3636 = vadd.f32 %v3600, 1.0
      %v3637 = vadd.f32 %v3602, 1.0
      %v3638 = vadd.f32 %v3604, 1.0
      %v3639 = vadd.f32 %v3606, 1.0
      %v3640 = vadd.f32 %v3608, 1.0
      %v3641 = vrcp.pop %v3609
      %v3642 = vmul.f32 1.0, %v3641
      %v3643 = vrcp.pop %v3610
      %v3644 = vmul.f32 1.0, %v3643
      %v3645 = vrcp.pop %v3611
      %v3646 = vmul.f32 1.0, %v3645
      %v3647 = vrcp.pop %v3612
      %v3648 = vmul.f32 1.0, %v3647
      %v3649 = vrcp.pop %v3613
      %v3650 = vmul.f32 1.0, %v3649
      %v3651 = vrcp.pop %v3614
      %v3652 = vmul.f32 1.0, %v3651
      %v3653 = vrcp.pop %v3615
      %v3654 = vmul.f32 1.0, %v3653
      %v3655 = vrcp.pop %v3616
      %v3656 = vmul.f32 1.0, %v3655
      %v3657 = vrcp.pop %v3617
      %v3658 = vmul.f32 1.0, %v3657
      %v3659 = vrcp.pop %v3618
      %v3660 = vmul.f32 1.0, %v3659
      %v3661 = vrcp.pop %v3619
      %v3662 = vmul.f32 1.0, %v3661
      %v3663 = vrcp.pop %v3620
      %v3664 = vmul.f32 1.0, %v3663
      %v3665 = vrcp.pop %v3621
      %v3666 = vmul.f32 1.0, %v3665
      %v3667 = vrcp.pop %v3622
      %v3668 = vmul.f32 1.0, %v3667
      %v3669 = vrcp.pop %v3623
      %v3670 = vmul.f32 1.0, %v3669
      %v3671 = vrcp.pop %v3624
      %v3672 = vmul.f32 1.0, %v3671
      %v3673 = vrcp.pop %v3625
      %v3674 = vmul.f32 1.0, %v3673
      %v3675 = vrcp.pop %v3626
      %v3676 = vmul.f32 1.0, %v3675
      %v3677 = vrcp.pop %v3627
      %v3678 = vmul.f32 1.0, %v3677
      %v3679 = vrcp.pop %v3628
      %v3680 = vmul.f32 1.0, %v3679
      %v3681 = vrcp.pop %v3629
      %v3682 = vmul.f32 1.0, %v3681
      %v3683 = vrcp.pop %v3630
      %v3684 = vmul.f32 1.0, %v3683
      %v3685 = vrcp.pop %v3631
      %v3686 = vmul.f32 1.0, %v3685
      %v3687 = vrcp.pop %v3632
      %v3688 = vmul.f32 1.0, %v3687
      %v3689 = vrcp.pop %v3633
      %v3690 = vmul.f32 1.0, %v3689
      %v3691 = vrcp.pop %v3634
      %v3692 = vmul.f32 1.0, %v3691
      %v3693 = vrcp.pop %v3635
      %v3694 = vmul.f32 1.0, %v3693
      %v3695 = vrcp.pop %v3636
      %v3696 = vmul.f32 1.0, %v3695
      %v3697 = vrcp.pop %v3637
      %v3698 = vmul.f32 1.0, %v3697
      %v3699 = vrcp.pop %v3638
      %v3700 = vmul.f32 1.0, %v3699
      %v3701 = vrcp.pop %v3639
      %v3702 = vmul.f32 1.0, %v3701
      %v3703 = vrcp.pop %v3640
      %v3704 = vmul.f32 1.0, %v3703
      %vm3705 = vcmask 7168
      %3706 = vst.msk [vmem:[%s336] sm:$0xff] %vm3705, %v3642
      %3707 = vst.msk [vmem:[%s336 + $0x8] sm:$0xff] %vm3705, %v3644
      %3708 = vst.msk [vmem:[%s336 + $0x10] sm:$0xff] %vm3705, %v3646
      %3709 = vst.msk [vmem:[%s336 + $0x18] sm:$0xff] %vm3705, %v3648
      %3710 = vst.msk [vmem:[%s336 + $0x20] sm:$0xff] %vm3705, %v3650
      %3711 = vst.msk [vmem:[%s336 + $0x28] sm:$0xff] %vm3705, %v3652
      %3712 = vst.msk [vmem:[%s336 + $0x30] sm:$0xff] %vm3705, %v3654
      %3713 = vst.msk [vmem:[%s336 + $0x38] sm:$0xff] %vm3705, %v3656
      %3714 = vst.msk [vmem:[%s336 + $0x40] sm:$0xff] %vm3705, %v3658
      %3715 = vst.msk [vmem:[%s336 + $0x48] sm:$0xff] %vm3705, %v3660
      %3716 = vst.msk [vmem:[%s336 + $0x50] sm:$0xff] %vm3705, %v3662
      %3717 = vst.msk [vmem:[%s336 + $0x58] sm:$0xff] %vm3705, %v3664
      %3718 = vst.msk [vmem:[%s336 + $0x60] sm:$0xff] %vm3705, %v3666
      %3719 = vst.msk [vmem:[%s336 + $0x68] sm:$0xff] %vm3705, %v3668
      %3720 = vst.msk [vmem:[%s336 + $0x70] sm:$0xff] %vm3705, %v3670
      %3721 = vst.msk [vmem:[%s336 + $0x78] sm:$0xff] %vm3705, %v3672
      %3722 = vst.msk [vmem:[%s336 + $0x80] sm:$0xff] %vm3705, %v3674
      %3723 = vst.msk [vmem:[%s336 + $0x88] sm:$0xff] %vm3705, %v3676
      %3724 = vst.msk [vmem:[%s336 + $0x90] sm:$0xff] %vm3705, %v3678
      %3725 = vst.msk [vmem:[%s336 + $0x98] sm:$0xff] %vm3705, %v3680
      %3726 = vst.msk [vmem:[%s336 + $0xa0] sm:$0xff] %vm3705, %v3682
      %3727 = vst.msk [vmem:[%s336 + $0xa8] sm:$0xff] %vm3705, %v3684
      %3728 = vst.msk [vmem:[%s336 + $0xb0] sm:$0xff] %vm3705, %v3686
      %3729 = vst.msk [vmem:[%s336 + $0xb8] sm:$0xff] %vm3705, %v3688
      %3730 = vst.msk [vmem:[%s336 + $0xc0] sm:$0xff] %vm3705, %v3690
      %3731 = vst.msk [vmem:[%s336 + $0xc8] sm:$0xff] %vm3705, %v3692
      %3732 = vst.msk [vmem:[%s336 + $0xd0] sm:$0xff] %vm3705, %v3694
      %3733 = vst.msk [vmem:[%s336 + $0xd8] sm:$0xff] %vm3705, %v3696
      %3734 = vst.msk [vmem:[%s336 + $0xe0] sm:$0xff] %vm3705, %v3698
      %3735 = vst.msk [vmem:[%s336 + $0xe8] sm:$0xff] %vm3705, %v3700
      %3736 = vst.msk [vmem:[%s336 + $0xf0] sm:$0xff] %vm3705, %v3702
      %3737 = vst.msk [vmem:[%s336 + $0xf8] sm:$0xff] %vm3705, %v3704
      %s3738 = smul.u32 32, %s22
      %p3739 = scmp.lt.s32.totalorder %s3738, 63
      %s3740 = scalar_select %p3739, %s3738, 63
      %s3741 = smul.addr %s3740, 8
      %s3742 = scalar_lea.vmem %s9, %s3741
      // Predicated region
      $region57: #{tpu_custom_call.1} parent=55 // pred_check
        %p3743 = pneg %p234
      $region58: #{tpu_custom_call.1} parent=55 // pred_check_branch
        %3745 = sbr.rel (%p3743) target = $region60
      $region59: #{tpu_custom_call.1} parent=55 // pred_region
        %s3746 = smul.u32 32, %s22
      $region60: #{tpu_custom_call.1} parent=55 // pred_fallthru
        _
    $region56: #{tpu_custom_call.1} parent=5 // pred_fallthru
      _
    %p3747 = scmp.le.s32.totalorder 2, %s17
    // Predicated region
    $region61: #{tpu_custom_call.1} parent=5 // pred_check
      %p3748 = pneg %p3747
    $region62: #{tpu_custom_call.1} parent=5 // pred_check_branch
      %3750 = sbr.rel (%p3748) target = $region64
    $region63: #{tpu_custom_call.1} parent=5 // pred_region
      %s3751 = ssub.s32 %s17, 2
      // Predicated region
      $region65: #{tpu_custom_call.1} parent=63 // pred_check
        %p3752 = pneg %p240
      $region66: #{tpu_custom_call.1} parent=63 // pred_check_branch
        %3754 = sbr.rel (%p3752) target = $region68
      $region67: #{tpu_custom_call.1} parent=63 // pred_region
        %s3755 = smul.u32 32, %s23
        %p3756 = scmp.lt.s32.totalorder %s3755, 63
        %s3757 = scalar_select %p3756, %s3755, 63
        %s3758 = smul.addr %s3757, 8
        %s3759 = scalar_lea.vmem %s9, %s3758
      $region68: #{tpu_custom_call.1} parent=63 // pred_fallthru
        _
    $region64: #{tpu_custom_call.1} parent=5 // pred_fallthru
      _
  $region6: #{tpu_custom_call.1} parent=0 // loop_footer
    %s21 = sadd.s32 1, %s17
  $region7: #{tpu_custom_call.1} parent=0 // loop_footer_branch
    %16 = sbr.rel target = $region3
  $region8: #{tpu_custom_call.1} parent=0 // loop_exit
    _

</llo_original>
